<compile_context>
chip_gen: v7x
topology: tpu7x:2x2x1
jax: 0.10.0
libtpu: 0.0.40
codegen_flags: <defaults>
</compile_context>

<pallas_src>
import functools
import math

import jax
import jax.numpy as jnp
from jax import lax
from jax.experimental import pallas as pl
from jax.experimental.pallas import tpu as pltpu

C1, C2 = 64, 32          # conv1 / conv2 output channels (fixed by the module)


# -----------------------------------------------------------------------------
# Row-tile selection from a per-step VMEM budget
# -----------------------------------------------------------------------------
def _vmem_estimate(th, H, W, r):
    """Rough per-grid-step VMEM working set (lane-padded), in bytes."""
    R1, R2 = th + 4, th + 2
    CO = r * r
    lanes = lambda c: ((c + 127) // 128) * 128
    b = 2 * (H + 4) * W * lanes(25) * 2            # resident im2col input (2 buffers)
    b += R1 * (W + 2) * lanes(C1) * 2              # y1s scratch (bf16)
    b += R2 * (W + 2) * lanes(C2) * 2              # y2s scratch (bf16)
    b += R1 * W * lanes(3 * C1) * 2                # conv2 kw-folded operand (bf16)
    b += R1 * W * lanes(3 * C2) * 4                # conv2 kh-folded result (f32)
    b += R2 * W * lanes(3 * C2) * 2                # conv3 operand (bf16)
    b += R2 * W * lanes(3 * CO) * 4                # conv3 result (f32)
    b += 2 * 2 * th * lanes(W * r * r) * 4         # output block (2 buffers)
    return b


def _pick_row_tile(N, H, W, r, budget_bytes=36 * 1024 * 1024):
    """Output-row tile TH: H % TH == 0, out-block sublane rule satisfied,
    working set under budget, prefer >=2 total grid steps (v7x has 2 TCs),
    and otherwise as large as possible (amortize per-step overhead)."""
    cands = []
    for th in range(1, H + 1):
        if H % th:
            continue
        T = H // th
        if T > 1 and th % 8 != 0:       # block second-minor dim must be 8-aligned
            continue
        if _vmem_estimate(th, H, W, r) > budget_bytes:
            continue
        cands.append(th)
    if not cands:                       # correctness over budget
        cands = [th for th in range(1, H + 1)
                 if H % th == 0 and (H // th == 1 or th % 8 == 0)]
    multi = [th for th in cands if N * (H // th) >= 2]
    pool = multi if multi else cands
    return max(pool)


# -----------------------------------------------------------------------------
# Fused ESPCN kernel
# -----------------------------------------------------------------------------
def _espcn_kernel(xim_ref, w1_ref, b1_ref, w2_ref, b2_ref, w3_ref, b3_ref,
                  o_ref, y1s, y2s, *, H, W, TH, r):
    # xim_ref: (1, (H+4)*W, 25) bf16  wrapper im2col, per-batch resident
    #          flat row i*W+w <-> conv1 output row i-2 (2-row halo each side)
    # w1_ref : (25, 64)   bf16  conv1 weights, im2col order (kh*5+kw, cout)
    # w2_ref : (192, 96)  bf16  conv2, K = kw*64+cin, N = kh*32+cout
    # w3_ref : (96, 3*r*r)bf16  conv3, K = kw*32+cin, N = kh*r*r+cout
    # b*_ref : (1, C)     f32
    # o_ref  : (1, TH, W*r*r) f32  pixel-shuffled tile, flat row-major
    # y1s    : VMEM (TH+4, W+2, 64) bf16  conv1 activations + zero col borders
    # y2s    : VMEM (TH+2, W+2, 32) bf16  conv2 activations + zero col borders
    CO = r * r
    R1 = TH + 4                        # conv1 rows a tile needs (conv2+conv3 halo)
    R2 = TH + 2                        # conv2 rows a tile needs (conv3 halo)

    t = pl.program_id(1)
    row0 = t * TH                      # first output row of this tile

    # ---- conv1: one (R1*W, 25) x (25, 64) matmul (im2col done in the wrapper)
    start = pl.multiple_of(row0 * W, 8)
    p1 = xim_ref[0, pl.ds(start, R1 * W), :]                     # (R1*W, 25) bf16
    y1 = jnp.dot(p1, w1_ref[...], preferred_element_type=jnp.float32)
    y1 = jnp.tanh(y1 + b1_ref[...]).reshape(R1, W, C1)
    # halo rows outside the image are conv2's zero 'same' padding, not conv1 out
    g1 = (row0 - 2) + lax.broadcasted_iota(jnp.int32, (R1, 1, 1), 0)
    y1 = jnp.where((g1 >= 0) & (g1 < H), y1, 0.0).astype(jnp.bfloat16)
    y1s[:, 1:W + 1, :] = y1
    zc1 = jnp.zeros((R1, 1, C1), jnp.bfloat16)
    y1s[:, 0:1, :] = zc1
    y1s[:, W + 1:W + 2, :] = zc1

    # ---- conv2: kw folded into K (192), kh folded into N (96) -> one matmul
    y1a = y1s[...]                                               # (R1, W+2, 64)
    pk2 = jnp.concatenate(
        [y1a[:, 0:W, :], y1a[:, 1:W + 1, :], y1a[:, 2:W + 2, :]], axis=-1)
    z2 = jnp.dot(pk2.reshape(R1 * W, 3 * C1), w2_ref[...],
                 preferred_element_type=jnp.float32)             # (R1*W, 96)
    # combine the 3 kh slabs by flat-row-shifted adds (shift = W rows)
    s2 = (z2[0:R2 * W, 0:C2]
          + z2[W:(R2 + 1) * W, C2:2 * C2]
          + z2[2 * W:(R2 + 2) * W, 2 * C2:3 * C2])
    y2 = jnp.tanh(s2 + b2_ref[...]).reshape(R2, W, C2)
    g2 = (row0 - 1) + lax.broadcasted_iota(jnp.int32, (R2, 1, 1), 0)
    y2 = jnp.where((g2 >= 0) & (g2 < H), y2, 0.0).astype(jnp.bfloat16)
    y2s[:, 1:W + 1, :] = y2
    zc2 = jnp.zeros((R2, 1, C2), jnp.bfloat16)
    y2s[:, 0:1, :] = zc2
    y2s[:, W + 1:W + 2, :] = zc2

    # ---- conv3: kw->K (96), kh->N (3*r*r) -> one matmul, + sigmoid
    y2a = y2s[...]                                               # (R2, W+2, 32)
    pk3 = jnp.concatenate(
        [y2a[:, 0:W, :], y2a[:, 1:W + 1, :], y2a[:, 2:W + 2, :]], axis=-1)
    z3 = jnp.dot(pk3.reshape(R2 * W, 3 * C2), w3_ref[...],
                 preferred_element_type=jnp.float32)             # (R2*W, 3*CO)
    s3 = (z3[0:TH * W, 0:CO]
          + z3[W:(TH + 1) * W, CO:2 * CO]
          + z3[2 * W:(TH + 2) * W, 2 * CO:3 * CO])
    y3 = jax.nn.sigmoid(s3 + b3_ref[...]).reshape(TH, W, CO)

    # ---- fused PixelShuffle: row h of the output tile (width W*r*r) is the
    # concatenation of upscaled rows h*r .. h*r + r - 1 -> already the flat
    # row-major layout of the (TH*r, W*r) tile; wrapper reshape is free.
    planes = [y3[:, :, rh * r:(rh + 1) * r].reshape(TH, W * r) for rh in range(r)]
    out = jnp.concatenate(planes, axis=-1)                       # (TH, W*r*r)
    o_ref[0] = out.astype(o_ref.dtype)


# -----------------------------------------------------------------------------
# ESPCN forward (NCHW in / NCHW out, like the PyTorch module)
# -----------------------------------------------------------------------------
def espcn_forward(x_nchw, params, upscale_factor=2):
    (w1, b1), (w2, b2), (w3, b3) = params          # HWIO weights, f32
    r = upscale_factor
    N, C, H, W = x_nchw.shape
    assert C == 1, "ESPCN takes a single-channel input"
    assert W % 8 == 0, "width must be a multiple of 8 (sublane tiling)"
    CO = r * r

    TH = _pick_row_tile(N, H, W, r)
    T = H // TH

    # conv1 im2col hoisted to the wrapper (tiny: 1 input channel).  Rows
    # i in [0, H+4) correspond to conv1 output rows i-2 (tile halo for the
    # 'same' row padding of conv2+conv3).  Column padding of conv2/conv3 lives
    # as zero borders of the VMEM intermediates inside the kernel.
    x = x_nchw[:, 0, :, :]
    xpad = jnp.pad(x, ((0, 0), (4, 4), (2, 2)))
    taps = [xpad[:, i:i + H + 4, j:j + W] for i in range(5) for j in range(5)]
    xim = (jnp.stack(taps, axis=-1)
           .reshape(N, (H + 4) * W, 25)
           .astype(jnp.bfloat16))

    # Weight repack (once, outside the kernel): kw folded into the contraction,
    # kh folded into the MXU N dimension.  bf16 operands, f32 accumulation.
    w1r = w1.reshape(25, C1).astype(jnp.bfloat16)                        # (25, 64)
    w2p = (jnp.transpose(w2, (1, 2, 0, 3))
           .reshape(3 * C1, 3 * C2).astype(jnp.bfloat16))                # (192, 96)
    w3p = (jnp.transpose(w3, (1, 2, 0, 3))
           .reshape(3 * C2, 3 * CO).astype(jnp.bfloat16))                # (96, 3*r*r)
    b1r = b1.reshape(1, C1).astype(jnp.float32)
    b2r = b2.reshape(1, C2).astype(jnp.float32)
    b3r = b3.reshape(1, CO).astype(jnp.float32)

    kernel = functools.partial(_espcn_kernel, H=H, W=W, TH=TH, r=r)
    out = pl.pallas_call(
        kernel,
        out_shape=jax.ShapeDtypeStruct((N, H, W * r * r), jnp.float32),
        grid=(N, T),
        in_specs=[
            # whole im2col'd image: fetched once per batch element, resident over t
            pl.BlockSpec((1, (H + 4) * W, 25), lambda n, t: (n, 0, 0)),
            pl.BlockSpec((25, C1), lambda n, t: (0, 0)),
            pl.BlockSpec((1, C1), lambda n, t: (0, 0)),
            pl.BlockSpec((3 * C1, 3 * C2), lambda n, t: (0, 0)),
            pl.BlockSpec((1, C2), lambda n, t: (0, 0)),
            pl.BlockSpec((3 * C2, 3 * CO), lambda n, t: (0, 0)),
            pl.BlockSpec((1, CO), lambda n, t: (0, 0)),
        ],
        out_specs=pl.BlockSpec((1, TH, W * r * r), lambda n, t: (n, t, 0)),
        scratch_shapes=[
            pltpu.VMEM((TH + 4, W + 2, C1), jnp.bfloat16),   # conv1 activations
            pltpu.VMEM((TH + 2, W + 2, C2), jnp.bfloat16),   # conv2 activations
        ],
        compiler_params=pltpu.CompilerParams(
            dimension_semantics=("parallel", "parallel"),
            vmem_limit_bytes=48 * 1024 * 1024),
    )(xim, w1r, b1r, w2p, b2r, w3p, b3r)

    # (N, H, W*r*r) is already the pixel-shuffled row-major layout.
    return out.reshape(N, H * r, W * r)[:, None, :, :]      # NCHW (N,1,H*r,W*r)


# -----------------------------------------------------------------------------
# Deterministic parameter init (PyTorch Conv2d default U(-1/sqrt(fan_in), +)),
# stored in HWIO layout.
# -----------------------------------------------------------------------------
def init_params(key, upscale_factor=2):
    shapes = [
        (5, 5, 1, 64),
        (3, 3, 64, 32),
        (3, 3, 32, 1 * upscale_factor ** 2),
    ]
    params = []
    for shp in shapes:
        kh, kw, cin, cout = shp
        bound = 1.0 / math.sqrt(kh * kw * cin)
        key, kw_key, kb_key = jax.random.split(key, 3)
        w = jax.random.uniform(kw_key, shp, jnp.float32, -bound, bound)
        b = jax.random.uniform(kb_key, (cout,), jnp.float32, -bound, bound)
        params.append((w, b))
    return params


# -----------------------------------------------------------------------------
# Pure-JAX reference (lax conv) for the correctness check.
# -----------------------------------------------------------------------------
def espcn_reference(x_nchw, params, upscale_factor=2):
    (w1, b1), (w2, b2), (w3, b3) = params
    r = upscale_factor

    def conv(x, w, b):
        y = lax.conv_general_dilated(
            x, w, window_strides=(1, 1), padding="SAME",
            dimension_numbers=("NHWC", "HWIO", "NHWC"))
        return y + b

    x = jnp.transpose(x_nchw, (0, 2, 3, 1))
    x = jnp.tanh(conv(x, w1, b1))
    x = jnp.tanh(conv(x, w2, b2))
    x = conv(x, w3, b3)
    N, H, W, _ = x.shape
    x = x.reshape(N, H, W, r, r)
    x = jnp.transpose(x, (0, 1, 3, 2, 4)).reshape(N, H * r, W * r)
    x = jax.nn.sigmoid(x)
    return x[:, None, :, :]


if __name__ == "__main__":
    key = jax.random.PRNGKey(0)
    pkey, xkey = jax.random.split(key)

    upscale = 2
    params = init_params(pkey, upscale)

    # Input matches nn.Conv2d(1, ...) : NCHW, 1 channel.
    x = jax.random.normal(xkey, (2, 1, 16, 16), jnp.float32)

    out = jax.block_until_ready(espcn_forward(x, params, upscale))
    ref = jax.block_until_ready(espcn_reference(x, params, upscale))

    assert out.shape == (2, 1, 32, 32), out.shape
    # bf16 matmul operands (f32 accumulation) -> relaxed tolerance per review.
    err = float(jnp.max(jnp.abs(out - ref)))
    assert jnp.allclose(out, ref, atol=2e-2, rtol=2e-2), err

    print("KERNEL_OK")
</pallas_src>

<mosaic_0001>
module attributes {stable_mosaic.version = 11 : i64} {
  func.func @_espcn_kernel(%arg0: i32, %arg1: i32, %arg2: memref<1x320x25xbf16, #tpu.memory_space<vmem>>, %arg3: memref<25x64xbf16, #tpu.memory_space<vmem>>, %arg4: memref<1x64xf32, #tpu.memory_space<vmem>>, %arg5: memref<192x96xbf16, #tpu.memory_space<vmem>>, %arg6: memref<1x32xf32, #tpu.memory_space<vmem>>, %arg7: memref<96x12xbf16, #tpu.memory_space<vmem>>, %arg8: memref<1x4xf32, #tpu.memory_space<vmem>>, %arg9: memref<1x16x64xf32, #tpu.memory_space<vmem>>, %arg10: memref<20x18x64xbf16, #tpu.memory_space<vmem>>, %arg11: memref<18x18x32xbf16, #tpu.memory_space<vmem>>) attributes {dimension_semantics = [#tpu.dimension_semantics<parallel>, #tpu.dimension_semantics<parallel>], iteration_bounds = array<i64: 2, 1>, scalar_prefetch = 0 : i64, scratch_operands = 2 : i64, tpu.core_type = #tpu.core_type<tc>, window_params = [{transform_indices = @transform_0, window_bounds = array<i64: 1, 320, 25>}, {pipeline_mode = #tpu.pipeline_mode<synchronous>, transform_indices = @transform_1, window_bounds = array<i64: 25, 64>}, {pipeline_mode = #tpu.pipeline_mode<synchronous>, transform_indices = @transform_2, window_bounds = array<i64: 1, 64>}, {pipeline_mode = #tpu.pipeline_mode<synchronous>, transform_indices = @transform_3, window_bounds = array<i64: 192, 96>}, {pipeline_mode = #tpu.pipeline_mode<synchronous>, transform_indices = @transform_4, window_bounds = array<i64: 1, 32>}, {pipeline_mode = #tpu.pipeline_mode<synchronous>, transform_indices = @transform_5, window_bounds = array<i64: 96, 12>}, {pipeline_mode = #tpu.pipeline_mode<synchronous>, transform_indices = @transform_6, window_bounds = array<i64: 1, 4>}, {transform_indices = @transform_7, window_bounds = array<i64: 1, 16, 64>}]} {
    %c16_i32 = arith.constant 16 : i32
    %0 = arith.muli %arg1, %c16_i32 : i32
    %c16_i32_0 = arith.constant 16 : i32
    %1 = arith.muli %0, %c16_i32_0 : i32
    %2 = tpu.assume_multiple %1, 8 : i32
    %c0 = arith.constant 0 : index
    %3 = arith.index_cast %2 : i32 to index
    %c0_1 = arith.constant 0 : index
    %4 = vector.load %arg2[%c0, %3, %c0_1] : memref<1x320x25xbf16, #tpu.memory_space<vmem>>, vector<1x320x25xbf16>
    %5 = vector.shape_cast %4 : vector<1x320x25xbf16> to vector<320x25xbf16>
    %c0_2 = arith.constant 0 : index
    %c0_3 = arith.constant 0 : index
    %6 = vector.load %arg3[%c0_2, %c0_3] : memref<25x64xbf16, #tpu.memory_space<vmem>>, vector<25x64xbf16>
    %cst = arith.constant dense<0.000000e+00> : vector<320x64xf32>
    %7 = tpu.matmul %5, %6, %cst {dimension_numbers = #tpu.dot_dimension_numbers<[1], [0], [0], [1], [0, 0, 1, 1], [], []>} : vector<320x25xbf16>, vector<25x64xbf16>, vector<320x64xf32> -> vector<320x64xf32>
    %c0_4 = arith.constant 0 : index
    %c0_5 = arith.constant 0 : index
    %8 = vector.load %arg4[%c0_4, %c0_5] : memref<1x64xf32, #tpu.memory_space<vmem>>, vector<1x64xf32>
    %9 = vector.broadcast %8 : vector<1x64xf32> to vector<320x64xf32>
    %10 = arith.addf %7, %9 : vector<320x64xf32>
    %11 = math.tanh %10 : vector<320x64xf32>
    %12 = vector.shape_cast %11 : vector<320x64xf32> to vector<20x16x64xf32>
    %c2_i32 = arith.constant 2 : i32
    %13 = arith.subi %0, %c2_i32 : i32
    %14 = tpu.iota {dimensions = array<i32: 0>} : vector<20x1x1xi32>
    %15 = vector.broadcast %13 : i32 to vector<20x1x1xi32>
    %16 = arith.addi %15, %14 : vector<20x1x1xi32>
    %c0_i32 = arith.constant 0 : i32
    %17 = vector.broadcast %c0_i32 : i32 to vector<20x1x1xi32>
    %18 = arith.cmpi sge, %16, %17 : vector<20x1x1xi32>
    %c16_i32_6 = arith.constant 16 : i32
    %19 = vector.broadcast %c16_i32_6 : i32 to vector<20x1x1xi32>
    %20 = arith.cmpi slt, %16, %19 : vector<20x1x1xi32>
    %21 = arith.andi %18, %20 : vector<20x1x1xi1>
    %cst_7 = arith.constant 0.000000e+00 : f32
    %22 = vector.shape_cast %21 : vector<20x1x1xi1> to vector<20x1x1xi1>
    %23 = vector.broadcast %22 : vector<20x1x1xi1> to vector<20x16x64xi1>
    %24 = vector.broadcast %cst_7 : f32 to vector<20x16x64xf32>
    %25 = arith.select %23, %12, %24 : vector<20x16x64xi1>, vector<20x16x64xf32>
    %26 = arith.truncf %25 : vector<20x16x64xf32> to vector<20x16x64xbf16>
    %c0_8 = arith.constant 0 : index
    %c1 = arith.constant 1 : index
    %c0_9 = arith.constant 0 : index
    %27 = vector.load %arg10[%c0_8, %c1, %c0_9] : memref<20x18x64xbf16, #tpu.memory_space<vmem>>, vector<20x16x64xbf16>
    tpu.vector_store %arg10[%c0_8, %c1, %c0_9], %26 {strides = array<i32>} : memref<20x18x64xbf16, #tpu.memory_space<vmem>>, vector<20x16x64xbf16>,
    %cst_10 = arith.constant 0.000000e+00 : bf16
    %28 = vector.broadcast %cst_10 : bf16 to vector<20x1x64xbf16>
    %c0_11 = arith.constant 0 : index
    %c0_12 = arith.constant 0 : index
    %c0_13 = arith.constant 0 : index
    %29 = vector.load %arg10[%c0_11, %c0_12, %c0_13] : memref<20x18x64xbf16, #tpu.memory_space<vmem>>, vector<20x1x64xbf16>
    tpu.vector_store %arg10[%c0_11, %c0_12, %c0_13], %28 {strides = array<i32>} : memref<20x18x64xbf16, #tpu.memory_space<vmem>>, vector<20x1x64xbf16>,
    %c0_14 = arith.constant 0 : index
    %c17 = arith.constant 17 : index
    %c0_15 = arith.constant 0 : index
    %30 = vector.load %arg10[%c0_14, %c17, %c0_15] : memref<20x18x64xbf16, #tpu.memory_space<vmem>>, vector<20x1x64xbf16>
    tpu.vector_store %arg10[%c0_14, %c17, %c0_15], %28 {strides = array<i32>} : memref<20x18x64xbf16, #tpu.memory_space<vmem>>, vector<20x1x64xbf16>,
    %c0_16 = arith.constant 0 : index
    %c0_17 = arith.constant 0 : index
    %c0_18 = arith.constant 0 : index
    %31 = vector.load %arg10[%c0_16, %c0_17, %c0_18] : memref<20x18x64xbf16, #tpu.memory_space<vmem>>, vector<20x18x64xbf16>
    %32 = vector.extract_strided_slice %31 {offsets = [0, 0, 0], sizes = [20, 16, 64], strides = [1, 1, 1]} : vector<20x18x64xbf16> to vector<20x16x64xbf16>
    %33 = vector.extract_strided_slice %31 {offsets = [0, 1, 0], sizes = [20, 16, 64], strides = [1, 1, 1]} : vector<20x18x64xbf16> to vector<20x16x64xbf16>
    %34 = vector.extract_strided_slice %31 {offsets = [0, 2, 0], sizes = [20, 16, 64], strides = [1, 1, 1]} : vector<20x18x64xbf16> to vector<20x16x64xbf16>
    %35 = tpu.concatenate %32, %33, %34 in 2 : vector<20x16x64xbf16>, vector<20x16x64xbf16>, vector<20x16x64xbf16> -> vector<20x16x192xbf16>
    %36 = vector.shape_cast %35 : vector<20x16x192xbf16> to vector<320x192xbf16>
    %c0_19 = arith.constant 0 : index
    %c0_20 = arith.constant 0 : index
    %37 = vector.load %arg5[%c0_19, %c0_20] : memref<192x96xbf16, #tpu.memory_space<vmem>>, vector<192x96xbf16>
    %cst_21 = arith.constant dense<0.000000e+00> : vector<320x96xf32>
    %38 = tpu.matmul %36, %37, %cst_21 {dimension_numbers = #tpu.dot_dimension_numbers<[1], [0], [0], [1], [0, 0, 1, 1], [], []>} : vector<320x192xbf16>, vector<192x96xbf16>, vector<320x96xf32> -> vector<320x96xf32>
    %39 = vector.extract_strided_slice %38 {offsets = [0, 0], sizes = [288, 32], strides = [1, 1]} : vector<320x96xf32> to vector<288x32xf32>
    %40 = vector.extract_strided_slice %38 {offsets = [16, 32], sizes = [288, 32], strides = [1, 1]} : vector<320x96xf32> to vector<288x32xf32>
    %41 = arith.addf %39, %40 : vector<288x32xf32>
    %42 = vector.extract_strided_slice %38 {offsets = [32, 64], sizes = [288, 32], strides = [1, 1]} : vector<320x96xf32> to vector<288x32xf32>
    %43 = arith.addf %41, %42 : vector<288x32xf32>
    %c0_22 = arith.constant 0 : index
    %c0_23 = arith.constant 0 : index
    %44 = vector.load %arg6[%c0_22, %c0_23] : memref<1x32xf32, #tpu.memory_space<vmem>>, vector<1x32xf32>
    %45 = vector.broadcast %44 : vector<1x32xf32> to vector<288x32xf32>
    %46 = arith.addf %43, %45 : vector<288x32xf32>
    %47 = math.tanh %46 : vector<288x32xf32>
    %48 = vector.shape_cast %47 : vector<288x32xf32> to vector<18x16x32xf32>
    %c1_i32 = arith.constant 1 : i32
    %49 = arith.subi %0, %c1_i32 : i32
    %50 = tpu.iota {dimensions = array<i32: 0>} : vector<18x1x1xi32>
    %51 = vector.broadcast %49 : i32 to vector<18x1x1xi32>
    %52 = arith.addi %51, %50 : vector<18x1x1xi32>
    %c0_i32_24 = arith.constant 0 : i32
    %53 = vector.broadcast %c0_i32_24 : i32 to vector<18x1x1xi32>
    %54 = arith.cmpi sge, %52, %53 : vector<18x1x1xi32>
    %c16_i32_25 = arith.constant 16 : i32
    %55 = vector.broadcast %c16_i32_25 : i32 to vector<18x1x1xi32>
    %56 = arith.cmpi slt, %52, %55 : vector<18x1x1xi32>
    %57 = arith.andi %54, %56 : vector<18x1x1xi1>
    %cst_26 = arith.constant 0.000000e+00 : f32
    %58 = vector.shape_cast %57 : vector<18x1x1xi1> to vector<18x1x1xi1>
    %59 = vector.broadcast %58 : vector<18x1x1xi1> to vector<18x16x32xi1>
    %60 = vector.broadcast %cst_26 : f32 to vector<18x16x32xf32>
    %61 = arith.select %59, %48, %60 : vector<18x16x32xi1>, vector<18x16x32xf32>
    %62 = arith.truncf %61 : vector<18x16x32xf32> to vector<18x16x32xbf16>
    %c0_27 = arith.constant 0 : index
    %c1_28 = arith.constant 1 : index
    %c0_29 = arith.constant 0 : index
    %63 = vector.load %arg11[%c0_27, %c1_28, %c0_29] : memref<18x18x32xbf16, #tpu.memory_space<vmem>>, vector<18x16x32xbf16>
    tpu.vector_store %arg11[%c0_27, %c1_28, %c0_29], %62 {strides = array<i32>} : memref<18x18x32xbf16, #tpu.memory_space<vmem>>, vector<18x16x32xbf16>,
    %cst_30 = arith.constant 0.000000e+00 : bf16
    %64 = vector.broadcast %cst_30 : bf16 to vector<18x1x32xbf16>
    %c0_31 = arith.constant 0 : index
    %c0_32 = arith.constant 0 : index
    %c0_33 = arith.constant 0 : index
    %65 = vector.load %arg11[%c0_31, %c0_32, %c0_33] : memref<18x18x32xbf16, #tpu.memory_space<vmem>>, vector<18x1x32xbf16>
    tpu.vector_store %arg11[%c0_31, %c0_32, %c0_33], %64 {strides = array<i32>} : memref<18x18x32xbf16, #tpu.memory_space<vmem>>, vector<18x1x32xbf16>,
    %c0_34 = arith.constant 0 : index
    %c17_35 = arith.constant 17 : index
    %c0_36 = arith.constant 0 : index
    %66 = vector.load %arg11[%c0_34, %c17_35, %c0_36] : memref<18x18x32xbf16, #tpu.memory_space<vmem>>, vector<18x1x32xbf16>
    tpu.vector_store %arg11[%c0_34, %c17_35, %c0_36], %64 {strides = array<i32>} : memref<18x18x32xbf16, #tpu.memory_space<vmem>>, vector<18x1x32xbf16>,
    %c0_37 = arith.constant 0 : index
    %c0_38 = arith.constant 0 : index
    %c0_39 = arith.constant 0 : index
    %67 = vector.load %arg11[%c0_37, %c0_38, %c0_39] : memref<18x18x32xbf16, #tpu.memory_space<vmem>>, vector<18x18x32xbf16>
    %68 = vector.extract_strided_slice %67 {offsets = [0, 0, 0], sizes = [18, 16, 32], strides = [1, 1, 1]} : vector<18x18x32xbf16> to vector<18x16x32xbf16>
    %69 = vector.extract_strided_slice %67 {offsets = [0, 1, 0], sizes = [18, 16, 32], strides = [1, 1, 1]} : vector<18x18x32xbf16> to vector<18x16x32xbf16>
    %70 = vector.extract_strided_slice %67 {offsets = [0, 2, 0], sizes = [18, 16, 32], strides = [1, 1, 1]} : vector<18x18x32xbf16> to vector<18x16x32xbf16>
    %71 = tpu.concatenate %68, %69, %70 in 2 : vector<18x16x32xbf16>, vector<18x16x32xbf16>, vector<18x16x32xbf16> -> vector<18x16x96xbf16>
    %72 = vector.shape_cast %71 : vector<18x16x96xbf16> to vector<288x96xbf16>
    %c0_40 = arith.constant 0 : index
    %c0_41 = arith.constant 0 : index
    %73 = vector.load %arg7[%c0_40, %c0_41] : memref<96x12xbf16, #tpu.memory_space<vmem>>, vector<96x12xbf16>
    %cst_42 = arith.constant dense<0.000000e+00> : vector<288x12xf32>
    %74 = tpu.matmul %72, %73, %cst_42 {dimension_numbers = #tpu.dot_dimension_numbers<[1], [0], [0], [1], [0, 0, 1, 1], [], []>} : vector<288x96xbf16>, vector<96x12xbf16>, vector<288x12xf32> -> vector<288x12xf32>
    %75 = vector.extract_strided_slice %74 {offsets = [0, 0], sizes = [256, 4], strides = [1, 1]} : vector<288x12xf32> to vector<256x4xf32>
    %76 = vector.extract_strided_slice %74 {offsets = [16, 4], sizes = [256, 4], strides = [1, 1]} : vector<288x12xf32> to vector<256x4xf32>
    %77 = arith.addf %75, %76 : vector<256x4xf32>
    %78 = vector.extract_strided_slice %74 {offsets = [32, 8], sizes = [256, 4], strides = [1, 1]} : vector<288x12xf32> to vector<256x4xf32>
    %79 = arith.addf %77, %78 : vector<256x4xf32>
    %c0_43 = arith.constant 0 : index
    %c0_44 = arith.constant 0 : index
    %80 = vector.load %arg8[%c0_43, %c0_44] : memref<1x4xf32, #tpu.memory_space<vmem>>, vector<1x4xf32>
    %81 = vector.broadcast %80 : vector<1x4xf32> to vector<256x4xf32>
    %82 = arith.addf %79, %81 : vector<256x4xf32>
    %83 = arith.negf %82 : vector<256x4xf32>
    %84 = math.exp %83 : vector<256x4xf32>
    %cst_45 = arith.constant 1.000000e+00 : f32
    %85 = vector.broadcast %cst_45 : f32 to vector<256x4xf32>
    %86 = arith.addf %85, %84 : vector<256x4xf32>
    %87 = arith.divf %85, %86 : vector<256x4xf32>
    %88 = vector.shape_cast %87 : vector<256x4xf32> to vector<16x16x4xf32>
    %89 = vector.extract_strided_slice %88 {offsets = [0, 0, 0], sizes = [16, 16, 2], strides = [1, 1, 1]} : vector<16x16x4xf32> to vector<16x16x2xf32>
    %90 = vector.shape_cast %89 : vector<16x16x2xf32> to vector<16x32xf32>
    %91 = vector.extract_strided_slice %88 {offsets = [0, 0, 2], sizes = [16, 16, 2], strides = [1, 1, 1]} : vector<16x16x4xf32> to vector<16x16x2xf32>
    %92 = vector.shape_cast %91 : vector<16x16x2xf32> to vector<16x32xf32>
    %93 = tpu.concatenate %90, %92 in 1 : vector<16x32xf32>, vector<16x32xf32> -> vector<16x64xf32>
    %c0_46 = arith.constant 0 : index
    %c0_47 = arith.constant 0 : index
    %c0_48 = arith.constant 0 : index
    %94 = vector.load %arg9[%c0_46, %c0_47, %c0_48] : memref<1x16x64xf32, #tpu.memory_space<vmem>>, vector<1x16x64xf32>
    %95 = vector.shape_cast %94 : vector<1x16x64xf32> to vector<16x64xf32>
    %96 = vector.shape_cast %93 : vector<16x64xf32> to vector<1x16x64xf32>
    tpu.vector_store %arg9[%c0_46, %c0_47, %c0_48], %96 {strides = array<i32>} : memref<1x16x64xf32, #tpu.memory_space<vmem>>, vector<1x16x64xf32>,
    return
  }
  func.func @transform_0(%arg0: i32, %arg1: i32) -> (i32, i32, i32) {
    %c0_i32 = arith.constant 0 : i32
    %c0_i32_0 = arith.constant 0 : i32
    %c0_i32_1 = arith.constant 0 : i32
    return %arg0, %c0_i32, %c0_i32_0 : i32, i32, i32
  }
  func.func @transform_1(%arg0: i32, %arg1: i32) -> (i32, i32) {
    %c0_i32 = arith.constant 0 : i32
    %c0_i32_0 = arith.constant 0 : i32
    %c0_i32_1 = arith.constant 0 : i32
    return %c0_i32, %c0_i32_0 : i32, i32
  }
  func.func @transform_2(%arg0: i32, %arg1: i32) -> (i32, i32) {
    %c0_i32 = arith.constant 0 : i32
    %c0_i32_0 = arith.constant 0 : i32
    %c0_i32_1 = arith.constant 0 : i32
    return %c0_i32, %c0_i32_0 : i32, i32
  }
  func.func @transform_3(%arg0: i32, %arg1: i32) -> (i32, i32) {
    %c0_i32 = arith.constant 0 : i32
    %c0_i32_0 = arith.constant 0 : i32
    %c0_i32_1 = arith.constant 0 : i32
    return %c0_i32, %c0_i32_0 : i32, i32
  }
  func.func @transform_4(%arg0: i32, %arg1: i32) -> (i32, i32) {
    %c0_i32 = arith.constant 0 : i32
    %c0_i32_0 = arith.constant 0 : i32
    %c0_i32_1 = arith.constant 0 : i32
    return %c0_i32, %c0_i32_0 : i32, i32
  }
  func.func @transform_5(%arg0: i32, %arg1: i32) -> (i32, i32) {
    %c0_i32 = arith.constant 0 : i32
    %c0_i32_0 = arith.constant 0 : i32
    %c0_i32_1 = arith.constant 0 : i32
    return %c0_i32, %c0_i32_0 : i32, i32
  }
  func.func @transform_6(%arg0: i32, %arg1: i32) -> (i32, i32) {
    %c0_i32 = arith.constant 0 : i32
    %c0_i32_0 = arith.constant 0 : i32
    %c0_i32_1 = arith.constant 0 : i32
    return %c0_i32, %c0_i32_0 : i32, i32
  }
  func.func @transform_7(%arg0: i32, %arg1: i32) -> (i32, i32, i32) {
    %c0_i32 = arith.constant 0 : i32
    %c0_i32_0 = arith.constant 0 : i32
    return %arg0, %arg1, %c0_i32 : i32, i32, i32
  }
}

</mosaic_0001>

<llo_original>
// kernel: tpu_custom_call.1
$region0: #{tpu_custom_call.1}
  #allocation0 [shape = 'u32[]', space=smem, size = 0x4, offset = 0x4, fixed_abs, tag = 'smem constant byte address 0x4 - core index']
  #allocation1 [shape = 'u32[144,128]{1,0:T(1,128)}', space=vmem, size = 0x12000, scoped, tag = 'internal scratch']
  #allocation2 [shape = 'bf16[20,18,64]{2,1,0:T(8,128)(2,1)}', space=vmem, size = 0x1e000, scoped, tag = 'scratch operand']
  #allocation3 [shape = 'bf16[18,18,32]{2,1,0:T(8,128)(2,1)}', space=vmem, size = 0x1b000, scoped, tag = 'scratch operand']
  %s0 = inlined_call_operand.vmem [shape: bf16[2,320,25], index: 0, kind: input, shape index: {}]
  %s1 = inlined_call_operand.vmem [shape: bf16[25,64], index: 1, kind: input, shape index: {}]
  %s2 = inlined_call_operand.vmem [shape: f32[1,64], index: 2, kind: input, shape index: {}]
  %s3 = inlined_call_operand.vmem [shape: bf16[192,96], index: 3, kind: input, shape index: {}]
  %s4 = inlined_call_operand.vmem [shape: f32[1,32], index: 4, kind: input, shape index: {}]
  %s5 = inlined_call_operand.vmem [shape: bf16[96,12], index: 5, kind: input, shape index: {}]
  %s6 = inlined_call_operand.vmem [shape: f32[1,4], index: 6, kind: input, shape index: {}]
  %s7 = inlined_call_operand.hbm [shape: f32[2,16,64], index: 7, kind: output, shape index: {}]
  %s8 = sld [smem:[#allocation0]]
  $region61: #{tpu_custom_call.1} parent=0
    _
  %s10 = ssub.s32 1, %s8
  %s11 = scalar_select 0, %s10, %s8
  $region1: #{tpu_custom_call.1} parent=0
    #allocation4 [shape = 'u8[16384]{0}', space=vmem, size = 0x4000, scoped, tag = 'output window, operand 0']
    #allocation5 [shape = 's32[2]{0}', space=sflag, size = 0x8, scoped, tag = 'scoped memory for tpu_custom_call.1']
    %12 = vsyncpa [#allocation5], 0
    %s13 = scalar_lea.sflag [#allocation5], 1
    %14 = vsyncpa %s13, 0
    loop: start=0, step=1, limit=4
    $region2: #{tpu_custom_call.1} parent=1 // loop_pre_header
      _
    $region3: #{tpu_custom_call.1} parent=1 // loop_header
      %s16 = sphi 0, %s20
      %p17 = scmp.ge.s32.totalorder %s16, 4
      %s23 = sphi 0, %s35
      %s24 = sphi 0, %s31
      %s25 = sphi 0, %s23
      %s26 = sphi 0, %s24
      %s27 = sphi 0, %s25
      %s28 = sphi 0, %s26
      %s38 = sphi 0, %s40
      %s41 = sphi 0, %s38
      %s42 = sphi 0, %s41
      %s58 = sphi 0, %s42
      %s62 = sphi 0, %s62
      %s64 = sphi 0, %s62
      %s65 = sphi 0, %s64
      %s79 = sphi 0, %s65
      %s83 = sphi 0, %s83
      %s85 = sphi 0, %s83
      %s86 = sphi 0, %s85
      %s100 = sphi 0, %s86
      %s104 = sphi 0, %s104
      %s106 = sphi 0, %s104
      %s107 = sphi 0, %s106
      %s121 = sphi 0, %s107
      %s125 = sphi 0, %s125
      %s127 = sphi 0, %s125
      %s128 = sphi 0, %s127
      %s142 = sphi 0, %s128
      %s146 = sphi 0, %s146
      %s148 = sphi 0, %s146
      %s149 = sphi 0, %s148
      %s163 = sphi 0, %s149
      %s167 = sphi 0, %s167
      %s169 = sphi 0, %s167
      %s170 = sphi 0, %s169
      %s184 = sphi 0, %s170
      %s192 = sphi 0, %s194
      %s195 = sphi 0, %s192
      %s196 = sphi 0, %s195
      %s212 = sphi 0, %s196
    $region4: #{tpu_custom_call.1} parent=1 // loop_header_branch
      %19 = sbr.rel (%p17) target = $region8
    $region5: #{tpu_custom_call.1} parent=1 // loop_body
      %s21 = ssub.s32 %s16, 1
      %s22 = ssub.s32 %s16, 2
      %s29 = sadd.s32 1, %s24
      %p30 = scmp.ge.s32.totalorder %s29, 1
      %s31 = scalar_select %p30, 0, %s29
      %s32 = sadd.s32 1, %s23
      %s33 = scalar_select %p30, %s32, %s23
      %p34 = scmp.ge.s32.totalorder %s33, 2
      %s35 = scalar_select %p34, 0, %s33
      %s36 = ssub.s32 %s23, %s35
      %p37 = scmp.eq.s32.totalorder %s36, 0
      %s39 = sadd.s32 %s38, 1
      %s40 = scalar_select %p37, %s38, %s39
      %p43 = pneg %p37
      %p44 = scmp.eq.s32.totalorder %s16, 1
      %p45 = por %p43, %p44
      %p46 = scmp.ne.s32.totalorder %s38, %s41
      %p47 = scmp.eq.s32.totalorder %s16, 0
      %p48 = por %p46, %p47
      %p49 = scmp.ne.s32.totalorder %s38, %s41
      %p50 = scmp.eq.s32.totalorder %s21, 1
      %p51 = por %p49, %p50
      %p52 = scmp.ne.s32.totalorder %s41, %s42
      %p53 = scmp.eq.s32.totalorder %s21, 0
      %p54 = por %p52, %p53
      %p55 = scmp.ne.s32.totalorder %s41, %s42
      %p56 = scmp.eq.s32.totalorder %s22, 1
      %p57 = por %p55, %p56
      %p59 = scmp.ne.s32.totalorder %s42, %s58
      %p60 = scmp.eq.s32.totalorder %s22, 0
      %p61 = por %p59, %p60
      %s63 = sadd.s32 %s62, 1
      %p66 = scmp.eq.s32.totalorder %s16, 1
      %p67 = scmp.ne.s32.totalorder %s62, %s64
      %p68 = scmp.eq.s32.totalorder %s16, 0
      %p69 = por %p67, %p68
      %p70 = scmp.ne.s32.totalorder %s62, %s64
      %p71 = scmp.eq.s32.totalorder %s21, 1
      %p72 = por %p70, %p71
      %p73 = scmp.ne.s32.totalorder %s64, %s65
      %p74 = scmp.eq.s32.totalorder %s21, 0
      %p75 = por %p73, %p74
      %p76 = scmp.ne.s32.totalorder %s64, %s65
      %p77 = scmp.eq.s32.totalorder %s22, 1
      %p78 = por %p76, %p77
      %p80 = scmp.ne.s32.totalorder %s65, %s79
      %p81 = scmp.eq.s32.totalorder %s22, 0
      %p82 = por %p80, %p81
      %s84 = sadd.s32 %s83, 1
      %p87 = scmp.eq.s32.totalorder %s16, 1
      %p88 = scmp.ne.s32.totalorder %s83, %s85
      %p89 = scmp.eq.s32.totalorder %s16, 0
      %p90 = por %p88, %p89
      %p91 = scmp.ne.s32.totalorder %s83, %s85
      %p92 = scmp.eq.s32.totalorder %s21, 1
      %p93 = por %p91, %p92
      %p94 = scmp.ne.s32.totalorder %s85, %s86
      %p95 = scmp.eq.s32.totalorder %s21, 0
      %p96 = por %p94, %p95
      %p97 = scmp.ne.s32.totalorder %s85, %s86
      %p98 = scmp.eq.s32.totalorder %s22, 1
      %p99 = por %p97, %p98
      %p101 = scmp.ne.s32.totalorder %s86, %s100
      %p102 = scmp.eq.s32.totalorder %s22, 0
      %p103 = por %p101, %p102
      %s105 = sadd.s32 %s104, 1
      %p108 = scmp.eq.s32.totalorder %s16, 1
      %p109 = scmp.ne.s32.totalorder %s104, %s106
      %p110 = scmp.eq.s32.totalorder %s16, 0
      %p111 = por %p109, %p110
      %p112 = scmp.ne.s32.totalorder %s104, %s106
      %p113 = scmp.eq.s32.totalorder %s21, 1
      %p114 = por %p112, %p113
      %p115 = scmp.ne.s32.totalorder %s106, %s107
      %p116 = scmp.eq.s32.totalorder %s21, 0
      %p117 = por %p115, %p116
      %p118 = scmp.ne.s32.totalorder %s106, %s107
      %p119 = scmp.eq.s32.totalorder %s22, 1
      %p120 = por %p118, %p119
      %p122 = scmp.ne.s32.totalorder %s107, %s121
      %p123 = scmp.eq.s32.totalorder %s22, 0
      %p124 = por %p122, %p123
      %s126 = sadd.s32 %s125, 1
      %p129 = scmp.eq.s32.totalorder %s16, 1
      %p130 = scmp.ne.s32.totalorder %s125, %s127
      %p131 = scmp.eq.s32.totalorder %s16, 0
      %p132 = por %p130, %p131
      %p133 = scmp.ne.s32.totalorder %s125, %s127
      %p134 = scmp.eq.s32.totalorder %s21, 1
      %p135 = por %p133, %p134
      %p136 = scmp.ne.s32.totalorder %s127, %s128
      %p137 = scmp.eq.s32.totalorder %s21, 0
      %p138 = por %p136, %p137
      %p139 = scmp.ne.s32.totalorder %s127, %s128
      %p140 = scmp.eq.s32.totalorder %s22, 1
      %p141 = por %p139, %p140
      %p143 = scmp.ne.s32.totalorder %s128, %s142
      %p144 = scmp.eq.s32.totalorder %s22, 0
      %p145 = por %p143, %p144
      %s147 = sadd.s32 %s146, 1
      %p150 = scmp.eq.s32.totalorder %s16, 1
      %p151 = scmp.ne.s32.totalorder %s146, %s148
      %p152 = scmp.eq.s32.totalorder %s16, 0
      %p153 = por %p151, %p152
      %p154 = scmp.ne.s32.totalorder %s146, %s148
      %p155 = scmp.eq.s32.totalorder %s21, 1
      %p156 = por %p154, %p155
      %p157 = scmp.ne.s32.totalorder %s148, %s149
      %p158 = scmp.eq.s32.totalorder %s21, 0
      %p159 = por %p157, %p158
      %p160 = scmp.ne.s32.totalorder %s148, %s149
      %p161 = scmp.eq.s32.totalorder %s22, 1
      %p162 = por %p160, %p161
      %p164 = scmp.ne.s32.totalorder %s149, %s163
      %p165 = scmp.eq.s32.totalorder %s22, 0
      %p166 = por %p164, %p165
      %s168 = sadd.s32 %s167, 1
      %p171 = scmp.eq.s32.totalorder %s16, 1
      %p172 = scmp.ne.s32.totalorder %s167, %s169
      %p173 = scmp.eq.s32.totalorder %s16, 0
      %p174 = por %p172, %p173
      %p175 = scmp.ne.s32.totalorder %s167, %s169
      %p176 = scmp.eq.s32.totalorder %s21, 1
      %p177 = por %p175, %p176
      %p178 = scmp.ne.s32.totalorder %s169, %s170
      %p179 = scmp.eq.s32.totalorder %s21, 0
      %p180 = por %p178, %p179
      %p181 = scmp.ne.s32.totalorder %s169, %s170
      %p182 = scmp.eq.s32.totalorder %s22, 1
      %p183 = por %p181, %p182
      %p185 = scmp.ne.s32.totalorder %s170, %s184
      %p186 = scmp.eq.s32.totalorder %s22, 0
      %p187 = por %p185, %p186
      %s188 = ssub.s32 %s23, %s35
      %s189 = ssub.s32 %s24, %s31
      %s190 = sor.u32 %s188, %s189
      %p191 = scmp.eq.s32.totalorder %s190, 0
      %s193 = sadd.s32 %s192, 1
      %s194 = scalar_select %p191, %s192, %s193
      %p197 = pneg %p191
      %p198 = scmp.eq.s32.totalorder %s16, 1
      %p199 = por %p197, %p198
      %p200 = scmp.ne.s32.totalorder %s192, %s195
      %p201 = scmp.eq.s32.totalorder %s16, 0
      %p202 = por %p200, %p201
      %p203 = scmp.ne.s32.totalorder %s192, %s195
      %p204 = scmp.eq.s32.totalorder %s21, 1
      %p205 = por %p203, %p204
      %p206 = scmp.ne.s32.totalorder %s195, %s196
      %p207 = scmp.eq.s32.totalorder %s21, 0
      %p208 = por %p206, %p207
      %p209 = scmp.ne.s32.totalorder %s195, %s196
      %p210 = scmp.eq.s32.totalorder %s22, 1
      %p211 = por %p209, %p210
      %p213 = scmp.ne.s32.totalorder %s196, %s212
      %p214 = scmp.eq.s32.totalorder %s22, 0
      %p215 = por %p213, %p214
      %p216 = scmp.le.s32.totalorder 1, %s16
      %p217 = scmp.lt.s32.totalorder %s16, 3
      %p218 = pnand %p216, %p217
      %p219 = pneg %p218
      // Predicated region
      $region9: #{tpu_custom_call.1} parent=5 // pred_check
        _
      $region10: #{tpu_custom_call.1} parent=5 // pred_check_branch
        %221 = sbr.rel (%p218) target = $region12
      $region11: #{tpu_custom_call.1} parent=5 // pred_region
        %s222 = ssub.s32 %s16, 1
        // Predicated region
        $region13: #{tpu_custom_call.1} parent=11 // pred_check
          %p223 = pneg %p75
        $region14: #{tpu_custom_call.1} parent=11 // pred_check_branch
          %225 = sbr.rel (%p223) target = $region16
        $region15: #{tpu_custom_call.1} parent=11 // pred_region
          _
        $region16: #{tpu_custom_call.1} parent=11 // pred_fallthru
          _
        // Predicated region
        $region17: #{tpu_custom_call.1} parent=11 // pred_check
          %p226 = pneg %p96
        $region18: #{tpu_custom_call.1} parent=11 // pred_check_branch
          %228 = sbr.rel (%p226) target = $region20
        $region19: #{tpu_custom_call.1} parent=11 // pred_region
          _
        $region20: #{tpu_custom_call.1} parent=11 // pred_fallthru
          _
        // Predicated region
        $region21: #{tpu_custom_call.1} parent=11 // pred_check
          %p229 = pneg %p117
        $region22: #{tpu_custom_call.1} parent=11 // pred_check_branch
          %231 = sbr.rel (%p229) target = $region24
        $region23: #{tpu_custom_call.1} parent=11 // pred_region
          _
        $region24: #{tpu_custom_call.1} parent=11 // pred_fallthru
          _
        // Predicated region
        $region25: #{tpu_custom_call.1} parent=11 // pred_check
          %p232 = pneg %p138
        $region26: #{tpu_custom_call.1} parent=11 // pred_check_branch
          %234 = sbr.rel (%p232) target = $region28
        $region27: #{tpu_custom_call.1} parent=11 // pred_region
          _
        $region28: #{tpu_custom_call.1} parent=11 // pred_fallthru
          _
        // Predicated region
        $region29: #{tpu_custom_call.1} parent=11 // pred_check
          %p235 = pneg %p159
        $region30: #{tpu_custom_call.1} parent=11 // pred_check_branch
          %237 = sbr.rel (%p235) target = $region32
        $region31: #{tpu_custom_call.1} parent=11 // pred_region
          _
        $region32: #{tpu_custom_call.1} parent=11 // pred_fallthru
          _
        // Predicated region
        $region33: #{tpu_custom_call.1} parent=11 // pred_check
          %p238 = pneg %p180
        $region34: #{tpu_custom_call.1} parent=11 // pred_check_branch
          %240 = sbr.rel (%p238) target = $region36
        $region35: #{tpu_custom_call.1} parent=11 // pred_region
          _
        $region36: #{tpu_custom_call.1} parent=11 // pred_fallthru
          _
      $region12: #{tpu_custom_call.1} parent=5 // pred_fallthru
        _
      %p241 = scmp.lt.s32.totalorder %s16, 2
      // Predicated region
      $region37: #{tpu_custom_call.1} parent=5 // pred_check
        %p242 = pneg %p241
      $region38: #{tpu_custom_call.1} parent=5 // pred_check_branch
        %244 = sbr.rel (%p242) target = $region40
      $region39: #{tpu_custom_call.1} parent=5 // pred_region
        // Predicated region
        $region41: #{tpu_custom_call.1} parent=39 // pred_check
          %p245 = pneg %p48
        $region42: #{tpu_custom_call.1} parent=39 // pred_check_branch
          %247 = sbr.rel (%p245) target = $region44
        $region43: #{tpu_custom_call.1} parent=39 // pred_region
          %p248 = scmp.lt.s32.totalorder %s23, 1
          %s249 = scalar_select %p248, %s23, 1
          %s250 = smul.addr %s249, 40
          %s251 = smul.addr %s250, 4
          %s252 = scalar_lea.vmem %s0, %s251
        $region44: #{tpu_custom_call.1} parent=39 // pred_fallthru
          _
      $region40: #{tpu_custom_call.1} parent=5 // pred_fallthru
        _
      %p253 = scmp.le.s32.totalorder 1, %s16
      %p254 = scmp.lt.s32.totalorder %s16, 3
      %p255 = pnand %p253, %p254
      %p256 = pneg %p255
      // Predicated region
      $region45: #{tpu_custom_call.1} parent=5 // pred_check
        _
      $region46: #{tpu_custom_call.1} parent=5 // pred_check_branch
        %258 = sbr.rel (%p255) target = $region48
      $region47: #{tpu_custom_call.1} parent=5 // pred_region
        %s259 = ssub.s32 %s16, 1
        %p260 = scmp.lt.s32.totalorder %s25, 1
        %s261 = scalar_select %p260, %s25, 1
        %s262 = smul.addr %s261, 40
        %s263 = smul.addr %s262, 4
        %s264 = scalar_lea.vmem %s0, %s263
        %p265 = pneg %p54
        %p266 = pneg %p51
        %p267 = pneg %p75
        %p268 = pneg %p72
        %p269 = pneg %p96
        %p270 = pneg %p93
        %p271 = pneg %p117
        %p272 = pneg %p114
        %p273 = pneg %p138
        %p274 = pneg %p135
        %p275 = pneg %p159
        %p276 = pneg %p156
        %p277 = pneg %p180
        %p278 = pneg %p177
        %p279 = pneg %p208
        %p280 = pneg %p205
        %s281 = sand.u32 %s195, 1
        %s282 = scalar_lea.sflag [#allocation5], %s281
        %s283 = sand.u32 %s195, 1
        %s284 = smul.addr %s283, 16
        %s285 = scalar_lea.vmem [#allocation4], %s284
        %p286 = scmp.lt.s32.totalorder %s25, 1
        %s287 = scalar_select %p286, %s25, 1
        %s288 = smul.addr %s287, 40
        %s289 = smul.addr %s288, 4
        %s290 = scalar_lea.vmem %s0, %s289
        %s291 = smul.u32 2, %s26
        %s293 = smul.u32 %s26, 16
        %s294 = smul.u32 %s26, 256
        %s295 = sshra.s32 %s294, 3
        %s296 = sand.u32 %s294, 7
        %s297 = smul.addr %s295, 4
        %s298 = scalar_lea.vmem %s290, %s297
        %v299 = vld [vmem:[%s298] sm:$0xf]
        %v300 = vld [vmem:[%s298 + $0x4] sm:$0xf]
        %v301 = vld [vmem:[%s298 + $0x8] sm:$0xf]
        %v302 = vld [vmem:[%s298 + $0xc] sm:$0xf]
        %v303 = vld [vmem:[%s298 + $0x10] sm:$0xf]
        %v304 = vld [vmem:[%s298 + $0x14] sm:$0xf]
        %v305 = vld [vmem:[%s298 + $0x18] sm:$0xf]
        %v306 = vld [vmem:[%s298 + $0x1c] sm:$0xf]
        %v307 = vld [vmem:[%s298 + $0x20] sm:$0xf]
        %v308 = vld [vmem:[%s298 + $0x24] sm:$0xf]
        %v309 = vld [vmem:[%s298 + $0x28] sm:$0xf]
        %v310 = vld [vmem:[%s298 + $0x2c] sm:$0xf]
        %v311 = vld [vmem:[%s298 + $0x30] sm:$0xf]
        %v312 = vld [vmem:[%s298 + $0x34] sm:$0xf]
        %v313 = vld [vmem:[%s298 + $0x38] sm:$0xf]
        %v314 = vld [vmem:[%s298 + $0x3c] sm:$0xf]
        %v315 = vld [vmem:[%s298 + $0x40] sm:$0xf]
        %v316 = vld [vmem:[%s298 + $0x44] sm:$0xf]
        %v317 = vld [vmem:[%s298 + $0x48] sm:$0xf]
        %v318 = vld [vmem:[%s298 + $0x4c] sm:$0xf]
        %v319 = vld [vmem:[%s298 + $0x50] sm:$0xf]
        %v320 = vld [vmem:[%s298 + $0x54] sm:$0xf]
        %v321 = vld [vmem:[%s298 + $0x58] sm:$0xf]
        %v322 = vld [vmem:[%s298 + $0x5c] sm:$0xf]
        %v323 = vld [vmem:[%s298 + $0x60] sm:$0xf]
        %v324 = vld [vmem:[%s298 + $0x64] sm:$0xf]
        %v325 = vld [vmem:[%s298 + $0x68] sm:$0xf]
        %v326 = vld [vmem:[%s298 + $0x6c] sm:$0xf]
        %v327 = vld [vmem:[%s298 + $0x70] sm:$0xf]
        %v328 = vld [vmem:[%s298 + $0x74] sm:$0xf]
        %v329 = vld [vmem:[%s298 + $0x78] sm:$0xf]
        %v330 = vld [vmem:[%s298 + $0x7c] sm:$0xf]
        %v331 = vld [vmem:[%s298 + $0x80] sm:$0xf]
        %v332 = vld [vmem:[%s298 + $0x84] sm:$0xf]
        %v333 = vld [vmem:[%s298 + $0x88] sm:$0xf]
        %v334 = vld [vmem:[%s298 + $0x8c] sm:$0xf]
        %v335 = vld [vmem:[%s298 + $0x90] sm:$0xf]
        %v336 = vld [vmem:[%s298 + $0x94] sm:$0xf]
        %v337 = vld [vmem:[%s298 + $0x98] sm:$0xf]
        %v338 = vld [vmem:[%s298 + $0x9c] sm:$0xf]
        %v339 = vld [vmem:[%s1] sm:$0xf]
        %v340 = vld [vmem:[%s1 + $0x4] sm:$0xf]
        %v341 = vld [vmem:[%s1 + $0x8] sm:$0xf]
        %v342 = vld [vmem:[%s1 + $0xc] sm:$0x1]
        %v343 = vld [vmem:[%s2] sm:$0x1]
        %v345 = vlaneseq
        %v346 = vshrl.u32 %v345, 7
        %v347 = vsub.s32 0, %v346
        %v348 = vrot.slane %v343, %v347
        %v390 = vunpack.c.l.b16 %v299
        %v391 = vunpack.c.l.b16 %v300
        %v392 = vunpack.c.l.b16 %v301
        %v393 = vunpack.c.l.b16 %v302
        %v394 = vunpack.c.l.b16 %v303
        %v395 = vunpack.c.l.b16 %v304
        %v396 = vunpack.c.l.b16 %v305
        %v397 = vunpack.c.l.b16 %v306
        %v398 = vunpack.c.l.b16 %v307
        %v399 = vunpack.c.l.b16 %v308
        %v400 = vunpack.c.l.b16 %v309
        %v401 = vunpack.c.l.b16 %v310
        %v402 = vunpack.c.l.b16 %v311
        %v403 = vunpack.c.l.b16 %v312
        %v404 = vunpack.c.l.b16 %v313
        %v405 = vunpack.c.l.b16 %v314
        %v406 = vunpack.c.l.b16 %v315
        %v407 = vunpack.c.l.b16 %v316
        %v408 = vunpack.c.l.b16 %v317
        %v409 = vunpack.c.l.b16 %v318
        %v410 = vunpack.c.l.b16 %v319
        %v411 = vunpack.c.l.b16 %v320
        %v412 = vunpack.c.l.b16 %v321
        %v413 = vunpack.c.l.b16 %v322
        %v414 = vunpack.c.l.b16 %v323
        %v415 = vunpack.c.l.b16 %v324
        %v416 = vunpack.c.l.b16 %v325
        %v417 = vunpack.c.l.b16 %v326
        %v418 = vunpack.c.l.b16 %v327
        %v419 = vunpack.c.l.b16 %v328
        %v420 = vunpack.c.l.b16 %v329
        %v421 = vunpack.c.l.b16 %v330
        %v422 = vunpack.c.l.b16 %v331
        %v423 = vunpack.c.l.b16 %v332
        %v424 = vunpack.c.l.b16 %v333
        %v425 = vunpack.c.l.b16 %v334
        %v426 = vunpack.c.l.b16 %v335
        %v427 = vunpack.c.l.b16 %v336
        %v428 = vunpack.c.l.b16 %v337
        %v429 = vunpack.c.l.b16 %v338
        %v430 = vpack.c.b16 %v391, %v390
        %v431 = vpack.c.b16 %v393, %v392
        %v432 = vpack.c.b16 %v395, %v394
        %v433 = vpack.c.b16 %v397, %v396
        %v434 = vpack.c.b16 %v399, %v398
        %v435 = vpack.c.b16 %v401, %v400
        %v436 = vpack.c.b16 %v403, %v402
        %v437 = vpack.c.b16 %v405, %v404
        %v438 = vpack.c.b16 %v407, %v406
        %v439 = vpack.c.b16 %v409, %v408
        %v440 = vpack.c.b16 %v411, %v410
        %v441 = vpack.c.b16 %v413, %v412
        %v442 = vpack.c.b16 %v415, %v414
        %v443 = vpack.c.b16 %v417, %v416
        %v444 = vpack.c.b16 %v419, %v418
        %v445 = vpack.c.b16 %v421, %v420
        %v446 = vpack.c.b16 %v423, %v422
        %v447 = vpack.c.b16 %v425, %v424
        %v448 = vpack.c.b16 %v427, %v426
        %v449 = vpack.c.b16 %v429, %v428
        %v454 = vunpack.c.l.b16 %v339
        %v455 = vunpack.c.l.b16 %v340
        %v456 = vunpack.c.l.b16 %v341
        %v457 = vunpack.c.l.b16 %v342
        %v458 = vpack.c.b16 %v455, %v454
        %v459 = vpack.c.b16 %v457, %v456
        %vm461 = vcmask 203776
        %v463 = vsel %vm461, %v430, 0
        %v466 = vsel %vm461, %v431, 0
        %v469 = vsel %vm461, %v432, 0
        %v472 = vsel %vm461, %v433, 0
        %v475 = vsel %vm461, %v434, 0
        %v478 = vsel %vm461, %v435, 0
        %v481 = vsel %vm461, %v436, 0
        %v484 = vsel %vm461, %v437, 0
        %v487 = vsel %vm461, %v438, 0
        %v490 = vsel %vm461, %v439, 0
        %v493 = vsel %vm461, %v440, 0
        %v496 = vsel %vm461, %v441, 0
        %v499 = vsel %vm461, %v442, 0
        %v502 = vsel %vm461, %v443, 0
        %v505 = vsel %vm461, %v444, 0
        %v508 = vsel %vm461, %v445, 0
        %v511 = vsel %vm461, %v446, 0
        %v514 = vsel %vm461, %v447, 0
        %v517 = vsel %vm461, %v448, 0
        %v520 = vsel %vm461, %v449, 0
        %vm522 = vcmask 1043456
        %vm523 = vcmask 1044480
        %v524 = vsel %vm522, 4294967295, 65535
        %v525 = vsel %vm523, %v524, 0
        %v527 = vand.u32 %v459, %v525
        %529 = vmatprep.subr.bf16.mxu0 0
        %530 = vmatpush1.bf16.msra.mxu0 %v458
        %531 = vmatprep.subr.bf16.mxu0 0
        %532 = vmatpush1.bf16.msra.mxu0 %v527
        %533 = vmatprep.subr.bf16.mxu0 0
        %534 = vmatpush1.bf16.msra.mxu0 0
        %535 = vmatprep.subr.bf16.mxu0 0
        %536 = vmatpush1.bf16.msra.mxu0 0
        %537 = vmatprep.subr.bf16.mxu0 0
        %538 = vmatpush1.bf16.msra.mxu0 0
        %539 = vmatprep.subr.bf16.mxu0 0
        %540 = vmatpush1.bf16.msra.mxu0 0
        %541 = vmatprep.subr.bf16.mxu0 0
        %542 = vmatpush1.bf16.msra.mxu0 0
        %543 = vmatprep.subr.bf16.mxu0 0
        %544 = vmatpush1.bf16.msra.mxu0 0
        %545 = vmatprep.subr.bf16.mxu0 0
        %546 = vmatpush1.bf16.msra.mxu0 0
        %547 = vmatprep.subr.bf16.mxu0 0
        %548 = vmatpush1.bf16.msra.mxu0 0
        %549 = vmatprep.subr.bf16.mxu0 0
        %550 = vmatpush1.bf16.msra.mxu0 0
        %551 = vmatprep.subr.bf16.mxu0 0
        %552 = vmatpush1.bf16.msra.mxu0 0
        %553 = vmatprep.subr.bf16.mxu0 0
        %554 = vmatpush1.bf16.msra.mxu0 0
        %555 = vmatprep.subr.bf16.mxu0 0
        %556 = vmatpush1.bf16.msra.mxu0 0
        %557 = vmatprep.subr.bf16.mxu0 0
        %558 = vmatpush1.bf16.msra.mxu0 0
        %559 = vmatprep.subr.bf16.mxu0 0
        %560 = vmatpush1.bf16.msra.mxu0 0
        %561 = vmatprep.mubr.bf16.mxu0 0
        %562 = vmatmul.mubr.bf16.gmra.mrb[0].mxu0 %v463
        %v563 = vpop.f32.mrb[0].mxu0
        %v564 = vadd.f32 %v348, %v563
        %v565 = vpop.f32.mrb[0].mxu0
        %v566 = vpop.f32.mrb[0].mxu0
        %v567 = vadd.f32 %v348, %v566
        %v568 = vpop.f32.mrb[0].mxu0
        %569 = vmatprep.mubr.bf16.mxu0 0
        %570 = vmatmul.mubr.bf16.gmra.mrb[0].mxu0 %v466
        %v571 = vpop.f32.mrb[0].mxu0
        %v572 = vadd.f32 %v348, %v571
        %v573 = vpop.f32.mrb[0].mxu0
        %v574 = vpop.f32.mrb[0].mxu0
        %v575 = vadd.f32 %v348, %v574
        %v576 = vpop.f32.mrb[0].mxu0
        %577 = vmatprep.mubr.bf16.mxu0 0
        %578 = vmatmul.mubr.bf16.gmra.mrb[0].mxu0 %v469
        %v579 = vpop.f32.mrb[0].mxu0
        %v580 = vadd.f32 %v348, %v579
        %v581 = vpop.f32.mrb[0].mxu0
        %v582 = vpop.f32.mrb[0].mxu0
        %v583 = vadd.f32 %v348, %v582
        %v584 = vpop.f32.mrb[0].mxu0
        %585 = vmatprep.mubr.bf16.mxu0 0
        %586 = vmatmul.mubr.bf16.gmra.mrb[0].mxu0 %v472
        %v587 = vpop.f32.mrb[0].mxu0
        %v588 = vadd.f32 %v348, %v587
        %v589 = vpop.f32.mrb[0].mxu0
        %v590 = vpop.f32.mrb[0].mxu0
        %v591 = vadd.f32 %v348, %v590
        %v592 = vpop.f32.mrb[0].mxu0
        %593 = vmatprep.mubr.bf16.mxu0 0
        %594 = vmatmul.mubr.bf16.gmra.mrb[0].mxu0 %v475
        %v595 = vpop.f32.mrb[0].mxu0
        %v596 = vadd.f32 %v348, %v595
        %v597 = vpop.f32.mrb[0].mxu0
        %v598 = vpop.f32.mrb[0].mxu0
        %v599 = vadd.f32 %v348, %v598
        %v600 = vpop.f32.mrb[0].mxu0
        %601 = vmatprep.mubr.bf16.mxu0 0
        %602 = vmatmul.mubr.bf16.gmra.mrb[0].mxu0 %v478
        %v603 = vpop.f32.mrb[0].mxu0
        %v604 = vadd.f32 %v348, %v603
        %v605 = vpop.f32.mrb[0].mxu0
        %v606 = vpop.f32.mrb[0].mxu0
        %v607 = vadd.f32 %v348, %v606
        %v608 = vpop.f32.mrb[0].mxu0
        %609 = vmatprep.mubr.bf16.mxu0 0
        %610 = vmatmul.mubr.bf16.gmra.mrb[0].mxu0 %v481
        %v611 = vpop.f32.mrb[0].mxu0
        %v612 = vadd.f32 %v348, %v611
        %v613 = vpop.f32.mrb[0].mxu0
        %v614 = vpop.f32.mrb[0].mxu0
        %v615 = vadd.f32 %v348, %v614
        %v616 = vpop.f32.mrb[0].mxu0
        %617 = vmatprep.mubr.bf16.mxu0 0
        %618 = vmatmul.mubr.bf16.gmra.mrb[0].mxu0 %v484
        %v619 = vpop.f32.mrb[0].mxu0
        %v620 = vadd.f32 %v348, %v619
        %v621 = vpop.f32.mrb[0].mxu0
        %v622 = vpop.f32.mrb[0].mxu0
        %v623 = vadd.f32 %v348, %v622
        %v624 = vpop.f32.mrb[0].mxu0
        %625 = vmatprep.mubr.bf16.mxu0 0
        %626 = vmatmul.mubr.bf16.gmra.mrb[0].mxu0 %v487
        %v627 = vpop.f32.mrb[0].mxu0
        %v628 = vadd.f32 %v348, %v627
        %v629 = vpop.f32.mrb[0].mxu0
        %v630 = vpop.f32.mrb[0].mxu0
        %v631 = vadd.f32 %v348, %v630
        %v632 = vpop.f32.mrb[0].mxu0
        %633 = vmatprep.mubr.bf16.mxu0 0
        %634 = vmatmul.mubr.bf16.gmra.mrb[0].mxu0 %v490
        %v635 = vpop.f32.mrb[0].mxu0
        %v636 = vadd.f32 %v348, %v635
        %v637 = vpop.f32.mrb[0].mxu0
        %v638 = vpop.f32.mrb[0].mxu0
        %v639 = vadd.f32 %v348, %v638
        %v640 = vpop.f32.mrb[0].mxu0
        %641 = vmatprep.mubr.bf16.mxu0 0
        %642 = vmatmul.mubr.bf16.gmra.mrb[0].mxu0 %v493
        %v643 = vpop.f32.mrb[0].mxu0
        %v644 = vadd.f32 %v348, %v643
        %v645 = vpop.f32.mrb[0].mxu0
        %v646 = vpop.f32.mrb[0].mxu0
        %v647 = vadd.f32 %v348, %v646
        %v648 = vpop.f32.mrb[0].mxu0
        %649 = vmatprep.mubr.bf16.mxu0 0
        %650 = vmatmul.mubr.bf16.gmra.mrb[0].mxu0 %v496
        %v651 = vpop.f32.mrb[0].mxu0
        %v652 = vadd.f32 %v348, %v651
        %v653 = vpop.f32.mrb[0].mxu0
        %v654 = vpop.f32.mrb[0].mxu0
        %v655 = vadd.f32 %v348, %v654
        %v656 = vpop.f32.mrb[0].mxu0
        %657 = vmatprep.mubr.bf16.mxu0 0
        %658 = vmatmul.mubr.bf16.gmra.mrb[0].mxu0 %v499
        %v659 = vpop.f32.mrb[0].mxu0
        %v660 = vadd.f32 %v348, %v659
        %v661 = vpop.f32.mrb[0].mxu0
        %v662 = vpop.f32.mrb[0].mxu0
        %v663 = vadd.f32 %v348, %v662
        %v664 = vpop.f32.mrb[0].mxu0
        %665 = vmatprep.mubr.bf16.mxu0 0
        %666 = vmatmul.mubr.bf16.gmra.mrb[0].mxu0 %v502
        %v667 = vpop.f32.mrb[0].mxu0
        %v668 = vadd.f32 %v348, %v667
        %v669 = vpop.f32.mrb[0].mxu0
        %v670 = vpop.f32.mrb[0].mxu0
        %v671 = vadd.f32 %v348, %v670
        %v672 = vpop.f32.mrb[0].mxu0
        %673 = vmatprep.mubr.bf16.mxu0 0
        %674 = vmatmul.mubr.bf16.gmra.mrb[0].mxu0 %v505
        %v675 = vpop.f32.mrb[0].mxu0
        %v676 = vadd.f32 %v348, %v675
        %v677 = vpop.f32.mrb[0].mxu0
        %v678 = vpop.f32.mrb[0].mxu0
        %v679 = vadd.f32 %v348, %v678
        %v680 = vpop.f32.mrb[0].mxu0
        %681 = vmatprep.mubr.bf16.mxu0 0
        %682 = vmatmul.mubr.bf16.gmra.mrb[0].mxu0 %v508
        %v683 = vpop.f32.mrb[0].mxu0
        %v684 = vadd.f32 %v348, %v683
        %v685 = vpop.f32.mrb[0].mxu0
        %v686 = vpop.f32.mrb[0].mxu0
        %v687 = vadd.f32 %v348, %v686
        %v688 = vpop.f32.mrb[0].mxu0
        %689 = vmatprep.mubr.bf16.mxu0 0
        %690 = vmatmul.mubr.bf16.gmra.mrb[0].mxu0 %v511
        %v691 = vpop.f32.mrb[0].mxu0
        %v692 = vadd.f32 %v348, %v691
        %v693 = vpop.f32.mrb[0].mxu0
        %v694 = vpop.f32.mrb[0].mxu0
        %v695 = vadd.f32 %v348, %v694
        %v696 = vpop.f32.mrb[0].mxu0
        %697 = vmatprep.mubr.bf16.mxu0 0
        %698 = vmatmul.mubr.bf16.gmra.mrb[0].mxu0 %v514
        %v699 = vpop.f32.mrb[0].mxu0
        %v700 = vadd.f32 %v348, %v699
        %v701 = vpop.f32.mrb[0].mxu0
        %v702 = vpop.f32.mrb[0].mxu0
        %v703 = vadd.f32 %v348, %v702
        %v704 = vpop.f32.mrb[0].mxu0
        %705 = vmatprep.mubr.bf16.mxu0 0
        %706 = vmatmul.mubr.bf16.gmra.mrb[0].mxu0 %v517
        %v707 = vpop.f32.mrb[0].mxu0
        %v708 = vadd.f32 %v348, %v707
        %v709 = vpop.f32.mrb[0].mxu0
        %v710 = vpop.f32.mrb[0].mxu0
        %v711 = vadd.f32 %v348, %v710
        %v712 = vpop.f32.mrb[0].mxu0
        %713 = vmatprep.mubr.bf16.mxu0 0
        %714 = vmatmul.mubr.bf16.gmra.mrb[0].mxu0 %v520
        %v715 = vpop.f32.mrb[0].mxu0
        %v716 = vadd.f32 %v348, %v715
        %v717 = vpop.f32.mrb[0].mxu0
        %v718 = vpop.f32.mrb[0].mxu0
        %v719 = vadd.f32 %v348, %v718
        %v720 = vpop.f32.mrb[0].mxu0
        %721 = vdwg.mxu0
        %v722 = vtanh.pop %v564
        %v723 = vtanh.pop %v567
        %v724 = vtanh.pop %v572
        %v725 = vtanh.pop %v575
        %v726 = vtanh.pop %v580
        %v727 = vtanh.pop %v583
        %v728 = vtanh.pop %v588
        %v729 = vtanh.pop %v591
        %v730 = vtanh.pop %v596
        %v731 = vtanh.pop %v599
        %v732 = vtanh.pop %v604
        %v733 = vtanh.pop %v607
        %v734 = vtanh.pop %v612
        %v735 = vtanh.pop %v615
        %v736 = vtanh.pop %v620
        %v737 = vtanh.pop %v623
        %v738 = vtanh.pop %v628
        %v739 = vtanh.pop %v631
        %v740 = vtanh.pop %v636
        %v741 = vtanh.pop %v639
        %v742 = vtanh.pop %v644
        %v743 = vtanh.pop %v647
        %v744 = vtanh.pop %v652
        %v745 = vtanh.pop %v655
        %v746 = vtanh.pop %v660
        %v747 = vtanh.pop %v663
        %v748 = vtanh.pop %v668
        %v749 = vtanh.pop %v671
        %v750 = vtanh.pop %v676
        %v751 = vtanh.pop %v679
        %v752 = vtanh.pop %v684
        %v753 = vtanh.pop %v687
        %v754 = vtanh.pop %v692
        %v755 = vtanh.pop %v695
        %v756 = vtanh.pop %v700
        %v757 = vtanh.pop %v703
        %v758 = vtanh.pop %v708
        %v759 = vtanh.pop %v711
        %v760 = vtanh.pop %v716
        %v761 = vtanh.pop %v719
        %s762 = ssub.s32 %s293, 2
        %v763 = vstv %s762
        %v764 = vadd.s32 %v763, 1
        %v765 = vadd.s32 %v763, 2
        %v766 = vadd.s32 %v763, 3
        %v767 = vadd.s32 %v763, 4
        %v768 = vadd.s32 %v763, 5
        %v769 = vadd.s32 %v763, 6
        %v770 = vadd.s32 %v763, 7
        %v771 = vadd.s32 %v763, 8
        %v772 = vadd.s32 %v763, 9
        %v773 = vadd.s32 %v763, 10
        %v774 = vadd.s32 %v763, 11
        %v775 = vadd.s32 %v763, 12
        %v776 = vadd.s32 %v763, 13
        %v777 = vadd.s32 %v763, 14
        %v778 = vadd.s32 %v763, 15
        %v779 = vadd.s32 %v763, 16
        %v780 = vadd.s32 %v763, 17
        %v781 = vadd.s32 %v763, 18
        %v782 = vadd.s32 %v763, 19
        %vm783 = vcmp.ge.s32.totalorder %v763, 0
        %vm784 = vcmp.ge.s32.totalorder %v764, 0
        %vm785 = vcmp.ge.s32.totalorder %v765, 0
        %vm786 = vcmp.ge.s32.totalorder %v766, 0
        %vm787 = vcmp.ge.s32.totalorder %v767, 0
        %vm788 = vcmp.ge.s32.totalorder %v768, 0
        %vm789 = vcmp.ge.s32.totalorder %v769, 0
        %vm790 = vcmp.ge.s32.totalorder %v770, 0
        %vm791 = vcmp.ge.s32.totalorder %v771, 0
        %vm792 = vcmp.ge.s32.totalorder %v772, 0
        %vm793 = vcmp.ge.s32.totalorder %v773, 0
        %vm794 = vcmp.ge.s32.totalorder %v774, 0
        %vm795 = vcmp.ge.s32.totalorder %v775, 0
        %vm796 = vcmp.ge.s32.totalorder %v776, 0
        %vm797 = vcmp.ge.s32.totalorder %v777, 0
        %vm798 = vcmp.ge.s32.totalorder %v778, 0
        %vm799 = vcmp.ge.s32.totalorder %v779, 0
        %vm800 = vcmp.ge.s32.totalorder %v780, 0
        %vm801 = vcmp.ge.s32.totalorder %v781, 0
        %vm802 = vcmp.ge.s32.totalorder %v782, 0
        %vm803 = vcmp.lt.s32.totalorder %v763, 16
        %vm804 = vcmp.lt.s32.totalorder %v764, 16
        %vm805 = vcmp.lt.s32.totalorder %v765, 16
        %vm806 = vcmp.lt.s32.totalorder %v766, 16
        %vm807 = vcmp.lt.s32.totalorder %v767, 16
        %vm808 = vcmp.lt.s32.totalorder %v768, 16
        %vm809 = vcmp.lt.s32.totalorder %v769, 16
        %vm810 = vcmp.lt.s32.totalorder %v770, 16
        %vm811 = vcmp.lt.s32.totalorder %v771, 16
        %vm812 = vcmp.lt.s32.totalorder %v772, 16
        %vm813 = vcmp.lt.s32.totalorder %v773, 16
        %vm814 = vcmp.lt.s32.totalorder %v774, 16
        %vm815 = vcmp.lt.s32.totalorder %v775, 16
        %vm816 = vcmp.lt.s32.totalorder %v776, 16
        %vm817 = vcmp.lt.s32.totalorder %v777, 16
        %vm818 = vcmp.lt.s32.totalorder %v778, 16
        %vm819 = vcmp.lt.s32.totalorder %v779, 16
        %vm820 = vcmp.lt.s32.totalorder %v780, 16
        %vm821 = vcmp.lt.s32.totalorder %v781, 16
        %vm822 = vcmp.lt.s32.totalorder %v782, 16
        %vm823 = vmand %vm783, %vm803
        %vm824 = vmand %vm784, %vm804
        %vm825 = vmand %vm785, %vm805
        %vm826 = vmand %vm786, %vm806
        %vm827 = vmand %vm787, %vm807
        %vm828 = vmand %vm788, %vm808
        %vm829 = vmand %vm789, %vm809
        %vm830 = vmand %vm790, %vm810
        %vm831 = vmand %vm791, %vm811
        %vm832 = vmand %vm792, %vm812
        %vm833 = vmand %vm793, %vm813
        %vm834 = vmand %vm794, %vm814
        %vm835 = vmand %vm795, %vm815
        %vm836 = vmand %vm796, %vm816
        %vm837 = vmand %vm797, %vm817
        %vm838 = vmand %vm798, %vm818
        %vm839 = vmand %vm799, %vm819
        %vm840 = vmand %vm800, %vm820
        %vm841 = vmand %vm801, %vm821
        %vm842 = vmand %vm802, %vm822
        %v843 = vsel %vm823, 1, 0
        %v844 = vsel %vm824, 1, 0
        %v845 = vsel %vm825, 1, 0
        %v846 = vsel %vm826, 1, 0
        %v847 = vsel %vm827, 1, 0
        %v848 = vsel %vm828, 1, 0
        %v849 = vsel %vm829, 1, 0
        %v850 = vsel %vm830, 1, 0
        %v851 = vsel %vm831, 1, 0
        %v852 = vsel %vm832, 1, 0
        %v853 = vsel %vm833, 1, 0
        %v854 = vsel %vm834, 1, 0
        %v855 = vsel %vm835, 1, 0
        %v856 = vsel %vm836, 1, 0
        %v857 = vsel %vm837, 1, 0
        %v858 = vsel %vm838, 1, 0
        %v859 = vsel %vm839, 1, 0
        %v860 = vsel %vm840, 1, 0
        %v861 = vsel %vm841, 1, 0
        %v862 = vsel %vm842, 1, 0
        %vm863 = vcmp.eq.s32.totalorder %v843, 1
        %vm864 = vcmp.eq.s32.totalorder %v844, 1
        %vm865 = vcmp.eq.s32.totalorder %v845, 1
        %vm866 = vcmp.eq.s32.totalorder %v846, 1
        %vm867 = vcmp.eq.s32.totalorder %v847, 1
        %vm868 = vcmp.eq.s32.totalorder %v848, 1
        %vm869 = vcmp.eq.s32.totalorder %v849, 1
        %vm870 = vcmp.eq.s32.totalorder %v850, 1
        %vm871 = vcmp.eq.s32.totalorder %v851, 1
        %vm872 = vcmp.eq.s32.totalorder %v852, 1
        %vm873 = vcmp.eq.s32.totalorder %v853, 1
        %vm874 = vcmp.eq.s32.totalorder %v854, 1
        %vm875 = vcmp.eq.s32.totalorder %v855, 1
        %vm876 = vcmp.eq.s32.totalorder %v856, 1
        %vm877 = vcmp.eq.s32.totalorder %v857, 1
        %vm878 = vcmp.eq.s32.totalorder %v858, 1
        %vm879 = vcmp.eq.s32.totalorder %v859, 1
        %vm880 = vcmp.eq.s32.totalorder %v860, 1
        %vm881 = vcmp.eq.s32.totalorder %v861, 1
        %vm882 = vcmp.eq.s32.totalorder %v862, 1
        %v883 = vsel %vm863, %v722, 0.0
        %v884 = vsel %vm863, %v723, 0.0
        %v885 = vsel %vm864, %v724, 0.0
        %v886 = vsel %vm864, %v725, 0.0
        %v887 = vsel %vm865, %v726, 0.0
        %v888 = vsel %vm865, %v727, 0.0
        %v889 = vsel %vm866, %v728, 0.0
        %v890 = vsel %vm866, %v729, 0.0
        %v891 = vsel %vm867, %v730, 0.0
        %v892 = vsel %vm867, %v731, 0.0
        %v893 = vsel %vm868, %v732, 0.0
        %v894 = vsel %vm868, %v733, 0.0
        %v895 = vsel %vm869, %v734, 0.0
        %v896 = vsel %vm869, %v735, 0.0
        %v897 = vsel %vm870, %v736, 0.0
        %v898 = vsel %vm870, %v737, 0.0
        %v899 = vsel %vm871, %v738, 0.0
        %v900 = vsel %vm871, %v739, 0.0
        %v901 = vsel %vm872, %v740, 0.0
        %v902 = vsel %vm872, %v741, 0.0
        %v903 = vsel %vm873, %v742, 0.0
        %v904 = vsel %vm873, %v743, 0.0
        %v905 = vsel %vm874, %v744, 0.0
        %v906 = vsel %vm874, %v745, 0.0
        %v907 = vsel %vm875, %v746, 0.0
        %v908 = vsel %vm875, %v747, 0.0
        %v909 = vsel %vm876, %v748, 0.0
        %v910 = vsel %vm876, %v749, 0.0
        %v911 = vsel %vm877, %v750, 0.0
        %v912 = vsel %vm877, %v751, 0.0
        %v913 = vsel %vm878, %v752, 0.0
        %v914 = vsel %vm878, %v753, 0.0
        %v915 = vsel %vm879, %v754, 0.0
        %v916 = vsel %vm879, %v755, 0.0
        %v917 = vsel %vm880, %v756, 0.0
        %v918 = vsel %vm880, %v757, 0.0
        %v919 = vsel %vm881, %v758, 0.0
        %v920 = vsel %vm881, %v759, 0.0
        %v921 = vsel %vm882, %v760, 0.0
        %v922 = vsel %vm882, %v761, 0.0
        %v923 = vpack.c.bf16 %v884, %v883
        %v924 = vpack.c.bf16 %v886, %v885
        %v925 = vpack.c.bf16 %v888, %v887
        %v926 = vpack.c.bf16 %v890, %v889
        %v927 = vpack.c.bf16 %v892, %v891
        %v928 = vpack.c.bf16 %v894, %v893
        %v929 = vpack.c.bf16 %v896, %v895
        %v930 = vpack.c.bf16 %v898, %v897
        %v931 = vpack.c.bf16 %v900, %v899
        %v932 = vpack.c.bf16 %v902, %v901
        %v933 = vpack.c.bf16 %v904, %v903
        %v934 = vpack.c.bf16 %v906, %v905
        %v935 = vpack.c.bf16 %v908, %v907
        %v936 = vpack.c.bf16 %v910, %v909
        %v937 = vpack.c.bf16 %v912, %v911
        %v938 = vpack.c.bf16 %v914, %v913
        %v939 = vpack.c.bf16 %v916, %v915
        %v940 = vpack.c.bf16 %v918, %v917
        %v941 = vpack.c.bf16 %v920, %v919
        %v942 = vpack.c.bf16 %v922, %v921
        %v963 = vunpack.c.l.b16 %v923
        %v964 = vunpack.c.h.b16 %v923
        %v965 = vunpack.c.l.b16 %v924
        %v966 = vunpack.c.h.b16 %v924
        %v967 = vunpack.c.l.b16 %v925
        %v968 = vunpack.c.h.b16 %v925
        %v969 = vunpack.c.l.b16 %v926
        %v970 = vunpack.c.h.b16 %v926
        %v971 = vunpack.c.l.b16 %v927
        %v972 = vunpack.c.h.b16 %v927
        %v973 = vunpack.c.l.b16 %v928
        %v974 = vunpack.c.h.b16 %v928
        %v975 = vunpack.c.l.b16 %v929
        %v976 = vunpack.c.h.b16 %v929
        %v977 = vunpack.c.l.b16 %v930
        %v978 = vunpack.c.h.b16 %v930
        %v979 = vunpack.c.l.b16 %v931
        %v980 = vunpack.c.h.b16 %v931
        %v981 = vunpack.c.l.b16 %v932
        %v982 = vunpack.c.h.b16 %v932
        %v983 = vunpack.c.l.b16 %v933
        %v984 = vunpack.c.h.b16 %v933
        %v985 = vunpack.c.l.b16 %v934
        %v986 = vunpack.c.h.b16 %v934
        %v987 = vunpack.c.l.b16 %v935
        %v988 = vunpack.c.h.b16 %v935
        %v989 = vunpack.c.l.b16 %v936
        %v990 = vunpack.c.h.b16 %v936
        %v991 = vunpack.c.l.b16 %v937
        %v992 = vunpack.c.h.b16 %v937
        %v993 = vunpack.c.l.b16 %v938
        %v994 = vunpack.c.h.b16 %v938
        %v995 = vunpack.c.l.b16 %v939
        %v996 = vunpack.c.h.b16 %v939
        %v997 = vunpack.c.l.b16 %v940
        %v998 = vunpack.c.h.b16 %v940
        %v999 = vunpack.c.l.b16 %v941
        %v1000 = vunpack.c.h.b16 %v941
        %v1001 = vunpack.c.l.b16 %v942
        %v1002 = vunpack.c.h.b16 %v942
        %v1003 = vpack.c.b16 %v963, %v963
        %v1004 = vpack.c.b16 %v964, %v964
        %v1005 = vpack.c.b16 %v965, %v965
        %v1006 = vpack.c.b16 %v966, %v966
        %v1007 = vpack.c.b16 %v967, %v967
        %v1008 = vpack.c.b16 %v968, %v968
        %v1009 = vpack.c.b16 %v969, %v969
        %v1010 = vpack.c.b16 %v970, %v970
        %v1011 = vpack.c.b16 %v971, %v971
        %v1012 = vpack.c.b16 %v972, %v972
        %v1013 = vpack.c.b16 %v973, %v973
        %v1014 = vpack.c.b16 %v974, %v974
        %v1015 = vpack.c.b16 %v975, %v975
        %v1016 = vpack.c.b16 %v976, %v976
        %v1017 = vpack.c.b16 %v977, %v977
        %v1018 = vpack.c.b16 %v978, %v978
        %v1019 = vpack.c.b16 %v979, %v979
        %v1020 = vpack.c.b16 %v980, %v980
        %v1021 = vpack.c.b16 %v981, %v981
        %v1022 = vpack.c.b16 %v982, %v982
        %v1023 = vpack.c.b16 %v983, %v983
        %v1024 = vpack.c.b16 %v984, %v984
        %v1025 = vpack.c.b16 %v985, %v985
        %v1026 = vpack.c.b16 %v986, %v986
        %v1027 = vpack.c.b16 %v987, %v987
        %v1028 = vpack.c.b16 %v988, %v988
        %v1029 = vpack.c.b16 %v989, %v989
        %v1030 = vpack.c.b16 %v990, %v990
        %v1031 = vpack.c.b16 %v991, %v991
        %v1032 = vpack.c.b16 %v992, %v992
        %v1033 = vpack.c.b16 %v993, %v993
        %v1034 = vpack.c.b16 %v994, %v994
        %v1035 = vpack.c.b16 %v995, %v995
        %v1036 = vpack.c.b16 %v996, %v996
        %v1037 = vpack.c.b16 %v997, %v997
        %v1038 = vpack.c.b16 %v998, %v998
        %v1039 = vpack.c.b16 %v999, %v999
        %v1040 = vpack.c.b16 %v1000, %v1000
        %v1041 = vpack.c.b16 %v1001, %v1001
        %v1042 = vpack.c.b16 %v1002, %v1002
        %vm1043 = vsmask.f32 256
        %vm1044 = vsmask.f32 4368
        %vm1045 = vmor %vm1043, %vm1044
        %v1047 = vshrl.u32 %v1003, 16
        %v1049 = vrot.slane %v1047, 7
        %v1050 = vshll.u32 %v1003, 16
        %v1052 = vor.u32 %v1049, %v1050
        %v1053 = vrot.slane %v1049, 4
        %v1055 = vshrl.u32 %v1004, 16
        %v1057 = vrot.slane %v1055, 7
        %v1058 = vshll.u32 %v1004, 16
        %v1060 = vor.u32 %v1057, %v1058
        %v1061 = vsel %vm1045, %v1053, %v1060
        %v1062 = vrot.slane %v1057, 4
        %v1064 = vshrl.u32 %v1005, 16
        %v1066 = vrot.slane %v1064, 7
        %v1067 = vshll.u32 %v1005, 16
        %v1069 = vor.u32 %v1066, %v1067
        %v1070 = vrot.slane %v1066, 4
        %v1072 = vshrl.u32 %v1006, 16
        %v1074 = vrot.slane %v1072, 7
        %v1075 = vshll.u32 %v1006, 16
        %v1077 = vor.u32 %v1074, %v1075
        %v1078 = vsel %vm1045, %v1070, %v1077
        %v1079 = vrot.slane %v1074, 4
        %v1081 = vshrl.u32 %v1007, 16
        %v1083 = vrot.slane %v1081, 7
        %v1084 = vshll.u32 %v1007, 16
        %v1086 = vor.u32 %v1083, %v1084
        %v1087 = vrot.slane %v1083, 4
        %v1089 = vshrl.u32 %v1008, 16
        %v1091 = vrot.slane %v1089, 7
        %v1092 = vshll.u32 %v1008, 16
        %v1094 = vor.u32 %v1091, %v1092
        %v1095 = vsel %vm1045, %v1087, %v1094
        %v1096 = vrot.slane %v1091, 4
        %v1098 = vshrl.u32 %v1009, 16
        %v1100 = vrot.slane %v1098, 7
        %v1101 = vshll.u32 %v1009, 16
        %v1103 = vor.u32 %v1100, %v1101
        %v1104 = vrot.slane %v1100, 4
        %v1106 = vshrl.u32 %v1010, 16
        %v1108 = vrot.slane %v1106, 7
        %v1109 = vshll.u32 %v1010, 16
        %v1111 = vor.u32 %v1108, %v1109
        %v1112 = vsel %vm1045, %v1104, %v1111
        %v1113 = vrot.slane %v1108, 4
        %v1115 = vshrl.u32 %v1011, 16
        %v1117 = vrot.slane %v1115, 7
        %v1118 = vshll.u32 %v1011, 16
        %v1120 = vor.u32 %v1117, %v1118
        %v1121 = vrot.slane %v1117, 4
        %v1123 = vshrl.u32 %v1012, 16
        %v1125 = vrot.slane %v1123, 7
        %v1126 = vshll.u32 %v1012, 16
        %v1128 = vor.u32 %v1125, %v1126
        %v1129 = vsel %vm1045, %v1121, %v1128
        %v1130 = vrot.slane %v1125, 4
        %v1132 = vshrl.u32 %v1013, 16
        %v1134 = vrot.slane %v1132, 7
        %v1135 = vshll.u32 %v1013, 16
        %v1137 = vor.u32 %v1134, %v1135
        %v1138 = vrot.slane %v1134, 4
        %v1140 = vshrl.u32 %v1014, 16
        %v1142 = vrot.slane %v1140, 7
        %v1143 = vshll.u32 %v1014, 16
        %v1145 = vor.u32 %v1142, %v1143
        %v1146 = vsel %vm1045, %v1138, %v1145
        %v1147 = vrot.slane %v1142, 4
        %v1149 = vshrl.u32 %v1015, 16
        %v1151 = vrot.slane %v1149, 7
        %v1152 = vshll.u32 %v1015, 16
        %v1154 = vor.u32 %v1151, %v1152
        %v1155 = vrot.slane %v1151, 4
        %v1157 = vshrl.u32 %v1016, 16
        %v1159 = vrot.slane %v1157, 7
        %v1160 = vshll.u32 %v1016, 16
        %v1162 = vor.u32 %v1159, %v1160
        %v1163 = vsel %vm1045, %v1155, %v1162
        %v1164 = vrot.slane %v1159, 4
        %v1166 = vshrl.u32 %v1017, 16
        %v1168 = vrot.slane %v1166, 7
        %v1169 = vshll.u32 %v1017, 16
        %v1171 = vor.u32 %v1168, %v1169
        %v1172 = vrot.slane %v1168, 4
        %v1174 = vshrl.u32 %v1018, 16
        %v1176 = vrot.slane %v1174, 7
        %v1177 = vshll.u32 %v1018, 16
        %v1179 = vor.u32 %v1176, %v1177
        %v1180 = vsel %vm1045, %v1172, %v1179
        %v1181 = vrot.slane %v1176, 4
        %v1183 = vshrl.u32 %v1019, 16
        %v1185 = vrot.slane %v1183, 7
        %v1186 = vshll.u32 %v1019, 16
        %v1188 = vor.u32 %v1185, %v1186
        %v1189 = vrot.slane %v1185, 4
        %v1191 = vshrl.u32 %v1020, 16
        %v1193 = vrot.slane %v1191, 7
        %v1194 = vshll.u32 %v1020, 16
        %v1196 = vor.u32 %v1193, %v1194
        %v1197 = vsel %vm1045, %v1189, %v1196
        %v1198 = vrot.slane %v1193, 4
        %v1200 = vshrl.u32 %v1021, 16
        %v1202 = vrot.slane %v1200, 7
        %v1203 = vshll.u32 %v1021, 16
        %v1205 = vor.u32 %v1202, %v1203
        %v1206 = vrot.slane %v1202, 4
        %v1208 = vshrl.u32 %v1022, 16
        %v1210 = vrot.slane %v1208, 7
        %v1211 = vshll.u32 %v1022, 16
        %v1213 = vor.u32 %v1210, %v1211
        %v1214 = vsel %vm1045, %v1206, %v1213
        %v1215 = vrot.slane %v1210, 4
        %v1217 = vshrl.u32 %v1023, 16
        %v1219 = vrot.slane %v1217, 7
        %v1220 = vshll.u32 %v1023, 16
        %v1222 = vor.u32 %v1219, %v1220
        %v1223 = vrot.slane %v1219, 4
        %v1225 = vshrl.u32 %v1024, 16
        %v1227 = vrot.slane %v1225, 7
        %v1228 = vshll.u32 %v1024, 16
        %v1230 = vor.u32 %v1227, %v1228
        %v1231 = vsel %vm1045, %v1223, %v1230
        %v1232 = vrot.slane %v1227, 4
        %v1234 = vshrl.u32 %v1025, 16
        %v1236 = vrot.slane %v1234, 7
        %v1237 = vshll.u32 %v1025, 16
        %v1239 = vor.u32 %v1236, %v1237
        %v1240 = vrot.slane %v1236, 4
        %v1242 = vshrl.u32 %v1026, 16
        %v1244 = vrot.slane %v1242, 7
        %v1245 = vshll.u32 %v1026, 16
        %v1247 = vor.u32 %v1244, %v1245
        %v1248 = vsel %vm1045, %v1240, %v1247
        %v1249 = vrot.slane %v1244, 4
        %v1251 = vshrl.u32 %v1027, 16
        %v1253 = vrot.slane %v1251, 7
        %v1254 = vshll.u32 %v1027, 16
        %v1256 = vor.u32 %v1253, %v1254
        %v1257 = vrot.slane %v1253, 4
        %v1259 = vshrl.u32 %v1028, 16
        %v1261 = vrot.slane %v1259, 7
        %v1262 = vshll.u32 %v1028, 16
        %v1264 = vor.u32 %v1261, %v1262
        %v1265 = vsel %vm1045, %v1257, %v1264
        %v1266 = vrot.slane %v1261, 4
        %v1268 = vshrl.u32 %v1029, 16
        %v1270 = vrot.slane %v1268, 7
        %v1271 = vshll.u32 %v1029, 16
        %v1273 = vor.u32 %v1270, %v1271
        %v1274 = vrot.slane %v1270, 4
        %v1276 = vshrl.u32 %v1030, 16
        %v1278 = vrot.slane %v1276, 7
        %v1279 = vshll.u32 %v1030, 16
        %v1281 = vor.u32 %v1278, %v1279
        %v1282 = vsel %vm1045, %v1274, %v1281
        %v1283 = vrot.slane %v1278, 4
        %v1285 = vshrl.u32 %v1031, 16
        %v1287 = vrot.slane %v1285, 7
        %v1288 = vshll.u32 %v1031, 16
        %v1290 = vor.u32 %v1287, %v1288
        %v1291 = vrot.slane %v1287, 4
        %v1293 = vshrl.u32 %v1032, 16
        %v1295 = vrot.slane %v1293, 7
        %v1296 = vshll.u32 %v1032, 16
        %v1298 = vor.u32 %v1295, %v1296
        %v1299 = vsel %vm1045, %v1291, %v1298
        %v1300 = vrot.slane %v1295, 4
        %v1302 = vshrl.u32 %v1033, 16
        %v1304 = vrot.slane %v1302, 7
        %v1305 = vshll.u32 %v1033, 16
        %v1307 = vor.u32 %v1304, %v1305
        %v1308 = vrot.slane %v1304, 4
        %v1310 = vshrl.u32 %v1034, 16
        %v1312 = vrot.slane %v1310, 7
        %v1313 = vshll.u32 %v1034, 16
        %v1315 = vor.u32 %v1312, %v1313
        %v1316 = vsel %vm1045, %v1308, %v1315
        %v1317 = vrot.slane %v1312, 4
        %v1319 = vshrl.u32 %v1035, 16
        %v1321 = vrot.slane %v1319, 7
        %v1322 = vshll.u32 %v1035, 16
        %v1324 = vor.u32 %v1321, %v1322
        %v1325 = vrot.slane %v1321, 4
        %v1327 = vshrl.u32 %v1036, 16
        %v1329 = vrot.slane %v1327, 7
        %v1330 = vshll.u32 %v1036, 16
        %v1332 = vor.u32 %v1329, %v1330
        %v1333 = vsel %vm1045, %v1325, %v1332
        %v1334 = vrot.slane %v1329, 4
        %v1336 = vshrl.u32 %v1037, 16
        %v1338 = vrot.slane %v1336, 7
        %v1339 = vshll.u32 %v1037, 16
        %v1341 = vor.u32 %v1338, %v1339
        %v1342 = vrot.slane %v1338, 4
        %v1344 = vshrl.u32 %v1038, 16
        %v1346 = vrot.slane %v1344, 7
        %v1347 = vshll.u32 %v1038, 16
        %v1349 = vor.u32 %v1346, %v1347
        %v1350 = vsel %vm1045, %v1342, %v1349
        %v1351 = vrot.slane %v1346, 4
        %v1353 = vshrl.u32 %v1039, 16
        %v1355 = vrot.slane %v1353, 7
        %v1356 = vshll.u32 %v1039, 16
        %v1358 = vor.u32 %v1355, %v1356
        %v1359 = vrot.slane %v1355, 4
        %v1361 = vshrl.u32 %v1040, 16
        %v1363 = vrot.slane %v1361, 7
        %v1364 = vshll.u32 %v1040, 16
        %v1366 = vor.u32 %v1363, %v1364
        %v1367 = vsel %vm1045, %v1359, %v1366
        %v1368 = vrot.slane %v1363, 4
        %v1370 = vshrl.u32 %v1041, 16
        %v1372 = vrot.slane %v1370, 7
        %v1373 = vshll.u32 %v1041, 16
        %v1375 = vor.u32 %v1372, %v1373
        %v1376 = vrot.slane %v1372, 4
        %v1378 = vshrl.u32 %v1042, 16
        %v1380 = vrot.slane %v1378, 7
        %v1381 = vshll.u32 %v1042, 16
        %v1383 = vor.u32 %v1380, %v1381
        %v1384 = vsel %vm1045, %v1376, %v1383
        %v1385 = vrot.slane %v1380, 4
        %vm1446 = vcmask 519168
        %vm1447 = vsmask.f32 7938
        %vm1448 = vmand %vm1446, %vm1447
        %v1449 = vld [vmem:[#allocation2] sm:$0xf]
        %v1450 = vsel %vm1448, %v1052, %v1449
        %1451 = vst [vmem:[#allocation2] sm:$0xf] %v1450
        %vm1452 = vcmask 519168
        %1453 = vst.msk [vmem:[#allocation2 + $0x4] sm:$0xf] %vm1452, %v1061
        %vm1454 = vcmask 516096
        %vm1455 = vmand %vm1454, %vm1043
        %v1456 = vld [vmem:[#allocation2 + $0x8] sm:$0x1]
        %v1457 = vsel %vm1455, %v1062, %v1456
        %1458 = vst [vmem:[#allocation2 + $0x8] sm:$0x1] %v1457
        %v1459 = vld [vmem:[#allocation2 + $0xc] sm:$0xf]
        %v1460 = vsel %vm1448, %v1069, %v1459
        %1461 = vst [vmem:[#allocation2 + $0xc] sm:$0xf] %v1460
        %1462 = vst.msk [vmem:[#allocation2 + $0x10] sm:$0xf] %vm1452, %v1078
        %v1463 = vld [vmem:[#allocation2 + $0x14] sm:$0x1]
        %v1464 = vsel %vm1455, %v1079, %v1463
        %1465 = vst [vmem:[#allocation2 + $0x14] sm:$0x1] %v1464
        %v1466 = vld [vmem:[#allocation2 + $0x18] sm:$0xf]
        %v1467 = vsel %vm1448, %v1086, %v1466
        %1468 = vst [vmem:[#allocation2 + $0x18] sm:$0xf] %v1467
        %1469 = vst.msk [vmem:[#allocation2 + $0x1c] sm:$0xf] %vm1452, %v1095
        %v1470 = vld [vmem:[#allocation2 + $0x20] sm:$0x1]
        %v1471 = vsel %vm1455, %v1096, %v1470
        %1472 = vst [vmem:[#allocation2 + $0x20] sm:$0x1] %v1471
        %v1473 = vld [vmem:[#allocation2 + $0x24] sm:$0xf]
        %v1474 = vsel %vm1448, %v1103, %v1473
        %1475 = vst [vmem:[#allocation2 + $0x24] sm:$0xf] %v1474
        %1476 = vst.msk [vmem:[#allocation2 + $0x28] sm:$0xf] %vm1452, %v1112
        %v1477 = vld [vmem:[#allocation2 + $0x2c] sm:$0x1]
        %v1478 = vsel %vm1455, %v1113, %v1477
        %1479 = vst [vmem:[#allocation2 + $0x2c] sm:$0x1] %v1478
        %v1480 = vld [vmem:[#allocation2 + $0x30] sm:$0xf]
        %v1481 = vsel %vm1448, %v1120, %v1480
        %1482 = vst [vmem:[#allocation2 + $0x30] sm:$0xf] %v1481
        %1483 = vst.msk [vmem:[#allocation2 + $0x34] sm:$0xf] %vm1452, %v1129
        %v1484 = vld [vmem:[#allocation2 + $0x38] sm:$0x1]
        %v1485 = vsel %vm1455, %v1130, %v1484
        %1486 = vst [vmem:[#allocation2 + $0x38] sm:$0x1] %v1485
        %v1487 = vld [vmem:[#allocation2 + $0x3c] sm:$0xf]
        %v1488 = vsel %vm1448, %v1137, %v1487
        %1489 = vst [vmem:[#allocation2 + $0x3c] sm:$0xf] %v1488
        %1490 = vst.msk [vmem:[#allocation2 + $0x40] sm:$0xf] %vm1452, %v1146
        %v1491 = vld [vmem:[#allocation2 + $0x44] sm:$0x1]
        %v1492 = vsel %vm1455, %v1147, %v1491
        %1493 = vst [vmem:[#allocation2 + $0x44] sm:$0x1] %v1492
        %v1494 = vld [vmem:[#allocation2 + $0x48] sm:$0xf]
        %v1495 = vsel %vm1448, %v1154, %v1494
        %1496 = vst [vmem:[#allocation2 + $0x48] sm:$0xf] %v1495
        %1497 = vst.msk [vmem:[#allocation2 + $0x4c] sm:$0xf] %vm1452, %v1163
        %v1498 = vld [vmem:[#allocation2 + $0x50] sm:$0x1]
        %v1499 = vsel %vm1455, %v1164, %v1498
        %1500 = vst [vmem:[#allocation2 + $0x50] sm:$0x1] %v1499
        %v1501 = vld [vmem:[#allocation2 + $0x54] sm:$0xf]
        %v1502 = vsel %vm1448, %v1171, %v1501
        %1503 = vst [vmem:[#allocation2 + $0x54] sm:$0xf] %v1502
        %1504 = vst.msk [vmem:[#allocation2 + $0x58] sm:$0xf] %vm1452, %v1180
        %v1505 = vld [vmem:[#allocation2 + $0x5c] sm:$0x1]
        %v1506 = vsel %vm1455, %v1181, %v1505
        %1507 = vst [vmem:[#allocation2 + $0x5c] sm:$0x1] %v1506
        %v1508 = vld [vmem:[#allocation2 + $0x60] sm:$0xf]
        %v1509 = vsel %vm1448, %v1188, %v1508
        %1510 = vst [vmem:[#allocation2 + $0x60] sm:$0xf] %v1509
        %1511 = vst.msk [vmem:[#allocation2 + $0x64] sm:$0xf] %vm1452, %v1197
        %v1512 = vld [vmem:[#allocation2 + $0x68] sm:$0x1]
        %v1513 = vsel %vm1455, %v1198, %v1512
        %1514 = vst [vmem:[#allocation2 + $0x68] sm:$0x1] %v1513
        %v1515 = vld [vmem:[#allocation2 + $0x6c] sm:$0xf]
        %v1516 = vsel %vm1448, %v1205, %v1515
        %1517 = vst [vmem:[#allocation2 + $0x6c] sm:$0xf] %v1516
        %1518 = vst.msk [vmem:[#allocation2 + $0x70] sm:$0xf] %vm1452, %v1214
        %v1519 = vld [vmem:[#allocation2 + $0x74] sm:$0x1]
        %v1520 = vsel %vm1455, %v1215, %v1519
        %1521 = vst [vmem:[#allocation2 + $0x74] sm:$0x1] %v1520
        %v1522 = vld [vmem:[#allocation2 + $0x78] sm:$0xf]
        %v1523 = vsel %vm1448, %v1222, %v1522
        %1524 = vst [vmem:[#allocation2 + $0x78] sm:$0xf] %v1523
        %1525 = vst.msk [vmem:[#allocation2 + $0x7c] sm:$0xf] %vm1452, %v1231
        %v1526 = vld [vmem:[#allocation2 + $0x80] sm:$0x1]
        %v1527 = vsel %vm1455, %v1232, %v1526
        %1528 = vst [vmem:[#allocation2 + $0x80] sm:$0x1] %v1527
        %v1529 = vld [vmem:[#allocation2 + $0x84] sm:$0xf]
        %v1530 = vsel %vm1448, %v1239, %v1529
        %1531 = vst [vmem:[#allocation2 + $0x84] sm:$0xf] %v1530
        %1532 = vst.msk [vmem:[#allocation2 + $0x88] sm:$0xf] %vm1452, %v1248
        %v1533 = vld [vmem:[#allocation2 + $0x8c] sm:$0x1]
        %v1534 = vsel %vm1455, %v1249, %v1533
        %1535 = vst [vmem:[#allocation2 + $0x8c] sm:$0x1] %v1534
        %v1536 = vld [vmem:[#allocation2 + $0x90] sm:$0xf]
        %v1537 = vsel %vm1448, %v1256, %v1536
        %1538 = vst [vmem:[#allocation2 + $0x90] sm:$0xf] %v1537
        %1539 = vst.msk [vmem:[#allocation2 + $0x94] sm:$0xf] %vm1452, %v1265
        %v1540 = vld [vmem:[#allocation2 + $0x98] sm:$0x1]
        %v1541 = vsel %vm1455, %v1266, %v1540
        %1542 = vst [vmem:[#allocation2 + $0x98] sm:$0x1] %v1541
        %v1543 = vld [vmem:[#allocation2 + $0x9c] sm:$0xf]
        %v1544 = vsel %vm1448, %v1273, %v1543
        %1545 = vst [vmem:[#allocation2 + $0x9c] sm:$0xf] %v1544
        %1546 = vst.msk [vmem:[#allocation2 + $0xa0] sm:$0xf] %vm1452, %v1282
        %v1547 = vld [vmem:[#allocation2 + $0xa4] sm:$0x1]
        %v1548 = vsel %vm1455, %v1283, %v1547
        %1549 = vst [vmem:[#allocation2 + $0xa4] sm:$0x1] %v1548
        %v1550 = vld [vmem:[#allocation2 + $0xa8] sm:$0xf]
        %v1551 = vsel %vm1448, %v1290, %v1550
        %1552 = vst [vmem:[#allocation2 + $0xa8] sm:$0xf] %v1551
        %1553 = vst.msk [vmem:[#allocation2 + $0xac] sm:$0xf] %vm1452, %v1299
        %v1554 = vld [vmem:[#allocation2 + $0xb0] sm:$0x1]
        %v1555 = vsel %vm1455, %v1300, %v1554
        %1556 = vst [vmem:[#allocation2 + $0xb0] sm:$0x1] %v1555
        %v1557 = vld [vmem:[#allocation2 + $0xb4] sm:$0xf]
        %v1558 = vsel %vm1448, %v1307, %v1557
        %1559 = vst [vmem:[#allocation2 + $0xb4] sm:$0xf] %v1558
        %1560 = vst.msk [vmem:[#allocation2 + $0xb8] sm:$0xf] %vm1452, %v1316
        %v1561 = vld [vmem:[#allocation2 + $0xbc] sm:$0x1]
        %v1562 = vsel %vm1455, %v1317, %v1561
        %1563 = vst [vmem:[#allocation2 + $0xbc] sm:$0x1] %v1562
        %v1564 = vld [vmem:[#allocation2 + $0xc0] sm:$0xf]
        %v1565 = vsel %vm1448, %v1324, %v1564
        %1566 = vst [vmem:[#allocation2 + $0xc0] sm:$0xf] %v1565
        %1567 = vst.msk [vmem:[#allocation2 + $0xc4] sm:$0xf] %vm1452, %v1333
        %v1568 = vld [vmem:[#allocation2 + $0xc8] sm:$0x1]
        %v1569 = vsel %vm1455, %v1334, %v1568
        %1570 = vst [vmem:[#allocation2 + $0xc8] sm:$0x1] %v1569
        %v1571 = vld [vmem:[#allocation2 + $0xcc] sm:$0xf]
        %v1572 = vsel %vm1448, %v1341, %v1571
        %1573 = vst [vmem:[#allocation2 + $0xcc] sm:$0xf] %v1572
        %1574 = vst.msk [vmem:[#allocation2 + $0xd0] sm:$0xf] %vm1452, %v1350
        %v1575 = vld [vmem:[#allocation2 + $0xd4] sm:$0x1]
        %v1576 = vsel %vm1455, %v1351, %v1575
        %1577 = vst [vmem:[#allocation2 + $0xd4] sm:$0x1] %v1576
        %v1578 = vld [vmem:[#allocation2 + $0xd8] sm:$0xf]
        %v1579 = vsel %vm1448, %v1358, %v1578
        %1580 = vst [vmem:[#allocation2 + $0xd8] sm:$0xf] %v1579
        %1581 = vst.msk [vmem:[#allocation2 + $0xdc] sm:$0xf] %vm1452, %v1367
        %v1582 = vld [vmem:[#allocation2 + $0xe0] sm:$0x1]
        %v1583 = vsel %vm1455, %v1368, %v1582
        %1584 = vst [vmem:[#allocation2 + $0xe0] sm:$0x1] %v1583
        %v1585 = vld [vmem:[#allocation2 + $0xe4] sm:$0xf]
        %v1586 = vsel %vm1448, %v1375, %v1585
        %1587 = vst [vmem:[#allocation2 + $0xe4] sm:$0xf] %v1586
        %1588 = vst.msk [vmem:[#allocation2 + $0xe8] sm:$0xf] %vm1452, %v1384
        %v1589 = vld [vmem:[#allocation2 + $0xec] sm:$0x1]
        %v1590 = vsel %vm1455, %v1385, %v1589
        %1591 = vst [vmem:[#allocation2 + $0xec] sm:$0x1] %v1590
        %v1592 = vld [vmem:[#allocation2] sm:$0x1]
        %v1593 = vsel %vm1455, 0, %v1592
        %1594 = vst [vmem:[#allocation2] sm:$0x1] %v1593
        %v1595 = vld [vmem:[#allocation2 + $0xc] sm:$0x1]
        %v1596 = vsel %vm1455, 0, %v1595
        %1597 = vst [vmem:[#allocation2 + $0xc] sm:$0x1] %v1596
        %v1598 = vld [vmem:[#allocation2 + $0x18] sm:$0x1]
        %v1599 = vsel %vm1455, 0, %v1598
        %1600 = vst [vmem:[#allocation2 + $0x18] sm:$0x1] %v1599
        %v1601 = vld [vmem:[#allocation2 + $0x24] sm:$0x1]
        %v1602 = vsel %vm1455, 0, %v1601
        %1603 = vst [vmem:[#allocation2 + $0x24] sm:$0x1] %v1602
        %v1604 = vld [vmem:[#allocation2 + $0x30] sm:$0x1]
        %v1605 = vsel %vm1455, 0, %v1604
        %1606 = vst [vmem:[#allocation2 + $0x30] sm:$0x1] %v1605
        %v1607 = vld [vmem:[#allocation2 + $0x3c] sm:$0x1]
        %v1608 = vsel %vm1455, 0, %v1607
        %1609 = vst [vmem:[#allocation2 + $0x3c] sm:$0x1] %v1608
        %v1610 = vld [vmem:[#allocation2 + $0x48] sm:$0x1]
        %v1611 = vsel %vm1455, 0, %v1610
        %1612 = vst [vmem:[#allocation2 + $0x48] sm:$0x1] %v1611
        %v1613 = vld [vmem:[#allocation2 + $0x54] sm:$0x1]
        %v1614 = vsel %vm1455, 0, %v1613
        %1615 = vst [vmem:[#allocation2 + $0x54] sm:$0x1] %v1614
        %v1616 = vld [vmem:[#allocation2 + $0x60] sm:$0x1]
        %v1617 = vsel %vm1455, 0, %v1616
        %1618 = vst [vmem:[#allocation2 + $0x60] sm:$0x1] %v1617
        %v1619 = vld [vmem:[#allocation2 + $0x6c] sm:$0x1]
        %v1620 = vsel %vm1455, 0, %v1619
        %1621 = vst [vmem:[#allocation2 + $0x6c] sm:$0x1] %v1620
        %v1622 = vld [vmem:[#allocation2 + $0x78] sm:$0x1]
        %v1623 = vsel %vm1455, 0, %v1622
        %1624 = vst [vmem:[#allocation2 + $0x78] sm:$0x1] %v1623
        %v1625 = vld [vmem:[#allocation2 + $0x84] sm:$0x1]
        %v1626 = vsel %vm1455, 0, %v1625
        %1627 = vst [vmem:[#allocation2 + $0x84] sm:$0x1] %v1626
        %v1628 = vld [vmem:[#allocation2 + $0x90] sm:$0x1]
        %v1629 = vsel %vm1455, 0, %v1628
        %1630 = vst [vmem:[#allocation2 + $0x90] sm:$0x1] %v1629
        %v1631 = vld [vmem:[#allocation2 + $0x9c] sm:$0x1]
        %v1632 = vsel %vm1455, 0, %v1631
        %1633 = vst [vmem:[#allocation2 + $0x9c] sm:$0x1] %v1632
        %v1634 = vld [vmem:[#allocation2 + $0xa8] sm:$0x1]
        %v1635 = vsel %vm1455, 0, %v1634
        %1636 = vst [vmem:[#allocation2 + $0xa8] sm:$0x1] %v1635
        %v1637 = vld [vmem:[#allocation2 + $0xb4] sm:$0x1]
        %v1638 = vsel %vm1455, 0, %v1637
        %1639 = vst [vmem:[#allocation2 + $0xb4] sm:$0x1] %v1638
        %v1640 = vld [vmem:[#allocation2 + $0xc0] sm:$0x1]
        %v1641 = vsel %vm1455, 0, %v1640
        %1642 = vst [vmem:[#allocation2 + $0xc0] sm:$0x1] %v1641
        %v1643 = vld [vmem:[#allocation2 + $0xcc] sm:$0x1]
        %v1644 = vsel %vm1455, 0, %v1643
        %1645 = vst [vmem:[#allocation2 + $0xcc] sm:$0x1] %v1644
        %v1646 = vld [vmem:[#allocation2 + $0xd8] sm:$0x1]
        %v1647 = vsel %vm1455, 0, %v1646
        %1648 = vst [vmem:[#allocation2 + $0xd8] sm:$0x1] %v1647
        %v1649 = vld [vmem:[#allocation2 + $0xe4] sm:$0x1]
        %v1650 = vsel %vm1455, 0, %v1649
        %1651 = vst [vmem:[#allocation2 + $0xe4] sm:$0x1] %v1650
        %vm1652 = vmand %vm1454, %vm1447
        %v1653 = vld [vmem:[#allocation2 + $0x8] sm:$0x1]
        %v1654 = vsel %vm1652, 0, %v1653
        %1655 = vst [vmem:[#allocation2 + $0x8] sm:$0x1] %v1654
        %v1656 = vld [vmem:[#allocation2 + $0x14] sm:$0x1]
        %v1657 = vsel %vm1652, 0, %v1656
        %1658 = vst [vmem:[#allocation2 + $0x14] sm:$0x1] %v1657
        %v1659 = vld [vmem:[#allocation2 + $0x20] sm:$0x1]
        %v1660 = vsel %vm1652, 0, %v1659
        %1661 = vst [vmem:[#allocation2 + $0x20] sm:$0x1] %v1660
        %v1662 = vld [vmem:[#allocation2 + $0x2c] sm:$0x1]
        %v1663 = vsel %vm1652, 0, %v1662
        %1664 = vst [vmem:[#allocation2 + $0x2c] sm:$0x1] %v1663
        %v1665 = vld [vmem:[#allocation2 + $0x38] sm:$0x1]
        %v1666 = vsel %vm1652, 0, %v1665
        %1667 = vst [vmem:[#allocation2 + $0x38] sm:$0x1] %v1666
        %v1668 = vld [vmem:[#allocation2 + $0x44] sm:$0x1]
        %v1669 = vsel %vm1652, 0, %v1668
        %1670 = vst [vmem:[#allocation2 + $0x44] sm:$0x1] %v1669
        %v1671 = vld [vmem:[#allocation2 + $0x50] sm:$0x1]
        %v1672 = vsel %vm1652, 0, %v1671
        %1673 = vst [vmem:[#allocation2 + $0x50] sm:$0x1] %v1672
        %v1674 = vld [vmem:[#allocation2 + $0x5c] sm:$0x1]
        %v1675 = vsel %vm1652, 0, %v1674
        %1676 = vst [vmem:[#allocation2 + $0x5c] sm:$0x1] %v1675
        %v1677 = vld [vmem:[#allocation2 + $0x68] sm:$0x1]
        %v1678 = vsel %vm1652, 0, %v1677
        %1679 = vst [vmem:[#allocation2 + $0x68] sm:$0x1] %v1678
        %v1680 = vld [vmem:[#allocation2 + $0x74] sm:$0x1]
        %v1681 = vsel %vm1652, 0, %v1680
        %1682 = vst [vmem:[#allocation2 + $0x74] sm:$0x1] %v1681
        %v1683 = vld [vmem:[#allocation2 + $0x80] sm:$0x1]
        %v1684 = vsel %vm1652, 0, %v1683
        %1685 = vst [vmem:[#allocation2 + $0x80] sm:$0x1] %v1684
        %v1686 = vld [vmem:[#allocation2 + $0x8c] sm:$0x1]
        %v1687 = vsel %vm1652, 0, %v1686
        %1688 = vst [vmem:[#allocation2 + $0x8c] sm:$0x1] %v1687
        %v1689 = vld [vmem:[#allocation2 + $0x98] sm:$0x1]
        %v1690 = vsel %vm1652, 0, %v1689
        %1691 = vst [vmem:[#allocation2 + $0x98] sm:$0x1] %v1690
        %v1692 = vld [vmem:[#allocation2 + $0xa4] sm:$0x1]
        %v1693 = vsel %vm1652, 0, %v1692
        %1694 = vst [vmem:[#allocation2 + $0xa4] sm:$0x1] %v1693
        %v1695 = vld [vmem:[#allocation2 + $0xb0] sm:$0x1]
        %v1696 = vsel %vm1652, 0, %v1695
        %1697 = vst [vmem:[#allocation2 + $0xb0] sm:$0x1] %v1696
        %v1698 = vld [vmem:[#allocation2 + $0xbc] sm:$0x1]
        %v1699 = vsel %vm1652, 0, %v1698
        %1700 = vst [vmem:[#allocation2 + $0xbc] sm:$0x1] %v1699
        %v1701 = vld [vmem:[#allocation2 + $0xc8] sm:$0x1]
        %v1702 = vsel %vm1652, 0, %v1701
        %1703 = vst [vmem:[#allocation2 + $0xc8] sm:$0x1] %v1702
        %v1704 = vld [vmem:[#allocation2 + $0xd4] sm:$0x1]
        %v1705 = vsel %vm1652, 0, %v1704
        %1706 = vst [vmem:[#allocation2 + $0xd4] sm:$0x1] %v1705
        %v1707 = vld [vmem:[#allocation2 + $0xe0] sm:$0x1]
        %v1708 = vsel %vm1652, 0, %v1707
        %1709 = vst [vmem:[#allocation2 + $0xe0] sm:$0x1] %v1708
        %v1710 = vld [vmem:[#allocation2 + $0xec] sm:$0x1]
        %v1711 = vsel %vm1652, 0, %v1710
        %1712 = vst [vmem:[#allocation2 + $0xec] sm:$0x1] %v1711
        %v1713 = vld [vmem:[#allocation2] sm:$0xf]
        %v1714 = vld [vmem:[#allocation2 + $0x4] sm:$0xf]
        %v1715 = vld [vmem:[#allocation2 + $0x8] sm:$0x1]
        %v1716 = vld [vmem:[#allocation2 + $0xc] sm:$0xf]
        %v1717 = vld [vmem:[#allocation2 + $0x10] sm:$0xf]
        %v1718 = vld [vmem:[#allocation2 + $0x14] sm:$0x1]
        %v1719 = vld [vmem:[#allocation2 + $0x18] sm:$0xf]
        %v1720 = vld [vmem:[#allocation2 + $0x1c] sm:$0xf]
        %v1721 = vld [vmem:[#allocation2 + $0x20] sm:$0x1]
        %v1722 = vld [vmem:[#allocation2 + $0x24] sm:$0xf]
        %v1723 = vld [vmem:[#allocation2 + $0x28] sm:$0xf]
        %v1724 = vld [vmem:[#allocation2 + $0x2c] sm:$0x1]
        %v1725 = vld [vmem:[#allocation2 + $0x30] sm:$0xf]
        %v1726 = vld [vmem:[#allocation2 + $0x34] sm:$0xf]
        %v1727 = vld [vmem:[#allocation2 + $0x38] sm:$0x1]
        %v1728 = vld [vmem:[#allocation2 + $0x3c] sm:$0xf]
        %v1729 = vld [vmem:[#allocation2 + $0x40] sm:$0xf]
        %v1730 = vld [vmem:[#allocation2 + $0x44] sm:$0x1]
        %v1731 = vld [vmem:[#allocation2 + $0x48] sm:$0xf]
        %v1732 = vld [vmem:[#allocation2 + $0x4c] sm:$0xf]
        %v1733 = vld [vmem:[#allocation2 + $0x50] sm:$0x1]
        %v1734 = vld [vmem:[#allocation2 + $0x54] sm:$0xf]
        %v1735 = vld [vmem:[#allocation2 + $0x58] sm:$0xf]
        %v1736 = vld [vmem:[#allocation2 + $0x5c] sm:$0x1]
        %v1737 = vld [vmem:[#allocation2 + $0x60] sm:$0xf]
        %v1738 = vld [vmem:[#allocation2 + $0x64] sm:$0xf]
        %v1739 = vld [vmem:[#allocation2 + $0x68] sm:$0x1]
        %v1740 = vld [vmem:[#allocation2 + $0x6c] sm:$0xf]
        %v1741 = vld [vmem:[#allocation2 + $0x70] sm:$0xf]
        %v1742 = vld [vmem:[#allocation2 + $0x74] sm:$0x1]
        %v1743 = vld [vmem:[#allocation2 + $0x78] sm:$0xf]
        %v1744 = vld [vmem:[#allocation2 + $0x7c] sm:$0xf]
        %v1745 = vld [vmem:[#allocation2 + $0x80] sm:$0x1]
        %v1746 = vld [vmem:[#allocation2 + $0x84] sm:$0xf]
        %v1747 = vld [vmem:[#allocation2 + $0x88] sm:$0xf]
        %v1748 = vld [vmem:[#allocation2 + $0x8c] sm:$0x1]
        %v1749 = vld [vmem:[#allocation2 + $0x90] sm:$0xf]
        %v1750 = vld [vmem:[#allocation2 + $0x94] sm:$0xf]
        %v1751 = vld [vmem:[#allocation2 + $0x98] sm:$0x1]
        %v1752 = vld [vmem:[#allocation2 + $0x9c] sm:$0xf]
        %v1753 = vld [vmem:[#allocation2 + $0xa0] sm:$0xf]
        %v1754 = vld [vmem:[#allocation2 + $0xa4] sm:$0x1]
        %v1755 = vld [vmem:[#allocation2 + $0xa8] sm:$0xf]
        %v1756 = vld [vmem:[#allocation2 + $0xac] sm:$0xf]
        %v1757 = vld [vmem:[#allocation2 + $0xb0] sm:$0x1]
        %v1758 = vld [vmem:[#allocation2 + $0xb4] sm:$0xf]
        %v1759 = vld [vmem:[#allocation2 + $0xb8] sm:$0xf]
        %v1760 = vld [vmem:[#allocation2 + $0xbc] sm:$0x1]
        %v1761 = vld [vmem:[#allocation2 + $0xc0] sm:$0xf]
        %v1762 = vld [vmem:[#allocation2 + $0xc4] sm:$0xf]
        %v1763 = vld [vmem:[#allocation2 + $0xc8] sm:$0x1]
        %v1764 = vld [vmem:[#allocation2 + $0xcc] sm:$0xf]
        %v1765 = vld [vmem:[#allocation2 + $0xd0] sm:$0xf]
        %v1766 = vld [vmem:[#allocation2 + $0xd4] sm:$0x1]
        %v1767 = vld [vmem:[#allocation2 + $0xd8] sm:$0xf]
        %v1768 = vld [vmem:[#allocation2 + $0xdc] sm:$0xf]
        %v1769 = vld [vmem:[#allocation2 + $0xe0] sm:$0x1]
        %v1770 = vld [vmem:[#allocation2 + $0xe4] sm:$0xf]
        %v1771 = vld [vmem:[#allocation2 + $0xe8] sm:$0xf]
        %v1772 = vld [vmem:[#allocation2 + $0xec] sm:$0x1]
        %v1813 = vunpack.c.l.b16 %v1713
        %v1814 = vunpack.c.l.b16 %v1714
        %v1815 = vunpack.c.l.b16 %v1716
        %v1816 = vunpack.c.l.b16 %v1717
        %v1817 = vunpack.c.l.b16 %v1719
        %v1818 = vunpack.c.l.b16 %v1720
        %v1819 = vunpack.c.l.b16 %v1722
        %v1820 = vunpack.c.l.b16 %v1723
        %v1821 = vunpack.c.l.b16 %v1725
        %v1822 = vunpack.c.l.b16 %v1726
        %v1823 = vunpack.c.l.b16 %v1728
        %v1824 = vunpack.c.l.b16 %v1729
        %v1825 = vunpack.c.l.b16 %v1731
        %v1826 = vunpack.c.l.b16 %v1732
        %v1827 = vunpack.c.l.b16 %v1734
        %v1828 = vunpack.c.l.b16 %v1735
        %v1829 = vunpack.c.l.b16 %v1737
        %v1830 = vunpack.c.l.b16 %v1738
        %v1831 = vunpack.c.l.b16 %v1740
        %v1832 = vunpack.c.l.b16 %v1741
        %v1833 = vunpack.c.l.b16 %v1743
        %v1834 = vunpack.c.l.b16 %v1744
        %v1835 = vunpack.c.l.b16 %v1746
        %v1836 = vunpack.c.l.b16 %v1747
        %v1837 = vunpack.c.l.b16 %v1749
        %v1838 = vunpack.c.l.b16 %v1750
        %v1839 = vunpack.c.l.b16 %v1752
        %v1840 = vunpack.c.l.b16 %v1753
        %v1841 = vunpack.c.l.b16 %v1755
        %v1842 = vunpack.c.l.b16 %v1756
        %v1843 = vunpack.c.l.b16 %v1758
        %v1844 = vunpack.c.l.b16 %v1759
        %v1845 = vunpack.c.l.b16 %v1761
        %v1846 = vunpack.c.l.b16 %v1762
        %v1847 = vunpack.c.l.b16 %v1764
        %v1848 = vunpack.c.l.b16 %v1765
        %v1849 = vunpack.c.l.b16 %v1767
        %v1850 = vunpack.c.l.b16 %v1768
        %v1851 = vunpack.c.l.b16 %v1770
        %v1852 = vunpack.c.l.b16 %v1771
        %v1853 = vpack.c.b16 %v1814, %v1813
        %v1854 = vpack.c.b16 %v1816, %v1815
        %v1855 = vpack.c.b16 %v1818, %v1817
        %v1856 = vpack.c.b16 %v1820, %v1819
        %v1857 = vpack.c.b16 %v1822, %v1821
        %v1858 = vpack.c.b16 %v1824, %v1823
        %v1859 = vpack.c.b16 %v1826, %v1825
        %v1860 = vpack.c.b16 %v1828, %v1827
        %v1861 = vpack.c.b16 %v1830, %v1829
        %v1862 = vpack.c.b16 %v1832, %v1831
        %v1863 = vpack.c.b16 %v1834, %v1833
        %v1864 = vpack.c.b16 %v1836, %v1835
        %v1865 = vpack.c.b16 %v1838, %v1837
        %v1866 = vpack.c.b16 %v1840, %v1839
        %v1867 = vpack.c.b16 %v1842, %v1841
        %v1868 = vpack.c.b16 %v1844, %v1843
        %v1869 = vpack.c.b16 %v1846, %v1845
        %v1870 = vpack.c.b16 %v1848, %v1847
        %v1871 = vpack.c.b16 %v1850, %v1849
        %v1872 = vpack.c.b16 %v1852, %v1851
        %v1893 = vunpack.c.l.b16 %v1715
        %v1894 = vunpack.c.l.b16 %v1718
        %v1895 = vunpack.c.l.b16 %v1721
        %v1896 = vunpack.c.l.b16 %v1724
        %v1897 = vunpack.c.l.b16 %v1727
        %v1898 = vunpack.c.l.b16 %v1730
        %v1899 = vunpack.c.l.b16 %v1733
        %v1900 = vunpack.c.l.b16 %v1736
        %v1901 = vunpack.c.l.b16 %v1739
        %v1902 = vunpack.c.l.b16 %v1742
        %v1903 = vunpack.c.l.b16 %v1745
        %v1904 = vunpack.c.l.b16 %v1748
        %v1905 = vunpack.c.l.b16 %v1751
        %v1906 = vunpack.c.l.b16 %v1754
        %v1907 = vunpack.c.l.b16 %v1757
        %v1908 = vunpack.c.l.b16 %v1760
        %v1909 = vunpack.c.l.b16 %v1763
        %v1910 = vunpack.c.l.b16 %v1766
        %v1911 = vunpack.c.l.b16 %v1769
        %v1912 = vunpack.c.l.b16 %v1772
        %v1913 = vpack.c.b16 %v1893, %v1893
        %v1914 = vpack.c.b16 %v1894, %v1894
        %v1915 = vpack.c.b16 %v1895, %v1895
        %v1916 = vpack.c.b16 %v1896, %v1896
        %v1917 = vpack.c.b16 %v1897, %v1897
        %v1918 = vpack.c.b16 %v1898, %v1898
        %v1919 = vpack.c.b16 %v1899, %v1899
        %v1920 = vpack.c.b16 %v1900, %v1900
        %v1921 = vpack.c.b16 %v1901, %v1901
        %v1922 = vpack.c.b16 %v1902, %v1902
        %v1923 = vpack.c.b16 %v1903, %v1903
        %v1924 = vpack.c.b16 %v1904, %v1904
        %v1925 = vpack.c.b16 %v1905, %v1905
        %v1926 = vpack.c.b16 %v1906, %v1906
        %v1927 = vpack.c.b16 %v1907, %v1907
        %v1928 = vpack.c.b16 %v1908, %v1908
        %v1929 = vpack.c.b16 %v1909, %v1909
        %v1930 = vpack.c.b16 %v1910, %v1910
        %v1931 = vpack.c.b16 %v1911, %v1911
        %v1932 = vpack.c.b16 %v1912, %v1912
        %vm1933 = vsmask.f32 7424
        %v1935 = vshrl.u32 %v1853, 16
        %v1937 = vshll.u32 %v1853, 16
        %v1939 = vrot.slane %v1937, 1
        %v1940 = vor.u32 %v1935, %v1939
        %v1942 = vshll.u32 %v1913, 16
        %v1944 = vrot.slane %v1942, 1
        %v1945 = vsel %vm1933, %v1940, %v1944
        %v1947 = vshrl.u32 %v1854, 16
        %v1949 = vshll.u32 %v1854, 16
        %v1951 = vrot.slane %v1949, 1
        %v1952 = vor.u32 %v1947, %v1951
        %v1954 = vshll.u32 %v1914, 16
        %v1956 = vrot.slane %v1954, 1
        %v1957 = vsel %vm1933, %v1952, %v1956
        %v1959 = vshrl.u32 %v1855, 16
        %v1961 = vshll.u32 %v1855, 16
        %v1963 = vrot.slane %v1961, 1
        %v1964 = vor.u32 %v1959, %v1963
        %v1966 = vshll.u32 %v1915, 16
        %v1968 = vrot.slane %v1966, 1
        %v1969 = vsel %vm1933, %v1964, %v1968
        %v1971 = vshrl.u32 %v1856, 16
        %v1973 = vshll.u32 %v1856, 16
        %v1975 = vrot.slane %v1973, 1
        %v1976 = vor.u32 %v1971, %v1975
        %v1978 = vshll.u32 %v1916, 16
        %v1980 = vrot.slane %v1978, 1
        %v1981 = vsel %vm1933, %v1976, %v1980
        %v1983 = vshrl.u32 %v1857, 16
        %v1985 = vshll.u32 %v1857, 16
        %v1987 = vrot.slane %v1985, 1
        %v1988 = vor.u32 %v1983, %v1987
        %v1990 = vshll.u32 %v1917, 16
        %v1992 = vrot.slane %v1990, 1
        %v1993 = vsel %vm1933, %v1988, %v1992
        %v1995 = vshrl.u32 %v1858, 16
        %v1997 = vshll.u32 %v1858, 16
        %v1999 = vrot.slane %v1997, 1
        %v2000 = vor.u32 %v1995, %v1999
        %v2002 = vshll.u32 %v1918, 16
        %v2004 = vrot.slane %v2002, 1
        %v2005 = vsel %vm1933, %v2000, %v2004
        %v2007 = vshrl.u32 %v1859, 16
        %v2009 = vshll.u32 %v1859, 16
        %v2011 = vrot.slane %v2009, 1
        %v2012 = vor.u32 %v2007, %v2011
        %v2014 = vshll.u32 %v1919, 16
        %v2016 = vrot.slane %v2014, 1
        %v2017 = vsel %vm1933, %v2012, %v2016
        %v2019 = vshrl.u32 %v1860, 16
        %v2021 = vshll.u32 %v1860, 16
        %v2023 = vrot.slane %v2021, 1
        %v2024 = vor.u32 %v2019, %v2023
        %v2026 = vshll.u32 %v1920, 16
        %v2028 = vrot.slane %v2026, 1
        %v2029 = vsel %vm1933, %v2024, %v2028
        %v2031 = vshrl.u32 %v1861, 16
        %v2033 = vshll.u32 %v1861, 16
        %v2035 = vrot.slane %v2033, 1
        %v2036 = vor.u32 %v2031, %v2035
        %v2038 = vshll.u32 %v1921, 16
        %v2040 = vrot.slane %v2038, 1
        %v2041 = vsel %vm1933, %v2036, %v2040
        %v2043 = vshrl.u32 %v1862, 16
        %v2045 = vshll.u32 %v1862, 16
        %v2047 = vrot.slane %v2045, 1
        %v2048 = vor.u32 %v2043, %v2047
        %v2050 = vshll.u32 %v1922, 16
        %v2052 = vrot.slane %v2050, 1
        %v2053 = vsel %vm1933, %v2048, %v2052
        %v2055 = vshrl.u32 %v1863, 16
        %v2057 = vshll.u32 %v1863, 16
        %v2059 = vrot.slane %v2057, 1
        %v2060 = vor.u32 %v2055, %v2059
        %v2062 = vshll.u32 %v1923, 16
        %v2064 = vrot.slane %v2062, 1
        %v2065 = vsel %vm1933, %v2060, %v2064
        %v2067 = vshrl.u32 %v1864, 16
        %v2069 = vshll.u32 %v1864, 16
        %v2071 = vrot.slane %v2069, 1
        %v2072 = vor.u32 %v2067, %v2071
        %v2074 = vshll.u32 %v1924, 16
        %v2076 = vrot.slane %v2074, 1
        %v2077 = vsel %vm1933, %v2072, %v2076
        %v2079 = vshrl.u32 %v1865, 16
        %v2081 = vshll.u32 %v1865, 16
        %v2083 = vrot.slane %v2081, 1
        %v2084 = vor.u32 %v2079, %v2083
        %v2086 = vshll.u32 %v1925, 16
        %v2088 = vrot.slane %v2086, 1
        %v2089 = vsel %vm1933, %v2084, %v2088
        %v2091 = vshrl.u32 %v1866, 16
        %v2093 = vshll.u32 %v1866, 16
        %v2095 = vrot.slane %v2093, 1
        %v2096 = vor.u32 %v2091, %v2095
        %v2098 = vshll.u32 %v1926, 16
        %v2100 = vrot.slane %v2098, 1
        %v2101 = vsel %vm1933, %v2096, %v2100
        %v2103 = vshrl.u32 %v1867, 16
        %v2105 = vshll.u32 %v1867, 16
        %v2107 = vrot.slane %v2105, 1
        %v2108 = vor.u32 %v2103, %v2107
        %v2110 = vshll.u32 %v1927, 16
        %v2112 = vrot.slane %v2110, 1
        %v2113 = vsel %vm1933, %v2108, %v2112
        %v2115 = vshrl.u32 %v1868, 16
        %v2117 = vshll.u32 %v1868, 16
        %v2119 = vrot.slane %v2117, 1
        %v2120 = vor.u32 %v2115, %v2119
        %v2122 = vshll.u32 %v1928, 16
        %v2124 = vrot.slane %v2122, 1
        %v2125 = vsel %vm1933, %v2120, %v2124
        %v2127 = vshrl.u32 %v1869, 16
        %v2129 = vshll.u32 %v1869, 16
        %v2131 = vrot.slane %v2129, 1
        %v2132 = vor.u32 %v2127, %v2131
        %v2134 = vshll.u32 %v1929, 16
        %v2136 = vrot.slane %v2134, 1
        %v2137 = vsel %vm1933, %v2132, %v2136
        %v2139 = vshrl.u32 %v1870, 16
        %v2141 = vshll.u32 %v1870, 16
        %v2143 = vrot.slane %v2141, 1
        %v2144 = vor.u32 %v2139, %v2143
        %v2146 = vshll.u32 %v1930, 16
        %v2148 = vrot.slane %v2146, 1
        %v2149 = vsel %vm1933, %v2144, %v2148
        %v2151 = vshrl.u32 %v1871, 16
        %v2153 = vshll.u32 %v1871, 16
        %v2155 = vrot.slane %v2153, 1
        %v2156 = vor.u32 %v2151, %v2155
        %v2158 = vshll.u32 %v1931, 16
        %v2160 = vrot.slane %v2158, 1
        %v2161 = vsel %vm1933, %v2156, %v2160
        %v2163 = vshrl.u32 %v1872, 16
        %v2165 = vshll.u32 %v1872, 16
        %v2167 = vrot.slane %v2165, 1
        %v2168 = vor.u32 %v2163, %v2167
        %v2170 = vshll.u32 %v1932, 16
        %v2172 = vrot.slane %v2170, 1
        %v2173 = vsel %vm1933, %v2168, %v2172
        %2174 = vrot.lane.b32.xlu0 %v1945, 64
        %v2175 = vpop.permute.xlu0 %2174
        %2176 = vrot.lane.b32.xlu0 %v1957, 64
        %v2177 = vpop.permute.xlu0 %2176
        %2178 = vrot.lane.b32.xlu0 %v1969, 64
        %v2179 = vpop.permute.xlu0 %2178
        %2180 = vrot.lane.b32.xlu0 %v1981, 64
        %v2181 = vpop.permute.xlu0 %2180
        %2182 = vrot.lane.b32.xlu0 %v1993, 64
        %v2183 = vpop.permute.xlu0 %2182
        %2184 = vrot.lane.b32.xlu0 %v2005, 64
        %v2185 = vpop.permute.xlu0 %2184
        %2186 = vrot.lane.b32.xlu0 %v2017, 64
        %v2187 = vpop.permute.xlu0 %2186
        %2188 = vrot.lane.b32.xlu0 %v2029, 64
        %v2189 = vpop.permute.xlu0 %2188
        %2190 = vrot.lane.b32.xlu0 %v2041, 64
        %v2191 = vpop.permute.xlu0 %2190
        %2192 = vrot.lane.b32.xlu0 %v2053, 64
        %v2193 = vpop.permute.xlu0 %2192
        %2194 = vrot.lane.b32.xlu0 %v2065, 64
        %v2195 = vpop.permute.xlu0 %2194
        %2196 = vrot.lane.b32.xlu0 %v2077, 64
        %v2197 = vpop.permute.xlu0 %2196
        %2198 = vrot.lane.b32.xlu0 %v2089, 64
        %v2199 = vpop.permute.xlu0 %2198
        %2200 = vrot.lane.b32.xlu0 %v2101, 64
        %v2201 = vpop.permute.xlu0 %2200
        %2202 = vrot.lane.b32.xlu0 %v2113, 64
        %v2203 = vpop.permute.xlu0 %2202
        %2204 = vrot.lane.b32.xlu0 %v2125, 64
        %v2205 = vpop.permute.xlu0 %2204
        %2206 = vrot.lane.b32.xlu0 %v2137, 64
        %v2207 = vpop.permute.xlu0 %2206
        %2208 = vrot.lane.b32.xlu0 %v2149, 64
        %v2209 = vpop.permute.xlu0 %2208
        %2210 = vrot.lane.b32.xlu0 %v2161, 64
        %v2211 = vpop.permute.xlu0 %2210
        %2212 = vrot.lane.b32.xlu0 %v2173, 64
        %v2213 = vpop.permute.xlu0 %2212
        %vm2214 = vcmask 1046528
        %v2215 = vrot.slane %v1853, 1
        %v2216 = vrot.slane %v1913, 1
        %v2217 = vsel %vm2214, %v2215, %v2216
        %v2218 = vrot.slane %v1854, 1
        %v2219 = vrot.slane %v1914, 1
        %v2220 = vsel %vm2214, %v2218, %v2219
        %v2221 = vrot.slane %v1855, 1
        %v2222 = vrot.slane %v1915, 1
        %v2223 = vsel %vm2214, %v2221, %v2222
        %v2224 = vrot.slane %v1856, 1
        %v2225 = vrot.slane %v1916, 1
        %v2226 = vsel %vm2214, %v2224, %v2225
        %v2227 = vrot.slane %v1857, 1
        %v2228 = vrot.slane %v1917, 1
        %v2229 = vsel %vm2214, %v2227, %v2228
        %v2230 = vrot.slane %v1858, 1
        %v2231 = vrot.slane %v1918, 1
        %v2232 = vsel %vm2214, %v2230, %v2231
        %v2233 = vrot.slane %v1859, 1
        %v2234 = vrot.slane %v1919, 1
        %v2235 = vsel %vm2214, %v2233, %v2234
        %v2236 = vrot.slane %v1860, 1
        %v2237 = vrot.slane %v1920, 1
        %v2238 = vsel %vm2214, %v2236, %v2237
        %v2239 = vrot.slane %v1861, 1
        %v2240 = vrot.slane %v1921, 1
        %v2241 = vsel %vm2214, %v2239, %v2240
        %v2242 = vrot.slane %v1862, 1
        %v2243 = vrot.slane %v1922, 1
        %v2244 = vsel %vm2214, %v2242, %v2243
        %v2245 = vrot.slane %v1863, 1
        %v2246 = vrot.slane %v1923, 1
        %v2247 = vsel %vm2214, %v2245, %v2246
        %v2248 = vrot.slane %v1864, 1
        %v2249 = vrot.slane %v1924, 1
        %v2250 = vsel %vm2214, %v2248, %v2249
        %v2251 = vrot.slane %v1865, 1
        %v2252 = vrot.slane %v1925, 1
        %v2253 = vsel %vm2214, %v2251, %v2252
        %v2254 = vrot.slane %v1866, 1
        %v2255 = vrot.slane %v1926, 1
        %v2256 = vsel %vm2214, %v2254, %v2255
        %v2257 = vrot.slane %v1867, 1
        %v2258 = vrot.slane %v1927, 1
        %v2259 = vsel %vm2214, %v2257, %v2258
        %v2260 = vrot.slane %v1868, 1
        %v2261 = vrot.slane %v1928, 1
        %v2262 = vsel %vm2214, %v2260, %v2261
        %v2263 = vrot.slane %v1869, 1
        %v2264 = vrot.slane %v1929, 1
        %v2265 = vsel %vm2214, %v2263, %v2264
        %v2266 = vrot.slane %v1870, 1
        %v2267 = vrot.slane %v1930, 1
        %v2268 = vsel %vm2214, %v2266, %v2267
        %v2269 = vrot.slane %v1871, 1
        %v2270 = vrot.slane %v1931, 1
        %v2271 = vsel %vm2214, %v2269, %v2270
        %v2272 = vrot.slane %v1872, 1
        %v2273 = vrot.slane %v1932, 1
        %v2274 = vsel %vm2214, %v2272, %v2273
        %vm2275 = vcmask 523264
        %v2277 = vsel %vm2275, %v1853, %v2175
        %v2280 = vsel %vm2275, %v1854, %v2177
        %v2283 = vsel %vm2275, %v1855, %v2179
        %v2286 = vsel %vm2275, %v1856, %v2181
        %v2289 = vsel %vm2275, %v1857, %v2183
        %v2292 = vsel %vm2275, %v1858, %v2185
        %v2295 = vsel %vm2275, %v1859, %v2187
        %v2298 = vsel %vm2275, %v1860, %v2189
        %v2301 = vsel %vm2275, %v1861, %v2191
        %v2304 = vsel %vm2275, %v1862, %v2193
        %v2307 = vsel %vm2275, %v1863, %v2195
        %v2310 = vsel %vm2275, %v1864, %v2197
        %v2313 = vsel %vm2275, %v1865, %v2199
        %v2316 = vsel %vm2275, %v1866, %v2201
        %v2319 = vsel %vm2275, %v1867, %v2203
        %v2322 = vsel %vm2275, %v1868, %v2205
        %v2325 = vsel %vm2275, %v1869, %v2207
        %v2328 = vsel %vm2275, %v1870, %v2209
        %v2331 = vsel %vm2275, %v1871, %v2211
        %v2334 = vsel %vm2275, %v1872, %v2213
        %v2336 = vld [vmem:[%s3] sm:$0xf]
        %v2337 = vld [vmem:[%s3 + $0x4] sm:$0xf]
        %v2338 = vld [vmem:[%s3 + $0x8] sm:$0xf]
        %v2339 = vld [vmem:[%s3 + $0xc] sm:$0xf]
        %v2340 = vld [vmem:[%s3 + $0x10] sm:$0xf]
        %v2341 = vld [vmem:[%s3 + $0x14] sm:$0xf]
        %v2342 = vld [vmem:[%s3 + $0x18] sm:$0xf]
        %v2343 = vld [vmem:[%s3 + $0x1c] sm:$0xf]
        %v2344 = vld [vmem:[%s3 + $0x20] sm:$0xf]
        %v2345 = vld [vmem:[%s3 + $0x24] sm:$0xf]
        %v2346 = vld [vmem:[%s3 + $0x28] sm:$0xf]
        %v2347 = vld [vmem:[%s3 + $0x2c] sm:$0xf]
        %v2348 = vld [vmem:[%s3 + $0x30] sm:$0xf]
        %v2349 = vld [vmem:[%s3 + $0x34] sm:$0xf]
        %v2350 = vld [vmem:[%s3 + $0x38] sm:$0xf]
        %v2351 = vld [vmem:[%s3 + $0x3c] sm:$0xf]
        %v2352 = vld [vmem:[%s3 + $0x40] sm:$0xf]
        %v2353 = vld [vmem:[%s3 + $0x44] sm:$0xf]
        %v2354 = vld [vmem:[%s3 + $0x48] sm:$0xf]
        %v2355 = vld [vmem:[%s3 + $0x4c] sm:$0xf]
        %v2356 = vld [vmem:[%s3 + $0x50] sm:$0xf]
        %v2357 = vld [vmem:[%s3 + $0x54] sm:$0xf]
        %v2358 = vld [vmem:[%s3 + $0x58] sm:$0xf]
        %v2359 = vld [vmem:[%s3 + $0x5c] sm:$0xf]
        %v2384 = vunpack.c.l.b16 %v2336
        %v2385 = vunpack.c.l.b16 %v2337
        %v2386 = vunpack.c.l.b16 %v2338
        %v2387 = vunpack.c.l.b16 %v2339
        %v2388 = vunpack.c.l.b16 %v2340
        %v2389 = vunpack.c.l.b16 %v2341
        %v2390 = vunpack.c.l.b16 %v2342
        %v2391 = vunpack.c.l.b16 %v2343
        %v2392 = vunpack.c.l.b16 %v2344
        %v2393 = vunpack.c.l.b16 %v2345
        %v2394 = vunpack.c.l.b16 %v2346
        %v2395 = vunpack.c.l.b16 %v2347
        %v2396 = vunpack.c.l.b16 %v2348
        %v2397 = vunpack.c.l.b16 %v2349
        %v2398 = vunpack.c.l.b16 %v2350
        %v2399 = vunpack.c.l.b16 %v2351
        %v2400 = vunpack.c.l.b16 %v2352
        %v2401 = vunpack.c.l.b16 %v2353
        %v2402 = vunpack.c.l.b16 %v2354
        %v2403 = vunpack.c.l.b16 %v2355
        %v2404 = vunpack.c.l.b16 %v2356
        %v2405 = vunpack.c.l.b16 %v2357
        %v2406 = vunpack.c.l.b16 %v2358
        %v2407 = vunpack.c.l.b16 %v2359
        %v2408 = vpack.c.b16 %v2385, %v2384
        %v2409 = vpack.c.b16 %v2387, %v2386
        %v2410 = vpack.c.b16 %v2389, %v2388
        %v2411 = vpack.c.b16 %v2391, %v2390
        %v2412 = vpack.c.b16 %v2393, %v2392
        %v2413 = vpack.c.b16 %v2395, %v2394
        %v2414 = vpack.c.b16 %v2397, %v2396
        %v2415 = vpack.c.b16 %v2399, %v2398
        %v2416 = vpack.c.b16 %v2401, %v2400
        %v2417 = vpack.c.b16 %v2403, %v2402
        %v2418 = vpack.c.b16 %v2405, %v2404
        %v2419 = vpack.c.b16 %v2407, %v2406
        %v2433 = vsel %vm2275, %v2217, 0
        %v2436 = vsel %vm2275, %v2220, 0
        %v2439 = vsel %vm2275, %v2223, 0
        %v2442 = vsel %vm2275, %v2226, 0
        %v2445 = vsel %vm2275, %v2229, 0
        %v2448 = vsel %vm2275, %v2232, 0
        %v2451 = vsel %vm2275, %v2235, 0
        %v2454 = vsel %vm2275, %v2238, 0
        %v2457 = vsel %vm2275, %v2241, 0
        %v2460 = vsel %vm2275, %v2244, 0
        %v2463 = vsel %vm2275, %v2247, 0
        %v2466 = vsel %vm2275, %v2250, 0
        %v2469 = vsel %vm2275, %v2253, 0
        %v2472 = vsel %vm2275, %v2256, 0
        %v2475 = vsel %vm2275, %v2259, 0
        %v2478 = vsel %vm2275, %v2262, 0
        %v2481 = vsel %vm2275, %v2265, 0
        %v2484 = vsel %vm2275, %v2268, 0
        %v2487 = vsel %vm2275, %v2271, 0
        %v2490 = vsel %vm2275, %v2274, 0
        %2492 = vmatprep.subr.bf16.mxu0 0
        %2493 = vmatpush1.bf16.msra.mxu0 %v2408
        %2494 = vmatprep.subr.bf16.mxu0 0
        %2495 = vmatpush1.bf16.msra.mxu0 %v2409
        %2496 = vmatprep.subr.bf16.mxu0 0
        %2497 = vmatpush1.bf16.msra.mxu0 %v2410
        %2498 = vmatprep.subr.bf16.mxu0 0
        %2499 = vmatpush1.bf16.msra.mxu0 %v2411
        %2500 = vmatprep.subr.bf16.mxu0 0
        %2501 = vmatpush1.bf16.msra.mxu0 %v2412
        %2502 = vmatprep.subr.bf16.mxu0 0
        %2503 = vmatpush1.bf16.msra.mxu0 %v2413
        %2504 = vmatprep.subr.bf16.mxu0 0
        %2505 = vmatpush1.bf16.msra.mxu0 %v2414
        %2506 = vmatprep.subr.bf16.mxu0 0
        %2507 = vmatpush1.bf16.msra.mxu0 %v2415
        %2508 = vmatprep.subr.bf16.mxu0 0
        %2509 = vmatpush1.bf16.msra.mxu0 %v2416
        %2510 = vmatprep.subr.bf16.mxu0 0
        %2511 = vmatpush1.bf16.msra.mxu0 %v2417
        %2512 = vmatprep.subr.bf16.mxu0 0
        %2513 = vmatpush1.bf16.msra.mxu0 %v2418
        %2514 = vmatprep.subr.bf16.mxu0 0
        %2515 = vmatpush1.bf16.msra.mxu0 %v2419
        %2516 = vmatprep.subr.bf16.mxu0 0
        %2517 = vmatpush1.bf16.msra.mxu0 0
        %2518 = vmatprep.subr.bf16.mxu0 0
        %2519 = vmatpush1.bf16.msra.mxu0 0
        %2520 = vmatprep.subr.bf16.mxu0 0
        %2521 = vmatpush1.bf16.msra.mxu0 0
        %2522 = vmatprep.subr.bf16.mxu0 0
        %2523 = vmatpush1.bf16.msra.mxu0 0
        %2524 = vmatprep.mubr.bf16.mxu0 %v2433
        %2525 = vmatmul.mubr.bf16.gmra.mrb[0].mxu0 %v2277
        %v2526 = vpop.f32.mrb[0].mxu0
        %v2527 = vadd.f32 0.0, %v2526
        %v2528 = vpop.f32.mrb[0].mxu0
        %v2529 = vpop.f32.mrb[0].mxu0
        %v2530 = vadd.f32 0.0, %v2529
        %v2531 = vpop.f32.mrb[0].mxu0
        %2532 = vmatprep.mubr.bf16.mxu0 %v2436
        %2533 = vmatmul.mubr.bf16.gmra.mrb[0].mxu0 %v2280
        %v2534 = vpop.f32.mrb[0].mxu0
        %v2535 = vadd.f32 0.0, %v2534
        %v2536 = vpop.f32.mrb[0].mxu0
        %v2537 = vpop.f32.mrb[0].mxu0
        %v2538 = vadd.f32 0.0, %v2537
        %v2539 = vpop.f32.mrb[0].mxu0
        %2540 = vmatprep.mubr.bf16.mxu0 %v2439
        %2541 = vmatmul.mubr.bf16.gmra.mrb[0].mxu0 %v2283
        %v2542 = vpop.f32.mrb[0].mxu0
        %v2543 = vadd.f32 0.0, %v2542
        %v2544 = vpop.f32.mrb[0].mxu0
        %v2545 = vpop.f32.mrb[0].mxu0
        %v2546 = vadd.f32 0.0, %v2545
        %v2547 = vpop.f32.mrb[0].mxu0
        %2548 = vmatprep.mubr.bf16.mxu0 %v2442
        %2549 = vmatmul.mubr.bf16.gmra.mrb[0].mxu0 %v2286
        %v2550 = vpop.f32.mrb[0].mxu0
        %v2551 = vadd.f32 0.0, %v2550
        %v2552 = vpop.f32.mrb[0].mxu0
        %v2553 = vpop.f32.mrb[0].mxu0
        %v2554 = vadd.f32 0.0, %v2553
        %v2555 = vpop.f32.mrb[0].mxu0
        %2556 = vmatprep.mubr.bf16.mxu0 %v2445
        %2557 = vmatmul.mubr.bf16.gmra.mrb[0].mxu0 %v2289
        %v2558 = vpop.f32.mrb[0].mxu0
        %v2559 = vadd.f32 0.0, %v2558
        %v2560 = vpop.f32.mrb[0].mxu0
        %v2561 = vpop.f32.mrb[0].mxu0
        %v2562 = vadd.f32 0.0, %v2561
        %v2563 = vpop.f32.mrb[0].mxu0
        %2564 = vmatprep.mubr.bf16.mxu0 %v2448
        %2565 = vmatmul.mubr.bf16.gmra.mrb[0].mxu0 %v2292
        %v2566 = vpop.f32.mrb[0].mxu0
        %v2567 = vadd.f32 0.0, %v2566
        %v2568 = vpop.f32.mrb[0].mxu0
        %v2569 = vpop.f32.mrb[0].mxu0
        %v2570 = vadd.f32 0.0, %v2569
        %v2571 = vpop.f32.mrb[0].mxu0
        %2572 = vmatprep.mubr.bf16.mxu0 %v2451
        %2573 = vmatmul.mubr.bf16.gmra.mrb[0].mxu0 %v2295
        %v2574 = vpop.f32.mrb[0].mxu0
        %v2575 = vadd.f32 0.0, %v2574
        %v2576 = vpop.f32.mrb[0].mxu0
        %v2577 = vpop.f32.mrb[0].mxu0
        %v2578 = vadd.f32 0.0, %v2577
        %v2579 = vpop.f32.mrb[0].mxu0
        %2580 = vmatprep.mubr.bf16.mxu0 %v2454
        %2581 = vmatmul.mubr.bf16.gmra.mrb[0].mxu0 %v2298
        %v2582 = vpop.f32.mrb[0].mxu0
        %v2583 = vadd.f32 0.0, %v2582
        %v2584 = vpop.f32.mrb[0].mxu0
        %v2585 = vpop.f32.mrb[0].mxu0
        %v2586 = vadd.f32 0.0, %v2585
        %v2587 = vpop.f32.mrb[0].mxu0
        %2588 = vmatprep.mubr.bf16.mxu0 %v2457
        %2589 = vmatmul.mubr.bf16.gmra.mrb[0].mxu0 %v2301
        %v2590 = vpop.f32.mrb[0].mxu0
        %v2591 = vadd.f32 0.0, %v2590
        %v2592 = vpop.f32.mrb[0].mxu0
        %v2593 = vpop.f32.mrb[0].mxu0
        %v2594 = vadd.f32 0.0, %v2593
        %v2595 = vpop.f32.mrb[0].mxu0
        %2596 = vmatprep.mubr.bf16.mxu0 %v2460
        %2597 = vmatmul.mubr.bf16.gmra.mrb[0].mxu0 %v2304
        %v2598 = vpop.f32.mrb[0].mxu0
        %v2599 = vadd.f32 0.0, %v2598
        %v2600 = vpop.f32.mrb[0].mxu0
        %v2601 = vpop.f32.mrb[0].mxu0
        %v2602 = vadd.f32 0.0, %v2601
        %v2603 = vpop.f32.mrb[0].mxu0
        %2604 = vmatprep.mubr.bf16.mxu0 %v2463
        %2605 = vmatmul.mubr.bf16.gmra.mrb[0].mxu0 %v2307
        %v2606 = vpop.f32.mrb[0].mxu0
        %v2607 = vadd.f32 0.0, %v2606
        %v2608 = vpop.f32.mrb[0].mxu0
        %v2609 = vpop.f32.mrb[0].mxu0
        %v2610 = vadd.f32 0.0, %v2609
        %v2611 = vpop.f32.mrb[0].mxu0
        %2612 = vmatprep.mubr.bf16.mxu0 %v2466
        %2613 = vmatmul.mubr.bf16.gmra.mrb[0].mxu0 %v2310
        %v2614 = vpop.f32.mrb[0].mxu0
        %v2615 = vadd.f32 0.0, %v2614
        %v2616 = vpop.f32.mrb[0].mxu0
        %v2617 = vpop.f32.mrb[0].mxu0
        %v2618 = vadd.f32 0.0, %v2617
        %v2619 = vpop.f32.mrb[0].mxu0
        %2620 = vmatprep.mubr.bf16.mxu0 %v2469
        %2621 = vmatmul.mubr.bf16.gmra.mrb[0].mxu0 %v2313
        %v2622 = vpop.f32.mrb[0].mxu0
        %v2623 = vadd.f32 0.0, %v2622
        %v2624 = vpop.f32.mrb[0].mxu0
        %v2625 = vpop.f32.mrb[0].mxu0
        %v2626 = vadd.f32 0.0, %v2625
        %v2627 = vpop.f32.mrb[0].mxu0
        %2628 = vmatprep.mubr.bf16.mxu0 %v2472
        %2629 = vmatmul.mubr.bf16.gmra.mrb[0].mxu0 %v2316
        %v2630 = vpop.f32.mrb[0].mxu0
        %v2631 = vadd.f32 0.0, %v2630
        %v2632 = vpop.f32.mrb[0].mxu0
        %v2633 = vpop.f32.mrb[0].mxu0
        %v2634 = vadd.f32 0.0, %v2633
        %v2635 = vpop.f32.mrb[0].mxu0
        %2636 = vmatprep.mubr.bf16.mxu0 %v2475
        %2637 = vmatmul.mubr.bf16.gmra.mrb[0].mxu0 %v2319
        %v2638 = vpop.f32.mrb[0].mxu0
        %v2639 = vadd.f32 0.0, %v2638
        %v2640 = vpop.f32.mrb[0].mxu0
        %v2641 = vpop.f32.mrb[0].mxu0
        %v2642 = vadd.f32 0.0, %v2641
        %v2643 = vpop.f32.mrb[0].mxu0
        %2644 = vmatprep.mubr.bf16.mxu0 %v2478
        %2645 = vmatmul.mubr.bf16.gmra.mrb[0].mxu0 %v2322
        %v2646 = vpop.f32.mrb[0].mxu0
        %v2647 = vadd.f32 0.0, %v2646
        %v2648 = vpop.f32.mrb[0].mxu0
        %v2649 = vpop.f32.mrb[0].mxu0
        %v2650 = vadd.f32 0.0, %v2649
        %v2651 = vpop.f32.mrb[0].mxu0
        %2652 = vmatprep.mubr.bf16.mxu0 %v2481
        %2653 = vmatmul.mubr.bf16.gmra.mrb[0].mxu0 %v2325
        %v2654 = vpop.f32.mrb[0].mxu0
        %v2655 = vadd.f32 0.0, %v2654
        %v2656 = vpop.f32.mrb[0].mxu0
        %v2657 = vpop.f32.mrb[0].mxu0
        %v2658 = vadd.f32 0.0, %v2657
        %v2659 = vpop.f32.mrb[0].mxu0
        %2660 = vmatprep.mubr.bf16.mxu0 %v2484
        %2661 = vmatmul.mubr.bf16.gmra.mrb[0].mxu0 %v2328
        %v2662 = vpop.f32.mrb[0].mxu0
        %v2663 = vadd.f32 0.0, %v2662
        %v2664 = vpop.f32.mrb[0].mxu0
        %v2665 = vpop.f32.mrb[0].mxu0
        %v2666 = vadd.f32 0.0, %v2665
        %v2667 = vpop.f32.mrb[0].mxu0
        %2668 = vmatprep.mubr.bf16.mxu0 %v2487
        %2669 = vmatmul.mubr.bf16.gmra.mrb[0].mxu0 %v2331
        %v2670 = vpop.f32.mrb[0].mxu0
        %v2671 = vadd.f32 0.0, %v2670
        %v2672 = vpop.f32.mrb[0].mxu0
        %v2673 = vpop.f32.mrb[0].mxu0
        %v2674 = vadd.f32 0.0, %v2673
        %v2675 = vpop.f32.mrb[0].mxu0
        %2676 = vmatprep.mubr.bf16.mxu0 %v2490
        %2677 = vmatmul.mubr.bf16.gmra.mrb[0].mxu0 %v2334
        %v2678 = vpop.f32.mrb[0].mxu0
        %v2679 = vadd.f32 0.0, %v2678
        %v2680 = vpop.f32.mrb[0].mxu0
        %v2681 = vpop.f32.mrb[0].mxu0
        %v2682 = vadd.f32 0.0, %v2681
        %v2683 = vpop.f32.mrb[0].mxu0
        %2684 = vdwg.mxu0
        %2721 = vrot.lane.b32.xlu0 %v2535, 96
        %v2722 = vpop.permute.xlu0 %2721
        %2723 = vrot.lane.b32.xlu0 %v2538, 96
        %v2724 = vpop.permute.xlu0 %2723
        %2725 = vrot.lane.b32.xlu0 %v2543, 96
        %v2726 = vpop.permute.xlu0 %2725
        %2727 = vrot.lane.b32.xlu0 %v2546, 96
        %v2728 = vpop.permute.xlu0 %2727
        %2729 = vrot.lane.b32.xlu0 %v2551, 96
        %v2730 = vpop.permute.xlu0 %2729
        %2731 = vrot.lane.b32.xlu0 %v2554, 96
        %v2732 = vpop.permute.xlu0 %2731
        %2733 = vrot.lane.b32.xlu0 %v2559, 96
        %v2734 = vpop.permute.xlu0 %2733
        %2735 = vrot.lane.b32.xlu0 %v2562, 96
        %v2736 = vpop.permute.xlu0 %2735
        %2737 = vrot.lane.b32.xlu0 %v2567, 96
        %v2738 = vpop.permute.xlu0 %2737
        %2739 = vrot.lane.b32.xlu0 %v2570, 96
        %v2740 = vpop.permute.xlu0 %2739
        %2741 = vrot.lane.b32.xlu0 %v2575, 96
        %v2742 = vpop.permute.xlu0 %2741
        %2743 = vrot.lane.b32.xlu0 %v2578, 96
        %v2744 = vpop.permute.xlu0 %2743
        %2745 = vrot.lane.b32.xlu0 %v2583, 96
        %v2746 = vpop.permute.xlu0 %2745
        %2747 = vrot.lane.b32.xlu0 %v2586, 96
        %v2748 = vpop.permute.xlu0 %2747
        %2749 = vrot.lane.b32.xlu0 %v2591, 96
        %v2750 = vpop.permute.xlu0 %2749
        %2751 = vrot.lane.b32.xlu0 %v2594, 96
        %v2752 = vpop.permute.xlu0 %2751
        %2753 = vrot.lane.b32.xlu0 %v2599, 96
        %v2754 = vpop.permute.xlu0 %2753
        %2755 = vrot.lane.b32.xlu0 %v2602, 96
        %v2756 = vpop.permute.xlu0 %2755
        %2757 = vrot.lane.b32.xlu0 %v2607, 96
        %v2758 = vpop.permute.xlu0 %2757
        %2759 = vrot.lane.b32.xlu0 %v2610, 96
        %v2760 = vpop.permute.xlu0 %2759
        %2761 = vrot.lane.b32.xlu0 %v2615, 96
        %v2762 = vpop.permute.xlu0 %2761
        %2763 = vrot.lane.b32.xlu0 %v2618, 96
        %v2764 = vpop.permute.xlu0 %2763
        %2765 = vrot.lane.b32.xlu0 %v2623, 96
        %v2766 = vpop.permute.xlu0 %2765
        %2767 = vrot.lane.b32.xlu0 %v2626, 96
        %v2768 = vpop.permute.xlu0 %2767
        %2769 = vrot.lane.b32.xlu0 %v2631, 96
        %v2770 = vpop.permute.xlu0 %2769
        %2771 = vrot.lane.b32.xlu0 %v2634, 96
        %v2772 = vpop.permute.xlu0 %2771
        %2773 = vrot.lane.b32.xlu0 %v2639, 96
        %v2774 = vpop.permute.xlu0 %2773
        %2775 = vrot.lane.b32.xlu0 %v2642, 96
        %v2776 = vpop.permute.xlu0 %2775
        %2777 = vrot.lane.b32.xlu0 %v2647, 96
        %v2778 = vpop.permute.xlu0 %2777
        %2779 = vrot.lane.b32.xlu0 %v2650, 96
        %v2780 = vpop.permute.xlu0 %2779
        %2781 = vrot.lane.b32.xlu0 %v2655, 96
        %v2782 = vpop.permute.xlu0 %2781
        %2783 = vrot.lane.b32.xlu0 %v2658, 96
        %v2784 = vpop.permute.xlu0 %2783
        %2785 = vrot.lane.b32.xlu0 %v2663, 96
        %v2786 = vpop.permute.xlu0 %2785
        %2787 = vrot.lane.b32.xlu0 %v2666, 96
        %v2788 = vpop.permute.xlu0 %2787
        %2789 = vrot.lane.b32.xlu0 %v2671, 96
        %v2790 = vpop.permute.xlu0 %2789
        %2791 = vrot.lane.b32.xlu0 %v2674, 96
        %v2792 = vpop.permute.xlu0 %2791
        %v2829 = vadd.f32 %v2527, %v2722
        %v2830 = vadd.f32 %v2530, %v2724
        %v2831 = vadd.f32 %v2535, %v2726
        %v2832 = vadd.f32 %v2538, %v2728
        %v2833 = vadd.f32 %v2543, %v2730
        %v2834 = vadd.f32 %v2546, %v2732
        %v2835 = vadd.f32 %v2551, %v2734
        %v2836 = vadd.f32 %v2554, %v2736
        %v2837 = vadd.f32 %v2559, %v2738
        %v2838 = vadd.f32 %v2562, %v2740
        %v2839 = vadd.f32 %v2567, %v2742
        %v2840 = vadd.f32 %v2570, %v2744
        %v2841 = vadd.f32 %v2575, %v2746
        %v2842 = vadd.f32 %v2578, %v2748
        %v2843 = vadd.f32 %v2583, %v2750
        %v2844 = vadd.f32 %v2586, %v2752
        %v2845 = vadd.f32 %v2591, %v2754
        %v2846 = vadd.f32 %v2594, %v2756
        %v2847 = vadd.f32 %v2599, %v2758
        %v2848 = vadd.f32 %v2602, %v2760
        %v2849 = vadd.f32 %v2607, %v2762
        %v2850 = vadd.f32 %v2610, %v2764
        %v2851 = vadd.f32 %v2615, %v2766
        %v2852 = vadd.f32 %v2618, %v2768
        %v2853 = vadd.f32 %v2623, %v2770
        %v2854 = vadd.f32 %v2626, %v2772
        %v2855 = vadd.f32 %v2631, %v2774
        %v2856 = vadd.f32 %v2634, %v2776
        %v2857 = vadd.f32 %v2639, %v2778
        %v2858 = vadd.f32 %v2642, %v2780
        %v2859 = vadd.f32 %v2647, %v2782
        %v2860 = vadd.f32 %v2650, %v2784
        %v2861 = vadd.f32 %v2655, %v2786
        %v2862 = vadd.f32 %v2658, %v2788
        %v2863 = vadd.f32 %v2663, %v2790
        %v2864 = vadd.f32 %v2666, %v2792
        %2867 = vrot.lane.b32.xlu0 %v2543, 64
        %v2868 = vpop.permute.xlu0 %2867
        %2869 = vrot.lane.b32.xlu0 %v2546, 64
        %v2870 = vpop.permute.xlu0 %2869
        %2871 = vrot.lane.b32.xlu0 %v2551, 64
        %v2872 = vpop.permute.xlu0 %2871
        %2873 = vrot.lane.b32.xlu0 %v2554, 64
        %v2874 = vpop.permute.xlu0 %2873
        %2875 = vrot.lane.b32.xlu0 %v2559, 64
        %v2876 = vpop.permute.xlu0 %2875
        %2877 = vrot.lane.b32.xlu0 %v2562, 64
        %v2878 = vpop.permute.xlu0 %2877
        %2879 = vrot.lane.b32.xlu0 %v2567, 64
        %v2880 = vpop.permute.xlu0 %2879
        %2881 = vrot.lane.b32.xlu0 %v2570, 64
        %v2882 = vpop.permute.xlu0 %2881
        %2883 = vrot.lane.b32.xlu0 %v2575, 64
        %v2884 = vpop.permute.xlu0 %2883
        %2885 = vrot.lane.b32.xlu0 %v2578, 64
        %v2886 = vpop.permute.xlu0 %2885
        %2887 = vrot.lane.b32.xlu0 %v2583, 64
        %v2888 = vpop.permute.xlu0 %2887
        %2889 = vrot.lane.b32.xlu0 %v2586, 64
        %v2890 = vpop.permute.xlu0 %2889
        %2891 = vrot.lane.b32.xlu0 %v2591, 64
        %v2892 = vpop.permute.xlu0 %2891
        %2893 = vrot.lane.b32.xlu0 %v2594, 64
        %v2894 = vpop.permute.xlu0 %2893
        %2895 = vrot.lane.b32.xlu0 %v2599, 64
        %v2896 = vpop.permute.xlu0 %2895
        %2897 = vrot.lane.b32.xlu0 %v2602, 64
        %v2898 = vpop.permute.xlu0 %2897
        %2899 = vrot.lane.b32.xlu0 %v2607, 64
        %v2900 = vpop.permute.xlu0 %2899
        %2901 = vrot.lane.b32.xlu0 %v2610, 64
        %v2902 = vpop.permute.xlu0 %2901
        %2903 = vrot.lane.b32.xlu0 %v2615, 64
        %v2904 = vpop.permute.xlu0 %2903
        %2905 = vrot.lane.b32.xlu0 %v2618, 64
        %v2906 = vpop.permute.xlu0 %2905
        %2907 = vrot.lane.b32.xlu0 %v2623, 64
        %v2908 = vpop.permute.xlu0 %2907
        %2909 = vrot.lane.b32.xlu0 %v2626, 64
        %v2910 = vpop.permute.xlu0 %2909
        %2911 = vrot.lane.b32.xlu0 %v2631, 64
        %v2912 = vpop.permute.xlu0 %2911
        %2913 = vrot.lane.b32.xlu0 %v2634, 64
        %v2914 = vpop.permute.xlu0 %2913
        %2915 = vrot.lane.b32.xlu0 %v2639, 64
        %v2916 = vpop.permute.xlu0 %2915
        %2917 = vrot.lane.b32.xlu0 %v2642, 64
        %v2918 = vpop.permute.xlu0 %2917
        %2919 = vrot.lane.b32.xlu0 %v2647, 64
        %v2920 = vpop.permute.xlu0 %2919
        %2921 = vrot.lane.b32.xlu0 %v2650, 64
        %v2922 = vpop.permute.xlu0 %2921
        %2923 = vrot.lane.b32.xlu0 %v2655, 64
        %v2924 = vpop.permute.xlu0 %2923
        %2925 = vrot.lane.b32.xlu0 %v2658, 64
        %v2926 = vpop.permute.xlu0 %2925
        %2927 = vrot.lane.b32.xlu0 %v2663, 64
        %v2928 = vpop.permute.xlu0 %2927
        %2929 = vrot.lane.b32.xlu0 %v2666, 64
        %v2930 = vpop.permute.xlu0 %2929
        %2931 = vrot.lane.b32.xlu0 %v2671, 64
        %v2932 = vpop.permute.xlu0 %2931
        %2933 = vrot.lane.b32.xlu0 %v2674, 64
        %v2934 = vpop.permute.xlu0 %2933
        %2935 = vrot.lane.b32.xlu0 %v2679, 64
        %v2936 = vpop.permute.xlu0 %2935
        %2937 = vrot.lane.b32.xlu0 %v2682, 64
        %v2938 = vpop.permute.xlu0 %2937
        %v2975 = vadd.f32 %v2829, %v2868
        %v2976 = vadd.f32 %v2830, %v2870
        %v2977 = vadd.f32 %v2831, %v2872
        %v2978 = vadd.f32 %v2832, %v2874
        %v2979 = vadd.f32 %v2833, %v2876
        %v2980 = vadd.f32 %v2834, %v2878
        %v2981 = vadd.f32 %v2835, %v2880
        %v2982 = vadd.f32 %v2836, %v2882
        %v2983 = vadd.f32 %v2837, %v2884
        %v2984 = vadd.f32 %v2838, %v2886
        %v2985 = vadd.f32 %v2839, %v2888
        %v2986 = vadd.f32 %v2840, %v2890
        %v2987 = vadd.f32 %v2841, %v2892
        %v2988 = vadd.f32 %v2842, %v2894
        %v2989 = vadd.f32 %v2843, %v2896
        %v2990 = vadd.f32 %v2844, %v2898
        %v2991 = vadd.f32 %v2845, %v2900
        %v2992 = vadd.f32 %v2846, %v2902
        %v2993 = vadd.f32 %v2847, %v2904
        %v2994 = vadd.f32 %v2848, %v2906
        %v2995 = vadd.f32 %v2849, %v2908
        %v2996 = vadd.f32 %v2850, %v2910
        %v2997 = vadd.f32 %v2851, %v2912
        %v2998 = vadd.f32 %v2852, %v2914
        %v2999 = vadd.f32 %v2853, %v2916
        %v3000 = vadd.f32 %v2854, %v2918
        %v3001 = vadd.f32 %v2855, %v2920
        %v3002 = vadd.f32 %v2856, %v2922
        %v3003 = vadd.f32 %v2857, %v2924
        %v3004 = vadd.f32 %v2858, %v2926
        %v3005 = vadd.f32 %v2859, %v2928
        %v3006 = vadd.f32 %v2860, %v2930
        %v3007 = vadd.f32 %v2861, %v2932
        %v3008 = vadd.f32 %v2862, %v2934
        %v3009 = vadd.f32 %v2863, %v2936
        %v3010 = vadd.f32 %v2864, %v2938
        %v3011 = vld [vmem:[%s4] sm:$0x1]
        %v3013 = vlaneseq
        %v3014 = vshrl.u32 %v3013, 7
        %v3015 = vsub.s32 0, %v3014
        %v3016 = vrot.slane %v3011, %v3015
        %v3018 = vadd.f32 %v2975, %v3016
        %v3019 = vadd.f32 %v2976, %v3016
        %v3020 = vadd.f32 %v2977, %v3016
        %v3021 = vadd.f32 %v2978, %v3016
        %v3022 = vadd.f32 %v2979, %v3016
        %v3023 = vadd.f32 %v2980, %v3016
        %v3024 = vadd.f32 %v2981, %v3016
        %v3025 = vadd.f32 %v2982, %v3016
        %v3026 = vadd.f32 %v2983, %v3016
        %v3027 = vadd.f32 %v2984, %v3016
        %v3028 = vadd.f32 %v2985, %v3016
        %v3029 = vadd.f32 %v2986, %v3016
        %v3030 = vadd.f32 %v2987, %v3016
        %v3031 = vadd.f32 %v2988, %v3016
        %v3032 = vadd.f32 %v2989, %v3016
        %v3033 = vadd.f32 %v2990, %v3016
        %v3034 = vadd.f32 %v2991, %v3016
        %v3035 = vadd.f32 %v2992, %v3016
        %v3036 = vadd.f32 %v2993, %v3016
        %v3037 = vadd.f32 %v2994, %v3016
        %v3038 = vadd.f32 %v2995, %v3016
        %v3039 = vadd.f32 %v2996, %v3016
        %v3040 = vadd.f32 %v2997, %v3016
        %v3041 = vadd.f32 %v2998, %v3016
        %v3042 = vadd.f32 %v2999, %v3016
        %v3043 = vadd.f32 %v3000, %v3016
        %v3044 = vadd.f32 %v3001, %v3016
        %v3045 = vadd.f32 %v3002, %v3016
        %v3046 = vadd.f32 %v3003, %v3016
        %v3047 = vadd.f32 %v3004, %v3016
        %v3048 = vadd.f32 %v3005, %v3016
        %v3049 = vadd.f32 %v3006, %v3016
        %v3050 = vadd.f32 %v3007, %v3016
        %v3051 = vadd.f32 %v3008, %v3016
        %v3052 = vadd.f32 %v3009, %v3016
        %v3053 = vadd.f32 %v3010, %v3016
        %v3054 = vtanh.pop %v3018
        %v3055 = vtanh.pop %v3019
        %v3056 = vtanh.pop %v3020
        %v3057 = vtanh.pop %v3021
        %v3058 = vtanh.pop %v3022
        %v3059 = vtanh.pop %v3023
        %v3060 = vtanh.pop %v3024
        %v3061 = vtanh.pop %v3025
        %v3062 = vtanh.pop %v3026
        %v3063 = vtanh.pop %v3027
        %v3064 = vtanh.pop %v3028
        %v3065 = vtanh.pop %v3029
        %v3066 = vtanh.pop %v3030
        %v3067 = vtanh.pop %v3031
        %v3068 = vtanh.pop %v3032
        %v3069 = vtanh.pop %v3033
        %v3070 = vtanh.pop %v3034
        %v3071 = vtanh.pop %v3035
        %v3072 = vtanh.pop %v3036
        %v3073 = vtanh.pop %v3037
        %v3074 = vtanh.pop %v3038
        %v3075 = vtanh.pop %v3039
        %v3076 = vtanh.pop %v3040
        %v3077 = vtanh.pop %v3041
        %v3078 = vtanh.pop %v3042
        %v3079 = vtanh.pop %v3043
        %v3080 = vtanh.pop %v3044
        %v3081 = vtanh.pop %v3045
        %v3082 = vtanh.pop %v3046
        %v3083 = vtanh.pop %v3047
        %v3084 = vtanh.pop %v3048
        %v3085 = vtanh.pop %v3049
        %v3086 = vtanh.pop %v3050
        %v3087 = vtanh.pop %v3051
        %v3088 = vtanh.pop %v3052
        %v3089 = vtanh.pop %v3053
        %s3090 = ssub.s32 %s293, 1
        %v3091 = vstv %s3090
        %v3092 = vadd.s32 %v3091, 1
        %v3093 = vadd.s32 %v3091, 2
        %v3094 = vadd.s32 %v3091, 3
        %v3095 = vadd.s32 %v3091, 4
        %v3096 = vadd.s32 %v3091, 5
        %v3097 = vadd.s32 %v3091, 6
        %v3098 = vadd.s32 %v3091, 7
        %v3099 = vadd.s32 %v3091, 8
        %v3100 = vadd.s32 %v3091, 9
        %v3101 = vadd.s32 %v3091, 10
        %v3102 = vadd.s32 %v3091, 11
        %v3103 = vadd.s32 %v3091, 12
        %v3104 = vadd.s32 %v3091, 13
        %v3105 = vadd.s32 %v3091, 14
        %v3106 = vadd.s32 %v3091, 15
        %v3107 = vadd.s32 %v3091, 16
        %v3108 = vadd.s32 %v3091, 17
        %vm3109 = vcmp.ge.s32.totalorder %v3091, 0
        %vm3110 = vcmp.ge.s32.totalorder %v3092, 0
        %vm3111 = vcmp.ge.s32.totalorder %v3093, 0
        %vm3112 = vcmp.ge.s32.totalorder %v3094, 0
        %vm3113 = vcmp.ge.s32.totalorder %v3095, 0
        %vm3114 = vcmp.ge.s32.totalorder %v3096, 0
        %vm3115 = vcmp.ge.s32.totalorder %v3097, 0
        %vm3116 = vcmp.ge.s32.totalorder %v3098, 0
        %vm3117 = vcmp.ge.s32.totalorder %v3099, 0
        %vm3118 = vcmp.ge.s32.totalorder %v3100, 0
        %vm3119 = vcmp.ge.s32.totalorder %v3101, 0
        %vm3120 = vcmp.ge.s32.totalorder %v3102, 0
        %vm3121 = vcmp.ge.s32.totalorder %v3103, 0
        %vm3122 = vcmp.ge.s32.totalorder %v3104, 0
        %vm3123 = vcmp.ge.s32.totalorder %v3105, 0
        %vm3124 = vcmp.ge.s32.totalorder %v3106, 0
        %vm3125 = vcmp.ge.s32.totalorder %v3107, 0
        %vm3126 = vcmp.ge.s32.totalorder %v3108, 0
        %vm3127 = vcmp.lt.s32.totalorder %v3091, 16
        %vm3128 = vcmp.lt.s32.totalorder %v3092, 16
        %vm3129 = vcmp.lt.s32.totalorder %v3093, 16
        %vm3130 = vcmp.lt.s32.totalorder %v3094, 16
        %vm3131 = vcmp.lt.s32.totalorder %v3095, 16
        %vm3132 = vcmp.lt.s32.totalorder %v3096, 16
        %vm3133 = vcmp.lt.s32.totalorder %v3097, 16
        %vm3134 = vcmp.lt.s32.totalorder %v3098, 16
        %vm3135 = vcmp.lt.s32.totalorder %v3099, 16
        %vm3136 = vcmp.lt.s32.totalorder %v3100, 16
        %vm3137 = vcmp.lt.s32.totalorder %v3101, 16
        %vm3138 = vcmp.lt.s32.totalorder %v3102, 16
        %vm3139 = vcmp.lt.s32.totalorder %v3103, 16
        %vm3140 = vcmp.lt.s32.totalorder %v3104, 16
        %vm3141 = vcmp.lt.s32.totalorder %v3105, 16
        %vm3142 = vcmp.lt.s32.totalorder %v3106, 16
        %vm3143 = vcmp.lt.s32.totalorder %v3107, 16
        %vm3144 = vcmp.lt.s32.totalorder %v3108, 16
        %vm3145 = vmand %vm3109, %vm3127
        %vm3146 = vmand %vm3110, %vm3128
        %vm3147 = vmand %vm3111, %vm3129
        %vm3148 = vmand %vm3112, %vm3130
        %vm3149 = vmand %vm3113, %vm3131
        %vm3150 = vmand %vm3114, %vm3132
        %vm3151 = vmand %vm3115, %vm3133
        %vm3152 = vmand %vm3116, %vm3134
        %vm3153 = vmand %vm3117, %vm3135
        %vm3154 = vmand %vm3118, %vm3136
        %vm3155 = vmand %vm3119, %vm3137
        %vm3156 = vmand %vm3120, %vm3138
        %vm3157 = vmand %vm3121, %vm3139
        %vm3158 = vmand %vm3122, %vm3140
        %vm3159 = vmand %vm3123, %vm3141
        %vm3160 = vmand %vm3124, %vm3142
        %vm3161 = vmand %vm3125, %vm3143
        %vm3162 = vmand %vm3126, %vm3144
        %v3163 = vsel %vm3145, 1, 0
        %v3164 = vsel %vm3146, 1, 0
        %v3165 = vsel %vm3147, 1, 0
        %v3166 = vsel %vm3148, 1, 0
        %v3167 = vsel %vm3149, 1, 0
        %v3168 = vsel %vm3150, 1, 0
        %v3169 = vsel %vm3151, 1, 0
        %v3170 = vsel %vm3152, 1, 0
        %v3171 = vsel %vm3153, 1, 0
        %v3172 = vsel %vm3154, 1, 0
        %v3173 = vsel %vm3155, 1, 0
        %v3174 = vsel %vm3156, 1, 0
        %v3175 = vsel %vm3157, 1, 0
        %v3176 = vsel %vm3158, 1, 0
        %v3177 = vsel %vm3159, 1, 0
        %v3178 = vsel %vm3160, 1, 0
        %v3179 = vsel %vm3161, 1, 0
        %v3180 = vsel %vm3162, 1, 0
        %vm3181 = vcmp.eq.s32.totalorder %v3163, 1
        %vm3182 = vcmp.eq.s32.totalorder %v3164, 1
        %vm3183 = vcmp.eq.s32.totalorder %v3165, 1
        %vm3184 = vcmp.eq.s32.totalorder %v3166, 1
        %vm3185 = vcmp.eq.s32.totalorder %v3167, 1
        %vm3186 = vcmp.eq.s32.totalorder %v3168, 1
        %vm3187 = vcmp.eq.s32.totalorder %v3169, 1
        %vm3188 = vcmp.eq.s32.totalorder %v3170, 1
        %vm3189 = vcmp.eq.s32.totalorder %v3171, 1
        %vm3190 = vcmp.eq.s32.totalorder %v3172, 1
        %vm3191 = vcmp.eq.s32.totalorder %v3173, 1
        %vm3192 = vcmp.eq.s32.totalorder %v3174, 1
        %vm3193 = vcmp.eq.s32.totalorder %v3175, 1
        %vm3194 = vcmp.eq.s32.totalorder %v3176, 1
        %vm3195 = vcmp.eq.s32.totalorder %v3177, 1
        %vm3196 = vcmp.eq.s32.totalorder %v3178, 1
        %vm3197 = vcmp.eq.s32.totalorder %v3179, 1
        %vm3198 = vcmp.eq.s32.totalorder %v3180, 1
        %v3199 = vsel %vm3181, %v3054, 0.0
        %v3200 = vsel %vm3181, %v3055, 0.0
        %v3201 = vsel %vm3182, %v3056, 0.0
        %v3202 = vsel %vm3182, %v3057, 0.0
        %v3203 = vsel %vm3183, %v3058, 0.0
        %v3204 = vsel %vm3183, %v3059, 0.0
        %v3205 = vsel %vm3184, %v3060, 0.0
        %v3206 = vsel %vm3184, %v3061, 0.0
        %v3207 = vsel %vm3185, %v3062, 0.0
        %v3208 = vsel %vm3185, %v3063, 0.0
        %v3209 = vsel %vm3186, %v3064, 0.0
        %v3210 = vsel %vm3186, %v3065, 0.0
        %v3211 = vsel %vm3187, %v3066, 0.0
        %v3212 = vsel %vm3187, %v3067, 0.0
        %v3213 = vsel %vm3188, %v3068, 0.0
        %v3214 = vsel %vm3188, %v3069, 0.0
        %v3215 = vsel %vm3189, %v3070, 0.0
        %v3216 = vsel %vm3189, %v3071, 0.0
        %v3217 = vsel %vm3190, %v3072, 0.0
        %v3218 = vsel %vm3190, %v3073, 0.0
        %v3219 = vsel %vm3191, %v3074, 0.0
        %v3220 = vsel %vm3191, %v3075, 0.0
        %v3221 = vsel %vm3192, %v3076, 0.0
        %v3222 = vsel %vm3192, %v3077, 0.0
        %v3223 = vsel %vm3193, %v3078, 0.0
        %v3224 = vsel %vm3193, %v3079, 0.0
        %v3225 = vsel %vm3194, %v3080, 0.0
        %v3226 = vsel %vm3194, %v3081, 0.0
        %v3227 = vsel %vm3195, %v3082, 0.0
        %v3228 = vsel %vm3195, %v3083, 0.0
        %v3229 = vsel %vm3196, %v3084, 0.0
        %v3230 = vsel %vm3196, %v3085, 0.0
        %v3231 = vsel %vm3197, %v3086, 0.0
        %v3232 = vsel %vm3197, %v3087, 0.0
        %v3233 = vsel %vm3198, %v3088, 0.0
        %v3234 = vsel %vm3198, %v3089, 0.0
        %v3235 = vpack.c.bf16 %v3200, %v3199
        %v3236 = vpack.c.bf16 %v3202, %v3201
        %v3237 = vpack.c.bf16 %v3204, %v3203
        %v3238 = vpack.c.bf16 %v3206, %v3205
        %v3239 = vpack.c.bf16 %v3208, %v3207
        %v3240 = vpack.c.bf16 %v3210, %v3209
        %v3241 = vpack.c.bf16 %v3212, %v3211
        %v3242 = vpack.c.bf16 %v3214, %v3213
        %v3243 = vpack.c.bf16 %v3216, %v3215
        %v3244 = vpack.c.bf16 %v3218, %v3217
        %v3245 = vpack.c.bf16 %v3220, %v3219
        %v3246 = vpack.c.bf16 %v3222, %v3221
        %v3247 = vpack.c.bf16 %v3224, %v3223
        %v3248 = vpack.c.bf16 %v3226, %v3225
        %v3249 = vpack.c.bf16 %v3228, %v3227
        %v3250 = vpack.c.bf16 %v3230, %v3229
        %v3251 = vpack.c.bf16 %v3232, %v3231
        %v3252 = vpack.c.bf16 %v3234, %v3233
        %v3271 = vunpack.c.l.b16 %v3235
        %v3272 = vunpack.c.h.b16 %v3235
        %v3273 = vunpack.c.l.b16 %v3236
        %v3274 = vunpack.c.h.b16 %v3236
        %v3275 = vunpack.c.l.b16 %v3237
        %v3276 = vunpack.c.h.b16 %v3237
        %v3277 = vunpack.c.l.b16 %v3238
        %v3278 = vunpack.c.h.b16 %v3238
        %v3279 = vunpack.c.l.b16 %v3239
        %v3280 = vunpack.c.h.b16 %v3239
        %v3281 = vunpack.c.l.b16 %v3240
        %v3282 = vunpack.c.h.b16 %v3240
        %v3283 = vunpack.c.l.b16 %v3241
        %v3284 = vunpack.c.h.b16 %v3241
        %v3285 = vunpack.c.l.b16 %v3242
        %v3286 = vunpack.c.h.b16 %v3242
        %v3287 = vunpack.c.l.b16 %v3243
        %v3288 = vunpack.c.h.b16 %v3243
        %v3289 = vunpack.c.l.b16 %v3244
        %v3290 = vunpack.c.h.b16 %v3244
        %v3291 = vunpack.c.l.b16 %v3245
        %v3292 = vunpack.c.h.b16 %v3245
        %v3293 = vunpack.c.l.b16 %v3246
        %v3294 = vunpack.c.h.b16 %v3246
        %v3295 = vunpack.c.l.b16 %v3247
        %v3296 = vunpack.c.h.b16 %v3247
        %v3297 = vunpack.c.l.b16 %v3248
        %v3298 = vunpack.c.h.b16 %v3248
        %v3299 = vunpack.c.l.b16 %v3249
        %v3300 = vunpack.c.h.b16 %v3249
        %v3301 = vunpack.c.l.b16 %v3250
        %v3302 = vunpack.c.h.b16 %v3250
        %v3303 = vunpack.c.l.b16 %v3251
        %v3304 = vunpack.c.h.b16 %v3251
        %v3305 = vunpack.c.l.b16 %v3252
        %v3306 = vunpack.c.h.b16 %v3252
        %v3307 = vpack.c.b16 %v3271, %v3271
        %v3308 = vpack.c.b16 %v3272, %v3272
        %v3309 = vpack.c.b16 %v3273, %v3273
        %v3310 = vpack.c.b16 %v3274, %v3274
        %v3311 = vpack.c.b16 %v3275, %v3275
        %v3312 = vpack.c.b16 %v3276, %v3276
        %v3313 = vpack.c.b16 %v3277, %v3277
        %v3314 = vpack.c.b16 %v3278, %v3278
        %v3315 = vpack.c.b16 %v3279, %v3279
        %v3316 = vpack.c.b16 %v3280, %v3280
        %v3317 = vpack.c.b16 %v3281, %v3281
        %v3318 = vpack.c.b16 %v3282, %v3282
        %v3319 = vpack.c.b16 %v3283, %v3283
        %v3320 = vpack.c.b16 %v3284, %v3284
        %v3321 = vpack.c.b16 %v3285, %v3285
        %v3322 = vpack.c.b16 %v3286, %v3286
        %v3323 = vpack.c.b16 %v3287, %v3287
        %v3324 = vpack.c.b16 %v3288, %v3288
        %v3325 = vpack.c.b16 %v3289, %v3289
        %v3326 = vpack.c.b16 %v3290, %v3290
        %v3327 = vpack.c.b16 %v3291, %v3291
        %v3328 = vpack.c.b16 %v3292, %v3292
        %v3329 = vpack.c.b16 %v3293, %v3293
        %v3330 = vpack.c.b16 %v3294, %v3294
        %v3331 = vpack.c.b16 %v3295, %v3295
        %v3332 = vpack.c.b16 %v3296, %v3296
        %v3333 = vpack.c.b16 %v3297, %v3297
        %v3334 = vpack.c.b16 %v3298, %v3298
        %v3335 = vpack.c.b16 %v3299, %v3299
        %v3336 = vpack.c.b16 %v3300, %v3300
        %v3337 = vpack.c.b16 %v3301, %v3301
        %v3338 = vpack.c.b16 %v3302, %v3302
        %v3339 = vpack.c.b16 %v3303, %v3303
        %v3340 = vpack.c.b16 %v3304, %v3304
        %v3341 = vpack.c.b16 %v3305, %v3305
        %v3342 = vpack.c.b16 %v3306, %v3306
        %v3344 = vshrl.u32 %v3307, 16
        %v3346 = vrot.slane %v3344, 7
        %v3347 = vshll.u32 %v3307, 16
        %v3349 = vor.u32 %v3346, %v3347
        %v3350 = vrot.slane %v3346, 4
        %v3352 = vshrl.u32 %v3308, 16
        %v3354 = vrot.slane %v3352, 7
        %v3355 = vshll.u32 %v3308, 16
        %v3357 = vor.u32 %v3354, %v3355
        %v3358 = vsel %vm1045, %v3350, %v3357
        %v3359 = vrot.slane %v3354, 4
        %v3361 = vshrl.u32 %v3309, 16
        %v3363 = vrot.slane %v3361, 7
        %v3364 = vshll.u32 %v3309, 16
        %v3366 = vor.u32 %v3363, %v3364
        %v3367 = vrot.slane %v3363, 4
        %v3369 = vshrl.u32 %v3310, 16
        %v3371 = vrot.slane %v3369, 7
        %v3372 = vshll.u32 %v3310, 16
        %v3374 = vor.u32 %v3371, %v3372
        %v3375 = vsel %vm1045, %v3367, %v3374
        %v3376 = vrot.slane %v3371, 4
        %v3378 = vshrl.u32 %v3311, 16
        %v3380 = vrot.slane %v3378, 7
        %v3381 = vshll.u32 %v3311, 16
        %v3383 = vor.u32 %v3380, %v3381
        %v3384 = vrot.slane %v3380, 4
        %v3386 = vshrl.u32 %v3312, 16
        %v3388 = vrot.slane %v3386, 7
        %v3389 = vshll.u32 %v3312, 16
        %v3391 = vor.u32 %v3388, %v3389
        %v3392 = vsel %vm1045, %v3384, %v3391
        %v3393 = vrot.slane %v3388, 4
        %v3395 = vshrl.u32 %v3313, 16
        %v3397 = vrot.slane %v3395, 7
        %v3398 = vshll.u32 %v3313, 16
        %v3400 = vor.u32 %v3397, %v3398
        %v3401 = vrot.slane %v3397, 4
        %v3403 = vshrl.u32 %v3314, 16
        %v3405 = vrot.slane %v3403, 7
        %v3406 = vshll.u32 %v3314, 16
        %v3408 = vor.u32 %v3405, %v3406
        %v3409 = vsel %vm1045, %v3401, %v3408
        %v3410 = vrot.slane %v3405, 4
        %v3412 = vshrl.u32 %v3315, 16
        %v3414 = vrot.slane %v3412, 7
        %v3415 = vshll.u32 %v3315, 16
        %v3417 = vor.u32 %v3414, %v3415
        %v3418 = vrot.slane %v3414, 4
        %v3420 = vshrl.u32 %v3316, 16
        %v3422 = vrot.slane %v3420, 7
        %v3423 = vshll.u32 %v3316, 16
        %v3425 = vor.u32 %v3422, %v3423
        %v3426 = vsel %vm1045, %v3418, %v3425
        %v3427 = vrot.slane %v3422, 4
        %v3429 = vshrl.u32 %v3317, 16
        %v3431 = vrot.slane %v3429, 7
        %v3432 = vshll.u32 %v3317, 16
        %v3434 = vor.u32 %v3431, %v3432
        %v3435 = vrot.slane %v3431, 4
        %v3437 = vshrl.u32 %v3318, 16
        %v3439 = vrot.slane %v3437, 7
        %v3440 = vshll.u32 %v3318, 16
        %v3442 = vor.u32 %v3439, %v3440
        %v3443 = vsel %vm1045, %v3435, %v3442
        %v3444 = vrot.slane %v3439, 4
        %v3446 = vshrl.u32 %v3319, 16
        %v3448 = vrot.slane %v3446, 7
        %v3449 = vshll.u32 %v3319, 16
        %v3451 = vor.u32 %v3448, %v3449
        %v3452 = vrot.slane %v3448, 4
        %v3454 = vshrl.u32 %v3320, 16
        %v3456 = vrot.slane %v3454, 7
        %v3457 = vshll.u32 %v3320, 16
        %v3459 = vor.u32 %v3456, %v3457
        %v3460 = vsel %vm1045, %v3452, %v3459
        %v3461 = vrot.slane %v3456, 4
        %v3463 = vshrl.u32 %v3321, 16
        %v3465 = vrot.slane %v3463, 7
        %v3466 = vshll.u32 %v3321, 16
        %v3468 = vor.u32 %v3465, %v3466
        %v3469 = vrot.slane %v3465, 4
        %v3471 = vshrl.u32 %v3322, 16
        %v3473 = vrot.slane %v3471, 7
        %v3474 = vshll.u32 %v3322, 16
        %v3476 = vor.u32 %v3473, %v3474
        %v3477 = vsel %vm1045, %v3469, %v3476
        %v3478 = vrot.slane %v3473, 4
        %v3480 = vshrl.u32 %v3323, 16
        %v3482 = vrot.slane %v3480, 7
        %v3483 = vshll.u32 %v3323, 16
        %v3485 = vor.u32 %v3482, %v3483
        %v3486 = vrot.slane %v3482, 4
        %v3488 = vshrl.u32 %v3324, 16
        %v3490 = vrot.slane %v3488, 7
        %v3491 = vshll.u32 %v3324, 16
        %v3493 = vor.u32 %v3490, %v3491
        %v3494 = vsel %vm1045, %v3486, %v3493
        %v3495 = vrot.slane %v3490, 4
        %v3497 = vshrl.u32 %v3325, 16
        %v3499 = vrot.slane %v3497, 7
        %v3500 = vshll.u32 %v3325, 16
        %v3502 = vor.u32 %v3499, %v3500
        %v3503 = vrot.slane %v3499, 4
        %v3505 = vshrl.u32 %v3326, 16
        %v3507 = vrot.slane %v3505, 7
        %v3508 = vshll.u32 %v3326, 16
        %v3510 = vor.u32 %v3507, %v3508
        %v3511 = vsel %vm1045, %v3503, %v3510
        %v3512 = vrot.slane %v3507, 4
        %v3514 = vshrl.u32 %v3327, 16
        %v3516 = vrot.slane %v3514, 7
        %v3517 = vshll.u32 %v3327, 16
        %v3519 = vor.u32 %v3516, %v3517
        %v3520 = vrot.slane %v3516, 4
        %v3522 = vshrl.u32 %v3328, 16
        %v3524 = vrot.slane %v3522, 7
        %v3525 = vshll.u32 %v3328, 16
        %v3527 = vor.u32 %v3524, %v3525
        %v3528 = vsel %vm1045, %v3520, %v3527
        %v3529 = vrot.slane %v3524, 4
        %v3531 = vshrl.u32 %v3329, 16
        %v3533 = vrot.slane %v3531, 7
        %v3534 = vshll.u32 %v3329, 16
        %v3536 = vor.u32 %v3533, %v3534
        %v3537 = vrot.slane %v3533, 4
        %v3539 = vshrl.u32 %v3330, 16
        %v3541 = vrot.slane %v3539, 7
        %v3542 = vshll.u32 %v3330, 16
        %v3544 = vor.u32 %v3541, %v3542
        %v3545 = vsel %vm1045, %v3537, %v3544
        %v3546 = vrot.slane %v3541, 4
        %v3548 = vshrl.u32 %v3331, 16
        %v3550 = vrot.slane %v3548, 7
        %v3551 = vshll.u32 %v3331, 16
        %v3553 = vor.u32 %v3550, %v3551
        %v3554 = vrot.slane %v3550, 4
        %v3556 = vshrl.u32 %v3332, 16
        %v3558 = vrot.slane %v3556, 7
        %v3559 = vshll.u32 %v3332, 16
        %v3561 = vor.u32 %v3558, %v3559
        %v3562 = vsel %vm1045, %v3554, %v3561
        %v3563 = vrot.slane %v3558, 4
        %v3565 = vshrl.u32 %v3333, 16
        %v3567 = vrot.slane %v3565, 7
        %v3568 = vshll.u32 %v3333, 16
        %v3570 = vor.u32 %v3567, %v3568
        %v3571 = vrot.slane %v3567, 4
        %v3573 = vshrl.u32 %v3334, 16
        %v3575 = vrot.slane %v3573, 7
        %v3576 = vshll.u32 %v3334, 16
        %v3578 = vor.u32 %v3575, %v3576
        %v3579 = vsel %vm1045, %v3571, %v3578
        %v3580 = vrot.slane %v3575, 4
        %v3582 = vshrl.u32 %v3335, 16
        %v3584 = vrot.slane %v3582, 7
        %v3585 = vshll.u32 %v3335, 16
        %v3587 = vor.u32 %v3584, %v3585
        %v3588 = vrot.slane %v3584, 4
        %v3590 = vshrl.u32 %v3336, 16
        %v3592 = vrot.slane %v3590, 7
        %v3593 = vshll.u32 %v3336, 16
        %v3595 = vor.u32 %v3592, %v3593
        %v3596 = vsel %vm1045, %v3588, %v3595
        %v3597 = vrot.slane %v3592, 4
        %v3599 = vshrl.u32 %v3337, 16
        %v3601 = vrot.slane %v3599, 7
        %v3602 = vshll.u32 %v3337, 16
        %v3604 = vor.u32 %v3601, %v3602
        %v3605 = vrot.slane %v3601, 4
        %v3607 = vshrl.u32 %v3338, 16
        %v3609 = vrot.slane %v3607, 7
        %v3610 = vshll.u32 %v3338, 16
        %v3612 = vor.u32 %v3609, %v3610
        %v3613 = vsel %vm1045, %v3605, %v3612
        %v3614 = vrot.slane %v3609, 4
        %v3616 = vshrl.u32 %v3339, 16
        %v3618 = vrot.slane %v3616, 7
        %v3619 = vshll.u32 %v3339, 16
        %v3621 = vor.u32 %v3618, %v3619
        %v3622 = vrot.slane %v3618, 4
        %v3624 = vshrl.u32 %v3340, 16
        %v3626 = vrot.slane %v3624, 7
        %v3627 = vshll.u32 %v3340, 16
        %v3629 = vor.u32 %v3626, %v3627
        %v3630 = vsel %vm1045, %v3622, %v3629
        %v3631 = vrot.slane %v3626, 4
        %v3633 = vshrl.u32 %v3341, 16
        %v3635 = vrot.slane %v3633, 7
        %v3636 = vshll.u32 %v3341, 16
        %v3638 = vor.u32 %v3635, %v3636
        %v3639 = vrot.slane %v3635, 4
        %v3641 = vshrl.u32 %v3342, 16
        %v3643 = vrot.slane %v3641, 7
        %v3644 = vshll.u32 %v3342, 16
        %v3646 = vor.u32 %v3643, %v3644
        %v3647 = vsel %vm1045, %v3639, %v3646
        %v3648 = vrot.slane %v3643, 4
        %vm3703 = vcmask 257024
        %vm3704 = vmand %vm3703, %vm1447
        %v3705 = vld [vmem:[#allocation3] sm:$0xf]
        %v3706 = vsel %vm3704, %v3349, %v3705
        %3707 = vst [vmem:[#allocation3] sm:$0xf] %v3706
        %vm3708 = vcmask 257024
        %3709 = vst.msk [vmem:[#allocation3 + $0x4] sm:$0xf] %vm3708, %v3358
        %vm3710 = vcmask 253952
        %vm3711 = vmand %vm3710, %vm1043
        %v3712 = vld [vmem:[#allocation3 + $0x8] sm:$0x1]
        %v3713 = vsel %vm3711, %v3359, %v3712
        %3714 = vst [vmem:[#allocation3 + $0x8] sm:$0x1] %v3713
        %v3715 = vld [vmem:[#allocation3 + $0xc] sm:$0xf]
        %v3716 = vsel %vm3704, %v3366, %v3715
        %3717 = vst [vmem:[#allocation3 + $0xc] sm:$0xf] %v3716
        %3718 = vst.msk [vmem:[#allocation3 + $0x10] sm:$0xf] %vm3708, %v3375
        %v3719 = vld [vmem:[#allocation3 + $0x14] sm:$0x1]
        %v3720 = vsel %vm3711, %v3376, %v3719
        %3721 = vst [vmem:[#allocation3 + $0x14] sm:$0x1] %v3720
        %v3722 = vld [vmem:[#allocation3 + $0x18] sm:$0xf]
        %v3723 = vsel %vm3704, %v3383, %v3722
        %3724 = vst [vmem:[#allocation3 + $0x18] sm:$0xf] %v3723
        %3725 = vst.msk [vmem:[#allocation3 + $0x1c] sm:$0xf] %vm3708, %v3392
        %v3726 = vld [vmem:[#allocation3 + $0x20] sm:$0x1]
        %v3727 = vsel %vm3711, %v3393, %v3726
        %3728 = vst [vmem:[#allocation3 + $0x20] sm:$0x1] %v3727
        %v3729 = vld [vmem:[#allocation3 + $0x24] sm:$0xf]
        %v3730 = vsel %vm3704, %v3400, %v3729
        %3731 = vst [vmem:[#allocation3 + $0x24] sm:$0xf] %v3730
        %3732 = vst.msk [vmem:[#allocation3 + $0x28] sm:$0xf] %vm3708, %v3409
        %v3733 = vld [vmem:[#allocation3 + $0x2c] sm:$0x1]
        %v3734 = vsel %vm3711, %v3410, %v3733
        %3735 = vst [vmem:[#allocation3 + $0x2c] sm:$0x1] %v3734
        %v3736 = vld [vmem:[#allocation3 + $0x30] sm:$0xf]
        %v3737 = vsel %vm3704, %v3417, %v3736
        %3738 = vst [vmem:[#allocation3 + $0x30] sm:$0xf] %v3737
        %3739 = vst.msk [vmem:[#allocation3 + $0x34] sm:$0xf] %vm3708, %v3426
        %v3740 = vld [vmem:[#allocation3 + $0x38] sm:$0x1]
        %v3741 = vsel %vm3711, %v3427, %v3740
        %3742 = vst [vmem:[#allocation3 + $0x38] sm:$0x1] %v3741
        %v3743 = vld [vmem:[#allocation3 + $0x3c] sm:$0xf]
        %v3744 = vsel %vm3704, %v3434, %v3743
        %3745 = vst [vmem:[#allocation3 + $0x3c] sm:$0xf] %v3744
        %3746 = vst.msk [vmem:[#allocation3 + $0x40] sm:$0xf] %vm3708, %v3443
        %v3747 = vld [vmem:[#allocation3 + $0x44] sm:$0x1]
        %v3748 = vsel %vm3711, %v3444, %v3747
        %3749 = vst [vmem:[#allocation3 + $0x44] sm:$0x1] %v3748
        %v3750 = vld [vmem:[#allocation3 + $0x48] sm:$0xf]
        %v3751 = vsel %vm3704, %v3451, %v3750
        %3752 = vst [vmem:[#allocation3 + $0x48] sm:$0xf] %v3751
        %3753 = vst.msk [vmem:[#allocation3 + $0x4c] sm:$0xf] %vm3708, %v3460
        %v3754 = vld [vmem:[#allocation3 + $0x50] sm:$0x1]
        %v3755 = vsel %vm3711, %v3461, %v3754
        %3756 = vst [vmem:[#allocation3 + $0x50] sm:$0x1] %v3755
        %v3757 = vld [vmem:[#allocation3 + $0x54] sm:$0xf]
        %v3758 = vsel %vm3704, %v3468, %v3757
        %3759 = vst [vmem:[#allocation3 + $0x54] sm:$0xf] %v3758
        %3760 = vst.msk [vmem:[#allocation3 + $0x58] sm:$0xf] %vm3708, %v3477
        %v3761 = vld [vmem:[#allocation3 + $0x5c] sm:$0x1]
        %v3762 = vsel %vm3711, %v3478, %v3761
        %3763 = vst [vmem:[#allocation3 + $0x5c] sm:$0x1] %v3762
        %v3764 = vld [vmem:[#allocation3 + $0x60] sm:$0xf]
        %v3765 = vsel %vm3704, %v3485, %v3764
        %3766 = vst [vmem:[#allocation3 + $0x60] sm:$0xf] %v3765
        %3767 = vst.msk [vmem:[#allocation3 + $0x64] sm:$0xf] %vm3708, %v3494
        %v3768 = vld [vmem:[#allocation3 + $0x68] sm:$0x1]
        %v3769 = vsel %vm3711, %v3495, %v3768
        %3770 = vst [vmem:[#allocation3 + $0x68] sm:$0x1] %v3769
        %v3771 = vld [vmem:[#allocation3 + $0x6c] sm:$0xf]
        %v3772 = vsel %vm3704, %v3502, %v3771
        %3773 = vst [vmem:[#allocation3 + $0x6c] sm:$0xf] %v3772
        %3774 = vst.msk [vmem:[#allocation3 + $0x70] sm:$0xf] %vm3708, %v3511
        %v3775 = vld [vmem:[#allocation3 + $0x74] sm:$0x1]
        %v3776 = vsel %vm3711, %v3512, %v3775
        %3777 = vst [vmem:[#allocation3 + $0x74] sm:$0x1] %v3776
        %v3778 = vld [vmem:[#allocation3 + $0x78] sm:$0xf]
        %v3779 = vsel %vm3704, %v3519, %v3778
        %3780 = vst [vmem:[#allocation3 + $0x78] sm:$0xf] %v3779
        %3781 = vst.msk [vmem:[#allocation3 + $0x7c] sm:$0xf] %vm3708, %v3528
        %v3782 = vld [vmem:[#allocation3 + $0x80] sm:$0x1]
        %v3783 = vsel %vm3711, %v3529, %v3782
        %3784 = vst [vmem:[#allocation3 + $0x80] sm:$0x1] %v3783
        %v3785 = vld [vmem:[#allocation3 + $0x84] sm:$0xf]
        %v3786 = vsel %vm3704, %v3536, %v3785
        %3787 = vst [vmem:[#allocation3 + $0x84] sm:$0xf] %v3786
        %3788 = vst.msk [vmem:[#allocation3 + $0x88] sm:$0xf] %vm3708, %v3545
        %v3789 = vld [vmem:[#allocation3 + $0x8c] sm:$0x1]
        %v3790 = vsel %vm3711, %v3546, %v3789
        %3791 = vst [vmem:[#allocation3 + $0x8c] sm:$0x1] %v3790
        %v3792 = vld [vmem:[#allocation3 + $0x90] sm:$0xf]
        %v3793 = vsel %vm3704, %v3553, %v3792
        %3794 = vst [vmem:[#allocation3 + $0x90] sm:$0xf] %v3793
        %3795 = vst.msk [vmem:[#allocation3 + $0x94] sm:$0xf] %vm3708, %v3562
        %v3796 = vld [vmem:[#allocation3 + $0x98] sm:$0x1]
        %v3797 = vsel %vm3711, %v3563, %v3796
        %3798 = vst [vmem:[#allocation3 + $0x98] sm:$0x1] %v3797
        %v3799 = vld [vmem:[#allocation3 + $0x9c] sm:$0xf]
        %v3800 = vsel %vm3704, %v3570, %v3799
        %3801 = vst [vmem:[#allocation3 + $0x9c] sm:$0xf] %v3800
        %3802 = vst.msk [vmem:[#allocation3 + $0xa0] sm:$0xf] %vm3708, %v3579
        %v3803 = vld [vmem:[#allocation3 + $0xa4] sm:$0x1]
        %v3804 = vsel %vm3711, %v3580, %v3803
        %3805 = vst [vmem:[#allocation3 + $0xa4] sm:$0x1] %v3804
        %v3806 = vld [vmem:[#allocation3 + $0xa8] sm:$0xf]
        %v3807 = vsel %vm3704, %v3587, %v3806
        %3808 = vst [vmem:[#allocation3 + $0xa8] sm:$0xf] %v3807
        %3809 = vst.msk [vmem:[#allocation3 + $0xac] sm:$0xf] %vm3708, %v3596
        %v3810 = vld [vmem:[#allocation3 + $0xb0] sm:$0x1]
        %v3811 = vsel %vm3711, %v3597, %v3810
        %3812 = vst [vmem:[#allocation3 + $0xb0] sm:$0x1] %v3811
        %v3813 = vld [vmem:[#allocation3 + $0xb4] sm:$0xf]
        %v3814 = vsel %vm3704, %v3604, %v3813
        %3815 = vst [vmem:[#allocation3 + $0xb4] sm:$0xf] %v3814
        %3816 = vst.msk [vmem:[#allocation3 + $0xb8] sm:$0xf] %vm3708, %v3613
        %v3817 = vld [vmem:[#allocation3 + $0xbc] sm:$0x1]
        %v3818 = vsel %vm3711, %v3614, %v3817
        %3819 = vst [vmem:[#allocation3 + $0xbc] sm:$0x1] %v3818
        %v3820 = vld [vmem:[#allocation3 + $0xc0] sm:$0xf]
        %v3821 = vsel %vm3704, %v3621, %v3820
        %3822 = vst [vmem:[#allocation3 + $0xc0] sm:$0xf] %v3821
        %3823 = vst.msk [vmem:[#allocation3 + $0xc4] sm:$0xf] %vm3708, %v3630
        %v3824 = vld [vmem:[#allocation3 + $0xc8] sm:$0x1]
        %v3825 = vsel %vm3711, %v3631, %v3824
        %3826 = vst [vmem:[#allocation3 + $0xc8] sm:$0x1] %v3825
        %v3827 = vld [vmem:[#allocation3 + $0xcc] sm:$0xf]
        %v3828 = vsel %vm3704, %v3638, %v3827
        %3829 = vst [vmem:[#allocation3 + $0xcc] sm:$0xf] %v3828
        %3830 = vst.msk [vmem:[#allocation3 + $0xd0] sm:$0xf] %vm3708, %v3647
        %v3831 = vld [vmem:[#allocation3 + $0xd4] sm:$0x1]
        %v3832 = vsel %vm3711, %v3648, %v3831
        %3833 = vst [vmem:[#allocation3 + $0xd4] sm:$0x1] %v3832
        %v3834 = vld [vmem:[#allocation3] sm:$0x1]
        %v3835 = vsel %vm3711, 0, %v3834
        %3836 = vst [vmem:[#allocation3] sm:$0x1] %v3835
        %v3837 = vld [vmem:[#allocation3 + $0xc] sm:$0x1]
        %v3838 = vsel %vm3711, 0, %v3837
        %3839 = vst [vmem:[#allocation3 + $0xc] sm:$0x1] %v3838
        %v3840 = vld [vmem:[#allocation3 + $0x18] sm:$0x1]
        %v3841 = vsel %vm3711, 0, %v3840
        %3842 = vst [vmem:[#allocation3 + $0x18] sm:$0x1] %v3841
        %v3843 = vld [vmem:[#allocation3 + $0x24] sm:$0x1]
        %v3844 = vsel %vm3711, 0, %v3843
        %3845 = vst [vmem:[#allocation3 + $0x24] sm:$0x1] %v3844
        %v3846 = vld [vmem:[#allocation3 + $0x30] sm:$0x1]
        %v3847 = vsel %vm3711, 0, %v3846
        %3848 = vst [vmem:[#allocation3 + $0x30] sm:$0x1] %v3847
        %v3849 = vld [vmem:[#allocation3 + $0x3c] sm:$0x1]
        %v3850 = vsel %vm3711, 0, %v3849
        %3851 = vst [vmem:[#allocation3 + $0x3c] sm:$0x1] %v3850
        %v3852 = vld [vmem:[#allocation3 + $0x48] sm:$0x1]
        %v3853 = vsel %vm3711, 0, %v3852
        %3854 = vst [vmem:[#allocation3 + $0x48] sm:$0x1] %v3853
        %v3855 = vld [vmem:[#allocation3 + $0x54] sm:$0x1]
        %v3856 = vsel %vm3711, 0, %v3855
        %3857 = vst [vmem:[#allocation3 + $0x54] sm:$0x1] %v3856
        %v3858 = vld [vmem:[#allocation3 + $0x60] sm:$0x1]
        %v3859 = vsel %vm3711, 0, %v3858
        %3860 = vst [vmem:[#allocation3 + $0x60] sm:$0x1] %v3859
        %v3861 = vld [vmem:[#allocation3 + $0x6c] sm:$0x1]
        %v3862 = vsel %vm3711, 0, %v3861
        %3863 = vst [vmem:[#allocation3 + $0x6c] sm:$0x1] %v3862
        %v3864 = vld [vmem:[#allocation3 + $0x78] sm:$0x1]
        %v3865 = vsel %vm3711, 0, %v3864
        %3866 = vst [vmem:[#allocation3 + $0x78] sm:$0x1] %v3865
        %v3867 = vld [vmem:[#allocation3 + $0x84] sm:$0x1]
        %v3868 = vsel %vm3711, 0, %v3867
        %3869 = vst [vmem:[#allocation3 + $0x84] sm:$0x1] %v3868
        %v3870 = vld [vmem:[#allocation3 + $0x90] sm:$0x1]
        %v3871 = vsel %vm3711, 0, %v3870
        %3872 = vst [vmem:[#allocation3 + $0x90] sm:$0x1] %v3871
        %v3873 = vld [vmem:[#allocation3 + $0x9c] sm:$0x1]
        %v3874 = vsel %vm3711, 0, %v3873
        %3875 = vst [vmem:[#allocation3 + $0x9c] sm:$0x1] %v3874
        %v3876 = vld [vmem:[#allocation3 + $0xa8] sm:$0x1]
        %v3877 = vsel %vm3711, 0, %v3876
        %3878 = vst [vmem:[#allocation3 + $0xa8] sm:$0x1] %v3877
        %v3879 = vld [vmem:[#allocation3 + $0xb4] sm:$0x1]
        %v3880 = vsel %vm3711, 0, %v3879
        %3881 = vst [vmem:[#allocation3 + $0xb4] sm:$0x1] %v3880
        %v3882 = vld [vmem:[#allocation3 + $0xc0] sm:$0x1]
        %v3883 = vsel %vm3711, 0, %v3882
        %3884 = vst [vmem:[#allocation3 + $0xc0] sm:$0x1] %v3883
        %v3885 = vld [vmem:[#allocation3 + $0xcc] sm:$0x1]
        %v3886 = vsel %vm3711, 0, %v3885
        %3887 = vst [vmem:[#allocation3 + $0xcc] sm:$0x1] %v3886
        %vm3888 = vmand %vm3710, %vm1447
        %v3889 = vld [vmem:[#allocation3 + $0x8] sm:$0x1]
        %v3890 = vsel %vm3888, 0, %v3889
        %3891 = vst [vmem:[#allocation3 + $0x8] sm:$0x1] %v3890
        %v3892 = vld [vmem:[#allocation3 + $0x14] sm:$0x1]
        %v3893 = vsel %vm3888, 0, %v3892
        %3894 = vst [vmem:[#allocation3 + $0x14] sm:$0x1] %v3893
        %v3895 = vld [vmem:[#allocation3 + $0x20] sm:$0x1]
        %v3896 = vsel %vm3888, 0, %v3895
        %3897 = vst [vmem:[#allocation3 + $0x20] sm:$0x1] %v3896
        %v3898 = vld [vmem:[#allocation3 + $0x2c] sm:$0x1]
        %v3899 = vsel %vm3888, 0, %v3898
        %3900 = vst [vmem:[#allocation3 + $0x2c] sm:$0x1] %v3899
        %v3901 = vld [vmem:[#allocation3 + $0x38] sm:$0x1]
        %v3902 = vsel %vm3888, 0, %v3901
        %3903 = vst [vmem:[#allocation3 + $0x38] sm:$0x1] %v3902
        %v3904 = vld [vmem:[#allocation3 + $0x44] sm:$0x1]
        %v3905 = vsel %vm3888, 0, %v3904
        %3906 = vst [vmem:[#allocation3 + $0x44] sm:$0x1] %v3905
        %v3907 = vld [vmem:[#allocation3 + $0x50] sm:$0x1]
        %v3908 = vsel %vm3888, 0, %v3907
        %3909 = vst [vmem:[#allocation3 + $0x50] sm:$0x1] %v3908
        %v3910 = vld [vmem:[#allocation3 + $0x5c] sm:$0x1]
        %v3911 = vsel %vm3888, 0, %v3910
        %3912 = vst [vmem:[#allocation3 + $0x5c] sm:$0x1] %v3911
        %v3913 = vld [vmem:[#allocation3 + $0x68] sm:$0x1]
        %v3914 = vsel %vm3888, 0, %v3913
        %3915 = vst [vmem:[#allocation3 + $0x68] sm:$0x1] %v3914
        %v3916 = vld [vmem:[#allocation3 + $0x74] sm:$0x1]
        %v3917 = vsel %vm3888, 0, %v3916
        %3918 = vst [vmem:[#allocation3 + $0x74] sm:$0x1] %v3917
        %v3919 = vld [vmem:[#allocation3 + $0x80] sm:$0x1]
        %v3920 = vsel %vm3888, 0, %v3919
        %3921 = vst [vmem:[#allocation3 + $0x80] sm:$0x1] %v3920
        %v3922 = vld [vmem:[#allocation3 + $0x8c] sm:$0x1]
        %v3923 = vsel %vm3888, 0, %v3922
        %3924 = vst [vmem:[#allocation3 + $0x8c] sm:$0x1] %v3923
        %v3925 = vld [vmem:[#allocation3 + $0x98] sm:$0x1]
        %v3926 = vsel %vm3888, 0, %v3925
        %3927 = vst [vmem:[#allocation3 + $0x98] sm:$0x1] %v3926
        %v3928 = vld [vmem:[#allocation3 + $0xa4] sm:$0x1]
        %v3929 = vsel %vm3888, 0, %v3928
        %3930 = vst [vmem:[#allocation3 + $0xa4] sm:$0x1] %v3929
        %v3931 = vld [vmem:[#allocation3 + $0xb0] sm:$0x1]
        %v3932 = vsel %vm3888, 0, %v3931
        %3933 = vst [vmem:[#allocation3 + $0xb0] sm:$0x1] %v3932
        %v3934 = vld [vmem:[#allocation3 + $0xbc] sm:$0x1]
        %v3935 = vsel %vm3888, 0, %v3934
        %3936 = vst [vmem:[#allocation3 + $0xbc] sm:$0x1] %v3935
        %v3937 = vld [vmem:[#allocation3 + $0xc8] sm:$0x1]
        %v3938 = vsel %vm3888, 0, %v3937
        %3939 = vst [vmem:[#allocation3 + $0xc8] sm:$0x1] %v3938
        %v3940 = vld [vmem:[#allocation3 + $0xd4] sm:$0x1]
        %v3941 = vsel %vm3888, 0, %v3940
        %3942 = vst [vmem:[#allocation3 + $0xd4] sm:$0x1] %v3941
        %v3943 = vld [vmem:[#allocation3] sm:$0xf]
        %v3944 = vld [vmem:[#allocation3 + $0x4] sm:$0xf]
        %v3945 = vld [vmem:[#allocation3 + $0x8] sm:$0x1]
        %v3946 = vld [vmem:[#allocation3 + $0xc] sm:$0xf]
        %v3947 = vld [vmem:[#allocation3 + $0x10] sm:$0xf]
        %v3948 = vld [vmem:[#allocation3 + $0x14] sm:$0x1]
        %v3949 = vld [vmem:[#allocation3 + $0x18] sm:$0xf]
        %v3950 = vld [vmem:[#allocation3 + $0x1c] sm:$0xf]
        %v3951 = vld [vmem:[#allocation3 + $0x20] sm:$0x1]
        %v3952 = vld [vmem:[#allocation3 + $0x24] sm:$0xf]
        %v3953 = vld [vmem:[#allocation3 + $0x28] sm:$0xf]
        %v3954 = vld [vmem:[#allocation3 + $0x2c] sm:$0x1]
        %v3955 = vld [vmem:[#allocation3 + $0x30] sm:$0xf]
        %v3956 = vld [vmem:[#allocation3 + $0x34] sm:$0xf]
        %v3957 = vld [vmem:[#allocation3 + $0x38] sm:$0x1]
        %v3958 = vld [vmem:[#allocation3 + $0x3c] sm:$0xf]
        %v3959 = vld [vmem:[#allocation3 + $0x40] sm:$0xf]
        %v3960 = vld [vmem:[#allocation3 + $0x44] sm:$0x1]
        %v3961 = vld [vmem:[#allocation3 + $0x48] sm:$0xf]
        %v3962 = vld [vmem:[#allocation3 + $0x4c] sm:$0xf]
        %v3963 = vld [vmem:[#allocation3 + $0x50] sm:$0x1]
        %v3964 = vld [vmem:[#allocation3 + $0x54] sm:$0xf]
        %v3965 = vld [vmem:[#allocation3 + $0x58] sm:$0xf]
        %v3966 = vld [vmem:[#allocation3 + $0x5c] sm:$0x1]
        %v3967 = vld [vmem:[#allocation3 + $0x60] sm:$0xf]
        %v3968 = vld [vmem:[#allocation3 + $0x64] sm:$0xf]
        %v3969 = vld [vmem:[#allocation3 + $0x68] sm:$0x1]
        %v3970 = vld [vmem:[#allocation3 + $0x6c] sm:$0xf]
        %v3971 = vld [vmem:[#allocation3 + $0x70] sm:$0xf]
        %v3972 = vld [vmem:[#allocation3 + $0x74] sm:$0x1]
        %v3973 = vld [vmem:[#allocation3 + $0x78] sm:$0xf]
        %v3974 = vld [vmem:[#allocation3 + $0x7c] sm:$0xf]
        %v3975 = vld [vmem:[#allocation3 + $0x80] sm:$0x1]
        %v3976 = vld [vmem:[#allocation3 + $0x84] sm:$0xf]
        %v3977 = vld [vmem:[#allocation3 + $0x88] sm:$0xf]
        %v3978 = vld [vmem:[#allocation3 + $0x8c] sm:$0x1]
        %v3979 = vld [vmem:[#allocation3 + $0x90] sm:$0xf]
        %v3980 = vld [vmem:[#allocation3 + $0x94] sm:$0xf]
        %v3981 = vld [vmem:[#allocation3 + $0x98] sm:$0x1]
        %v3982 = vld [vmem:[#allocation3 + $0x9c] sm:$0xf]
        %v3983 = vld [vmem:[#allocation3 + $0xa0] sm:$0xf]
        %v3984 = vld [vmem:[#allocation3 + $0xa4] sm:$0x1]
        %v3985 = vld [vmem:[#allocation3 + $0xa8] sm:$0xf]
        %v3986 = vld [vmem:[#allocation3 + $0xac] sm:$0xf]
        %v3987 = vld [vmem:[#allocation3 + $0xb0] sm:$0x1]
        %v3988 = vld [vmem:[#allocation3 + $0xb4] sm:$0xf]
        %v3989 = vld [vmem:[#allocation3 + $0xb8] sm:$0xf]
        %v3990 = vld [vmem:[#allocation3 + $0xbc] sm:$0x1]
        %v3991 = vld [vmem:[#allocation3 + $0xc0] sm:$0xf]
        %v3992 = vld [vmem:[#allocation3 + $0xc4] sm:$0xf]
        %v3993 = vld [vmem:[#allocation3 + $0xc8] sm:$0x1]
        %v3994 = vld [vmem:[#allocation3 + $0xcc] sm:$0xf]
        %v3995 = vld [vmem:[#allocation3 + $0xd0] sm:$0xf]
        %v3996 = vld [vmem:[#allocation3 + $0xd4] sm:$0x1]
        %v4033 = vunpack.c.l.b16 %v3943
        %v4034 = vunpack.c.l.b16 %v3944
        %v4035 = vunpack.c.l.b16 %v3946
        %v4036 = vunpack.c.l.b16 %v3947
        %v4037 = vunpack.c.l.b16 %v3949
        %v4038 = vunpack.c.l.b16 %v3950
        %v4039 = vunpack.c.l.b16 %v3952
        %v4040 = vunpack.c.l.b16 %v3953
        %v4041 = vunpack.c.l.b16 %v3955
        %v4042 = vunpack.c.l.b16 %v3956
        %v4043 = vunpack.c.l.b16 %v3958
        %v4044 = vunpack.c.l.b16 %v3959
        %v4045 = vunpack.c.l.b16 %v3961
        %v4046 = vunpack.c.l.b16 %v3962
        %v4047 = vunpack.c.l.b16 %v3964
        %v4048 = vunpack.c.l.b16 %v3965
        %v4049 = vunpack.c.l.b16 %v3967
        %v4050 = vunpack.c.l.b16 %v3968
        %v4051 = vunpack.c.l.b16 %v3970
        %v4052 = vunpack.c.l.b16 %v3971
        %v4053 = vunpack.c.l.b16 %v3973
        %v4054 = vunpack.c.l.b16 %v3974
        %v4055 = vunpack.c.l.b16 %v3976
        %v4056 = vunpack.c.l.b16 %v3977
        %v4057 = vunpack.c.l.b16 %v3979
        %v4058 = vunpack.c.l.b16 %v3980
        %v4059 = vunpack.c.l.b16 %v3982
        %v4060 = vunpack.c.l.b16 %v3983
        %v4061 = vunpack.c.l.b16 %v3985
        %v4062 = vunpack.c.l.b16 %v3986
        %v4063 = vunpack.c.l.b16 %v3988
        %v4064 = vunpack.c.l.b16 %v3989
        %v4065 = vunpack.c.l.b16 %v3991
        %v4066 = vunpack.c.l.b16 %v3992
        %v4067 = vunpack.c.l.b16 %v3994
        %v4068 = vunpack.c.l.b16 %v3995
        %v4069 = vpack.c.b16 %v4034, %v4033
        %v4070 = vpack.c.b16 %v4036, %v4035
        %v4071 = vpack.c.b16 %v4038, %v4037
        %v4072 = vpack.c.b16 %v4040, %v4039
        %v4073 = vpack.c.b16 %v4042, %v4041
        %v4074 = vpack.c.b16 %v4044, %v4043
        %v4075 = vpack.c.b16 %v4046, %v4045
        %v4076 = vpack.c.b16 %v4048, %v4047
        %v4077 = vpack.c.b16 %v4050, %v4049
        %v4078 = vpack.c.b16 %v4052, %v4051
        %v4079 = vpack.c.b16 %v4054, %v4053
        %v4080 = vpack.c.b16 %v4056, %v4055
        %v4081 = vpack.c.b16 %v4058, %v4057
        %v4082 = vpack.c.b16 %v4060, %v4059
        %v4083 = vpack.c.b16 %v4062, %v4061
        %v4084 = vpack.c.b16 %v4064, %v4063
        %v4085 = vpack.c.b16 %v4066, %v4065
        %v4086 = vpack.c.b16 %v4068, %v4067
        %v4105 = vunpack.c.l.b16 %v3945
        %v4106 = vunpack.c.l.b16 %v3948
        %v4107 = vunpack.c.l.b16 %v3951
        %v4108 = vunpack.c.l.b16 %v3954
        %v4109 = vunpack.c.l.b16 %v3957
        %v4110 = vunpack.c.l.b16 %v3960
        %v4111 = vunpack.c.l.b16 %v3963
        %v4112 = vunpack.c.l.b16 %v3966
        %v4113 = vunpack.c.l.b16 %v3969
        %v4114 = vunpack.c.l.b16 %v3972
        %v4115 = vunpack.c.l.b16 %v3975
        %v4116 = vunpack.c.l.b16 %v3978
        %v4117 = vunpack.c.l.b16 %v3981
        %v4118 = vunpack.c.l.b16 %v3984
        %v4119 = vunpack.c.l.b16 %v3987
        %v4120 = vunpack.c.l.b16 %v3990
        %v4121 = vunpack.c.l.b16 %v3993
        %v4122 = vunpack.c.l.b16 %v3996
        %v4123 = vpack.c.b16 %v4105, %v4105
        %v4124 = vpack.c.b16 %v4106, %v4106
        %v4125 = vpack.c.b16 %v4107, %v4107
        %v4126 = vpack.c.b16 %v4108, %v4108
        %v4127 = vpack.c.b16 %v4109, %v4109
        %v4128 = vpack.c.b16 %v4110, %v4110
        %v4129 = vpack.c.b16 %v4111, %v4111
        %v4130 = vpack.c.b16 %v4112, %v4112
        %v4131 = vpack.c.b16 %v4113, %v4113
        %v4132 = vpack.c.b16 %v4114, %v4114
        %v4133 = vpack.c.b16 %v4115, %v4115
        %v4134 = vpack.c.b16 %v4116, %v4116
        %v4135 = vpack.c.b16 %v4117, %v4117
        %v4136 = vpack.c.b16 %v4118, %v4118
        %v4137 = vpack.c.b16 %v4119, %v4119
        %v4138 = vpack.c.b16 %v4120, %v4120
        %v4139 = vpack.c.b16 %v4121, %v4121
        %v4140 = vpack.c.b16 %v4122, %v4122
        %v4142 = vshrl.u32 %v4069, 16
        %v4144 = vshll.u32 %v4069, 16
        %v4146 = vrot.slane %v4144, 1
        %v4147 = vor.u32 %v4142, %v4146
        %v4149 = vshll.u32 %v4123, 16
        %v4151 = vrot.slane %v4149, 1
        %v4152 = vsel %vm1933, %v4147, %v4151
        %v4154 = vshrl.u32 %v4070, 16
        %v4156 = vshll.u32 %v4070, 16
        %v4158 = vrot.slane %v4156, 1
        %v4159 = vor.u32 %v4154, %v4158
        %v4161 = vshll.u32 %v4124, 16
        %v4163 = vrot.slane %v4161, 1
        %v4164 = vsel %vm1933, %v4159, %v4163
        %v4166 = vshrl.u32 %v4071, 16
        %v4168 = vshll.u32 %v4071, 16
        %v4170 = vrot.slane %v4168, 1
        %v4171 = vor.u32 %v4166, %v4170
        %v4173 = vshll.u32 %v4125, 16
        %v4175 = vrot.slane %v4173, 1
        %v4176 = vsel %vm1933, %v4171, %v4175
        %v4178 = vshrl.u32 %v4072, 16
        %v4180 = vshll.u32 %v4072, 16
        %v4182 = vrot.slane %v4180, 1
        %v4183 = vor.u32 %v4178, %v4182
        %v4185 = vshll.u32 %v4126, 16
        %v4187 = vrot.slane %v4185, 1
        %v4188 = vsel %vm1933, %v4183, %v4187
        %v4190 = vshrl.u32 %v4073, 16
        %v4192 = vshll.u32 %v4073, 16
        %v4194 = vrot.slane %v4192, 1
        %v4195 = vor.u32 %v4190, %v4194
        %v4197 = vshll.u32 %v4127, 16
        %v4199 = vrot.slane %v4197, 1
        %v4200 = vsel %vm1933, %v4195, %v4199
        %v4202 = vshrl.u32 %v4074, 16
        %v4204 = vshll.u32 %v4074, 16
        %v4206 = vrot.slane %v4204, 1
        %v4207 = vor.u32 %v4202, %v4206
        %v4209 = vshll.u32 %v4128, 16
        %v4211 = vrot.slane %v4209, 1
        %v4212 = vsel %vm1933, %v4207, %v4211
        %v4214 = vshrl.u32 %v4075, 16
        %v4216 = vshll.u32 %v4075, 16
        %v4218 = vrot.slane %v4216, 1
        %v4219 = vor.u32 %v4214, %v4218
        %v4221 = vshll.u32 %v4129, 16
        %v4223 = vrot.slane %v4221, 1
        %v4224 = vsel %vm1933, %v4219, %v4223
        %v4226 = vshrl.u32 %v4076, 16
        %v4228 = vshll.u32 %v4076, 16
        %v4230 = vrot.slane %v4228, 1
        %v4231 = vor.u32 %v4226, %v4230
        %v4233 = vshll.u32 %v4130, 16
        %v4235 = vrot.slane %v4233, 1
        %v4236 = vsel %vm1933, %v4231, %v4235
        %v4238 = vshrl.u32 %v4077, 16
        %v4240 = vshll.u32 %v4077, 16
        %v4242 = vrot.slane %v4240, 1
        %v4243 = vor.u32 %v4238, %v4242
        %v4245 = vshll.u32 %v4131, 16
        %v4247 = vrot.slane %v4245, 1
        %v4248 = vsel %vm1933, %v4243, %v4247
        %v4250 = vshrl.u32 %v4078, 16
        %v4252 = vshll.u32 %v4078, 16
        %v4254 = vrot.slane %v4252, 1
        %v4255 = vor.u32 %v4250, %v4254
        %v4257 = vshll.u32 %v4132, 16
        %v4259 = vrot.slane %v4257, 1
        %v4260 = vsel %vm1933, %v4255, %v4259
        %v4262 = vshrl.u32 %v4079, 16
        %v4264 = vshll.u32 %v4079, 16
        %v4266 = vrot.slane %v4264, 1
        %v4267 = vor.u32 %v4262, %v4266
        %v4269 = vshll.u32 %v4133, 16
        %v4271 = vrot.slane %v4269, 1
        %v4272 = vsel %vm1933, %v4267, %v4271
        %v4274 = vshrl.u32 %v4080, 16
        %v4276 = vshll.u32 %v4080, 16
        %v4278 = vrot.slane %v4276, 1
        %v4279 = vor.u32 %v4274, %v4278
        %v4281 = vshll.u32 %v4134, 16
        %v4283 = vrot.slane %v4281, 1
        %v4284 = vsel %vm1933, %v4279, %v4283
        %v4286 = vshrl.u32 %v4081, 16
        %v4288 = vshll.u32 %v4081, 16
        %v4290 = vrot.slane %v4288, 1
        %v4291 = vor.u32 %v4286, %v4290
        %v4293 = vshll.u32 %v4135, 16
        %v4295 = vrot.slane %v4293, 1
        %v4296 = vsel %vm1933, %v4291, %v4295
        %v4298 = vshrl.u32 %v4082, 16
        %v4300 = vshll.u32 %v4082, 16
        %v4302 = vrot.slane %v4300, 1
        %v4303 = vor.u32 %v4298, %v4302
        %v4305 = vshll.u32 %v4136, 16
        %v4307 = vrot.slane %v4305, 1
        %v4308 = vsel %vm1933, %v4303, %v4307
        %v4310 = vshrl.u32 %v4083, 16
        %v4312 = vshll.u32 %v4083, 16
        %v4314 = vrot.slane %v4312, 1
        %v4315 = vor.u32 %v4310, %v4314
        %v4317 = vshll.u32 %v4137, 16
        %v4319 = vrot.slane %v4317, 1
        %v4320 = vsel %vm1933, %v4315, %v4319
        %v4322 = vshrl.u32 %v4084, 16
        %v4324 = vshll.u32 %v4084, 16
        %v4326 = vrot.slane %v4324, 1
        %v4327 = vor.u32 %v4322, %v4326
        %v4329 = vshll.u32 %v4138, 16
        %v4331 = vrot.slane %v4329, 1
        %v4332 = vsel %vm1933, %v4327, %v4331
        %v4334 = vshrl.u32 %v4085, 16
        %v4336 = vshll.u32 %v4085, 16
        %v4338 = vrot.slane %v4336, 1
        %v4339 = vor.u32 %v4334, %v4338
        %v4341 = vshll.u32 %v4139, 16
        %v4343 = vrot.slane %v4341, 1
        %v4344 = vsel %vm1933, %v4339, %v4343
        %v4346 = vshrl.u32 %v4086, 16
        %v4348 = vshll.u32 %v4086, 16
        %v4350 = vrot.slane %v4348, 1
        %v4351 = vor.u32 %v4346, %v4350
        %v4353 = vshll.u32 %v4140, 16
        %v4355 = vrot.slane %v4353, 1
        %v4356 = vsel %vm1933, %v4351, %v4355
        %4357 = vrot.lane.b32.xlu0 %v4152, 32
        %v4358 = vpop.permute.xlu0 %4357
        %4359 = vrot.lane.b32.xlu0 %v4164, 32
        %v4360 = vpop.permute.xlu0 %4359
        %4361 = vrot.lane.b32.xlu0 %v4176, 32
        %v4362 = vpop.permute.xlu0 %4361
        %4363 = vrot.lane.b32.xlu0 %v4188, 32
        %v4364 = vpop.permute.xlu0 %4363
        %4365 = vrot.lane.b32.xlu0 %v4200, 32
        %v4366 = vpop.permute.xlu0 %4365
        %4367 = vrot.lane.b32.xlu0 %v4212, 32
        %v4368 = vpop.permute.xlu0 %4367
        %4369 = vrot.lane.b32.xlu0 %v4224, 32
        %v4370 = vpop.permute.xlu0 %4369
        %4371 = vrot.lane.b32.xlu0 %v4236, 32
        %v4372 = vpop.permute.xlu0 %4371
        %4373 = vrot.lane.b32.xlu0 %v4248, 32
        %v4374 = vpop.permute.xlu0 %4373
        %4375 = vrot.lane.b32.xlu0 %v4260, 32
        %v4376 = vpop.permute.xlu0 %4375
        %4377 = vrot.lane.b32.xlu0 %v4272, 32
        %v4378 = vpop.permute.xlu0 %4377
        %4379 = vrot.lane.b32.xlu0 %v4284, 32
        %v4380 = vpop.permute.xlu0 %4379
        %4381 = vrot.lane.b32.xlu0 %v4296, 32
        %v4382 = vpop.permute.xlu0 %4381
        %4383 = vrot.lane.b32.xlu0 %v4308, 32
        %v4384 = vpop.permute.xlu0 %4383
        %4385 = vrot.lane.b32.xlu0 %v4320, 32
        %v4386 = vpop.permute.xlu0 %4385
        %4387 = vrot.lane.b32.xlu0 %v4332, 32
        %v4388 = vpop.permute.xlu0 %4387
        %4389 = vrot.lane.b32.xlu0 %v4344, 32
        %v4390 = vpop.permute.xlu0 %4389
        %4391 = vrot.lane.b32.xlu0 %v4356, 32
        %v4392 = vpop.permute.xlu0 %4391
        %v4393 = vrot.slane %v4069, 1
        %v4394 = vrot.slane %v4123, 1
        %v4395 = vsel %vm2214, %v4393, %v4394
        %v4396 = vrot.slane %v4070, 1
        %v4397 = vrot.slane %v4124, 1
        %v4398 = vsel %vm2214, %v4396, %v4397
        %v4399 = vrot.slane %v4071, 1
        %v4400 = vrot.slane %v4125, 1
        %v4401 = vsel %vm2214, %v4399, %v4400
        %v4402 = vrot.slane %v4072, 1
        %v4403 = vrot.slane %v4126, 1
        %v4404 = vsel %vm2214, %v4402, %v4403
        %v4405 = vrot.slane %v4073, 1
        %v4406 = vrot.slane %v4127, 1
        %v4407 = vsel %vm2214, %v4405, %v4406
        %v4408 = vrot.slane %v4074, 1
        %v4409 = vrot.slane %v4128, 1
        %v4410 = vsel %vm2214, %v4408, %v4409
        %v4411 = vrot.slane %v4075, 1
        %v4412 = vrot.slane %v4129, 1
        %v4413 = vsel %vm2214, %v4411, %v4412
        %v4414 = vrot.slane %v4076, 1
        %v4415 = vrot.slane %v4130, 1
        %v4416 = vsel %vm2214, %v4414, %v4415
        %v4417 = vrot.slane %v4077, 1
        %v4418 = vrot.slane %v4131, 1
        %v4419 = vsel %vm2214, %v4417, %v4418
        %v4420 = vrot.slane %v4078, 1
        %v4421 = vrot.slane %v4132, 1
        %v4422 = vsel %vm2214, %v4420, %v4421
        %v4423 = vrot.slane %v4079, 1
        %v4424 = vrot.slane %v4133, 1
        %v4425 = vsel %vm2214, %v4423, %v4424
        %v4426 = vrot.slane %v4080, 1
        %v4427 = vrot.slane %v4134, 1
        %v4428 = vsel %vm2214, %v4426, %v4427
        %v4429 = vrot.slane %v4081, 1
        %v4430 = vrot.slane %v4135, 1
        %v4431 = vsel %vm2214, %v4429, %v4430
        %v4432 = vrot.slane %v4082, 1
        %v4433 = vrot.slane %v4136, 1
        %v4434 = vsel %vm2214, %v4432, %v4433
        %v4435 = vrot.slane %v4083, 1
        %v4436 = vrot.slane %v4137, 1
        %v4437 = vsel %vm2214, %v4435, %v4436
        %v4438 = vrot.slane %v4084, 1
        %v4439 = vrot.slane %v4138, 1
        %v4440 = vsel %vm2214, %v4438, %v4439
        %v4441 = vrot.slane %v4085, 1
        %v4442 = vrot.slane %v4139, 1
        %v4443 = vsel %vm2214, %v4441, %v4442
        %v4444 = vrot.slane %v4086, 1
        %v4445 = vrot.slane %v4140, 1
        %v4446 = vsel %vm2214, %v4444, %v4445
        %4447 = vrot.lane.b32.xlu0 %v4395, 64
        %v4448 = vpop.permute.xlu0 %4447
        %4449 = vrot.lane.b32.xlu0 %v4398, 64
        %v4450 = vpop.permute.xlu0 %4449
        %4451 = vrot.lane.b32.xlu0 %v4401, 64
        %v4452 = vpop.permute.xlu0 %4451
        %4453 = vrot.lane.b32.xlu0 %v4404, 64
        %v4454 = vpop.permute.xlu0 %4453
        %4455 = vrot.lane.b32.xlu0 %v4407, 64
        %v4456 = vpop.permute.xlu0 %4455
        %4457 = vrot.lane.b32.xlu0 %v4410, 64
        %v4458 = vpop.permute.xlu0 %4457
        %4459 = vrot.lane.b32.xlu0 %v4413, 64
        %v4460 = vpop.permute.xlu0 %4459
        %4461 = vrot.lane.b32.xlu0 %v4416, 64
        %v4462 = vpop.permute.xlu0 %4461
        %4463 = vrot.lane.b32.xlu0 %v4419, 64
        %v4464 = vpop.permute.xlu0 %4463
        %4465 = vrot.lane.b32.xlu0 %v4422, 64
        %v4466 = vpop.permute.xlu0 %4465
        %4467 = vrot.lane.b32.xlu0 %v4425, 64
        %v4468 = vpop.permute.xlu0 %4467
        %4469 = vrot.lane.b32.xlu0 %v4428, 64
        %v4470 = vpop.permute.xlu0 %4469
        %4471 = vrot.lane.b32.xlu0 %v4431, 64
        %v4472 = vpop.permute.xlu0 %4471
        %4473 = vrot.lane.b32.xlu0 %v4434, 64
        %v4474 = vpop.permute.xlu0 %4473
        %4475 = vrot.lane.b32.xlu0 %v4437, 64
        %v4476 = vpop.permute.xlu0 %4475
        %4477 = vrot.lane.b32.xlu0 %v4440, 64
        %v4478 = vpop.permute.xlu0 %4477
        %4479 = vrot.lane.b32.xlu0 %v4443, 64
        %v4480 = vpop.permute.xlu0 %4479
        %4481 = vrot.lane.b32.xlu0 %v4446, 64
        %v4482 = vpop.permute.xlu0 %4481
        %vm4483 = vcmask 261120
        %v4485 = vsel %vm4483, %v4069, %v4358
        %v4487 = vsel %vm4483, %v4070, %v4360
        %v4489 = vsel %vm4483, %v4071, %v4362
        %v4491 = vsel %vm4483, %v4072, %v4364
        %v4493 = vsel %vm4483, %v4073, %v4366
        %v4495 = vsel %vm4483, %v4074, %v4368
        %v4497 = vsel %vm4483, %v4075, %v4370
        %v4499 = vsel %vm4483, %v4076, %v4372
        %v4501 = vsel %vm4483, %v4077, %v4374
        %v4503 = vsel %vm4483, %v4078, %v4376
        %v4505 = vsel %vm4483, %v4079, %v4378
        %v4507 = vsel %vm4483, %v4080, %v4380
        %v4509 = vsel %vm4483, %v4081, %v4382
        %v4511 = vsel %vm4483, %v4082, %v4384
        %v4513 = vsel %vm4483, %v4083, %v4386
        %v4515 = vsel %vm4483, %v4084, %v4388
        %v4517 = vsel %vm4483, %v4085, %v4390
        %v4519 = vsel %vm4483, %v4086, %v4392
        %v4521 = vsel %vm2275, %v4485, %v4448
        %v4523 = vsel %vm2275, %v4487, %v4450
        %v4525 = vsel %vm2275, %v4489, %v4452
        %v4527 = vsel %vm2275, %v4491, %v4454
        %v4529 = vsel %vm2275, %v4493, %v4456
        %v4531 = vsel %vm2275, %v4495, %v4458
        %v4533 = vsel %vm2275, %v4497, %v4460
        %v4535 = vsel %vm2275, %v4499, %v4462
        %v4537 = vsel %vm2275, %v4501, %v4464
        %v4539 = vsel %vm2275, %v4503, %v4466
        %v4541 = vsel %vm2275, %v4505, %v4468
        %v4543 = vsel %vm2275, %v4507, %v4470
        %v4545 = vsel %vm2275, %v4509, %v4472
        %v4547 = vsel %vm2275, %v4511, %v4474
        %v4549 = vsel %vm2275, %v4513, %v4476
        %v4551 = vsel %vm2275, %v4515, %v4478
        %v4553 = vsel %vm2275, %v4517, %v4480
        %v4555 = vsel %vm2275, %v4519, %v4482
        %v4556 = vld [vmem:[%s5] sm:$0xf]
        %v4557 = vld [vmem:[%s5 + $0x4] sm:$0xf]
        %v4558 = vld [vmem:[%s5 + $0x8] sm:$0xf]
        %v4559 = vld [vmem:[%s5 + $0xc] sm:$0xf]
        %v4560 = vld [vmem:[%s5 + $0x10] sm:$0xf]
        %v4561 = vld [vmem:[%s5 + $0x14] sm:$0xf]
        %v4562 = vld [vmem:[%s5 + $0x18] sm:$0xf]
        %v4563 = vld [vmem:[%s5 + $0x1c] sm:$0xf]
        %v4564 = vld [vmem:[%s5 + $0x20] sm:$0xf]
        %v4565 = vld [vmem:[%s5 + $0x24] sm:$0xf]
        %v4566 = vld [vmem:[%s5 + $0x28] sm:$0xf]
        %v4567 = vld [vmem:[%s5 + $0x2c] sm:$0xf]
        %v4580 = vunpack.c.l.b16 %v4556
        %v4581 = vunpack.c.l.b16 %v4557
        %v4582 = vunpack.c.l.b16 %v4558
        %v4583 = vunpack.c.l.b16 %v4559
        %v4584 = vunpack.c.l.b16 %v4560
        %v4585 = vunpack.c.l.b16 %v4561
        %v4586 = vunpack.c.l.b16 %v4562
        %v4587 = vunpack.c.l.b16 %v4563
        %v4588 = vunpack.c.l.b16 %v4564
        %v4589 = vunpack.c.l.b16 %v4565
        %v4590 = vunpack.c.l.b16 %v4566
        %v4591 = vunpack.c.l.b16 %v4567
        %v4592 = vpack.c.b16 %v4581, %v4580
        %v4593 = vpack.c.b16 %v4583, %v4582
        %v4594 = vpack.c.b16 %v4585, %v4584
        %v4595 = vpack.c.b16 %v4587, %v4586
        %v4596 = vpack.c.b16 %v4589, %v4588
        %v4597 = vpack.c.b16 %v4591, %v4590
        %vm4604 = vcmask 785408
        %v4605 = vsel %vm4604, %v4521, 0
        %v4607 = vsel %vm4604, %v4523, 0
        %v4609 = vsel %vm4604, %v4525, 0
        %v4611 = vsel %vm4604, %v4527, 0
        %v4613 = vsel %vm4604, %v4529, 0
        %v4615 = vsel %vm4604, %v4531, 0
        %v4617 = vsel %vm4604, %v4533, 0
        %v4619 = vsel %vm4604, %v4535, 0
        %v4621 = vsel %vm4604, %v4537, 0
        %v4623 = vsel %vm4604, %v4539, 0
        %v4625 = vsel %vm4604, %v4541, 0
        %v4627 = vsel %vm4604, %v4543, 0
        %v4629 = vsel %vm4604, %v4545, 0
        %v4631 = vsel %vm4604, %v4547, 0
        %v4633 = vsel %vm4604, %v4549, 0
        %v4635 = vsel %vm4604, %v4551, 0
        %v4637 = vsel %vm4604, %v4553, 0
        %v4639 = vsel %vm4604, %v4555, 0
        %4641 = vmatprep.subr.bf16.mxu0 0
        %4642 = vmatpush1.bf16.msra.mxu0 %v4592
        %4643 = vmatprep.subr.bf16.mxu0 0
        %4644 = vmatpush1.bf16.msra.mxu0 %v4593
        %4645 = vmatprep.subr.bf16.mxu0 0
        %4646 = vmatpush1.bf16.msra.mxu0 %v4594
        %4647 = vmatprep.subr.bf16.mxu0 0
        %4648 = vmatpush1.bf16.msra.mxu0 %v4595
        %4649 = vmatprep.subr.bf16.mxu0 0
        %4650 = vmatpush1.bf16.msra.mxu0 %v4596
        %4651 = vmatprep.subr.bf16.mxu0 0
        %4652 = vmatpush1.bf16.msra.mxu0 %v4597
        %4653 = vmatprep.subr.bf16.mxu0 0
        %4654 = vmatpush1.bf16.msra.mxu0 0
        %4655 = vmatprep.subr.bf16.mxu0 0
        %4656 = vmatpush1.bf16.msra.mxu0 0
        %4657 = vmatprep.subr.bf16.mxu0 0
        %4658 = vmatpush1.bf16.msra.mxu0 0
        %4659 = vmatprep.subr.bf16.mxu0 0
        %4660 = vmatpush1.bf16.msra.mxu0 0
        %4661 = vmatprep.subr.bf16.mxu0 0
        %4662 = vmatpush1.bf16.msra.mxu0 0
        %4663 = vmatprep.subr.bf16.mxu0 0
        %4664 = vmatpush1.bf16.msra.mxu0 0
        %4665 = vmatprep.subr.bf16.mxu0 0
        %4666 = vmatpush1.bf16.msra.mxu0 0
        %4667 = vmatprep.subr.bf16.mxu0 0
        %4668 = vmatpush1.bf16.msra.mxu0 0
        %4669 = vmatprep.subr.bf16.mxu0 0
        %4670 = vmatpush1.bf16.msra.mxu0 0
        %4671 = vmatprep.subr.bf16.mxu0 0
        %4672 = vmatpush1.bf16.msra.mxu0 0
        %4673 = vmatprep.mubr.bf16.mxu0 0
        %4674 = vmatmul.mubr.bf16.gmra.mrb[0].mxu0 %v4605
        %v4675 = vpop.f32.mrb[0].mxu0
        %v4676 = vadd.f32 0.0, %v4675
        %v4677 = vpop.f32.mrb[0].mxu0
        %v4678 = vpop.f32.mrb[0].mxu0
        %v4679 = vadd.f32 0.0, %v4678
        %v4680 = vpop.f32.mrb[0].mxu0
        %4681 = vmatprep.mubr.bf16.mxu0 0
        %4682 = vmatmul.mubr.bf16.gmra.mrb[0].mxu0 %v4607
        %v4683 = vpop.f32.mrb[0].mxu0
        %v4684 = vadd.f32 0.0, %v4683
        %v4685 = vpop.f32.mrb[0].mxu0
        %v4686 = vpop.f32.mrb[0].mxu0
        %v4687 = vadd.f32 0.0, %v4686
        %v4688 = vpop.f32.mrb[0].mxu0
        %4689 = vmatprep.mubr.bf16.mxu0 0
        %4690 = vmatmul.mubr.bf16.gmra.mrb[0].mxu0 %v4609
        %v4691 = vpop.f32.mrb[0].mxu0
        %v4692 = vadd.f32 0.0, %v4691
        %v4693 = vpop.f32.mrb[0].mxu0
        %v4694 = vpop.f32.mrb[0].mxu0
        %v4695 = vadd.f32 0.0, %v4694
        %v4696 = vpop.f32.mrb[0].mxu0
        %4697 = vmatprep.mubr.bf16.mxu0 0
        %4698 = vmatmul.mubr.bf16.gmra.mrb[0].mxu0 %v4611
        %v4699 = vpop.f32.mrb[0].mxu0
        %v4700 = vadd.f32 0.0, %v4699
        %v4701 = vpop.f32.mrb[0].mxu0
        %v4702 = vpop.f32.mrb[0].mxu0
        %v4703 = vadd.f32 0.0, %v4702
        %v4704 = vpop.f32.mrb[0].mxu0
        %4705 = vmatprep.mubr.bf16.mxu0 0
        %4706 = vmatmul.mubr.bf16.gmra.mrb[0].mxu0 %v4613
        %v4707 = vpop.f32.mrb[0].mxu0
        %v4708 = vadd.f32 0.0, %v4707
        %v4709 = vpop.f32.mrb[0].mxu0
        %v4710 = vpop.f32.mrb[0].mxu0
        %v4711 = vadd.f32 0.0, %v4710
        %v4712 = vpop.f32.mrb[0].mxu0
        %4713 = vmatprep.mubr.bf16.mxu0 0
        %4714 = vmatmul.mubr.bf16.gmra.mrb[0].mxu0 %v4615
        %v4715 = vpop.f32.mrb[0].mxu0
        %v4716 = vadd.f32 0.0, %v4715
        %v4717 = vpop.f32.mrb[0].mxu0
        %v4718 = vpop.f32.mrb[0].mxu0
        %v4719 = vadd.f32 0.0, %v4718
        %v4720 = vpop.f32.mrb[0].mxu0
        %4721 = vmatprep.mubr.bf16.mxu0 0
        %4722 = vmatmul.mubr.bf16.gmra.mrb[0].mxu0 %v4617
        %v4723 = vpop.f32.mrb[0].mxu0
        %v4724 = vadd.f32 0.0, %v4723
        %v4725 = vpop.f32.mrb[0].mxu0
        %v4726 = vpop.f32.mrb[0].mxu0
        %v4727 = vadd.f32 0.0, %v4726
        %v4728 = vpop.f32.mrb[0].mxu0
        %4729 = vmatprep.mubr.bf16.mxu0 0
        %4730 = vmatmul.mubr.bf16.gmra.mrb[0].mxu0 %v4619
        %v4731 = vpop.f32.mrb[0].mxu0
        %v4732 = vadd.f32 0.0, %v4731
        %v4733 = vpop.f32.mrb[0].mxu0
        %v4734 = vpop.f32.mrb[0].mxu0
        %v4735 = vadd.f32 0.0, %v4734
        %v4736 = vpop.f32.mrb[0].mxu0
        %4737 = vmatprep.mubr.bf16.mxu0 0
        %4738 = vmatmul.mubr.bf16.gmra.mrb[0].mxu0 %v4621
        %v4739 = vpop.f32.mrb[0].mxu0
        %v4740 = vadd.f32 0.0, %v4739
        %v4741 = vpop.f32.mrb[0].mxu0
        %v4742 = vpop.f32.mrb[0].mxu0
        %v4743 = vadd.f32 0.0, %v4742
        %v4744 = vpop.f32.mrb[0].mxu0
        %4745 = vmatprep.mubr.bf16.mxu0 0
        %4746 = vmatmul.mubr.bf16.gmra.mrb[0].mxu0 %v4623
        %v4747 = vpop.f32.mrb[0].mxu0
        %v4748 = vadd.f32 0.0, %v4747
        %v4749 = vpop.f32.mrb[0].mxu0
        %v4750 = vpop.f32.mrb[0].mxu0
        %v4751 = vadd.f32 0.0, %v4750
        %v4752 = vpop.f32.mrb[0].mxu0
        %4753 = vmatprep.mubr.bf16.mxu0 0
        %4754 = vmatmul.mubr.bf16.gmra.mrb[0].mxu0 %v4625
        %v4755 = vpop.f32.mrb[0].mxu0
        %v4756 = vadd.f32 0.0, %v4755
        %v4757 = vpop.f32.mrb[0].mxu0
        %v4758 = vpop.f32.mrb[0].mxu0
        %v4759 = vadd.f32 0.0, %v4758
        %v4760 = vpop.f32.mrb[0].mxu0
        %4761 = vmatprep.mubr.bf16.mxu0 0
        %4762 = vmatmul.mubr.bf16.gmra.mrb[0].mxu0 %v4627
        %v4763 = vpop.f32.mrb[0].mxu0
        %v4764 = vadd.f32 0.0, %v4763
        %v4765 = vpop.f32.mrb[0].mxu0
        %v4766 = vpop.f32.mrb[0].mxu0
        %v4767 = vadd.f32 0.0, %v4766
        %v4768 = vpop.f32.mrb[0].mxu0
        %4769 = vmatprep.mubr.bf16.mxu0 0
        %4770 = vmatmul.mubr.bf16.gmra.mrb[0].mxu0 %v4629
        %v4771 = vpop.f32.mrb[0].mxu0
        %v4772 = vadd.f32 0.0, %v4771
        %v4773 = vpop.f32.mrb[0].mxu0
        %v4774 = vpop.f32.mrb[0].mxu0
        %v4775 = vadd.f32 0.0, %v4774
        %v4776 = vpop.f32.mrb[0].mxu0
        %4777 = vmatprep.mubr.bf16.mxu0 0
        %4778 = vmatmul.mubr.bf16.gmra.mrb[0].mxu0 %v4631
        %v4779 = vpop.f32.mrb[0].mxu0
        %v4780 = vadd.f32 0.0, %v4779
        %v4781 = vpop.f32.mrb[0].mxu0
        %v4782 = vpop.f32.mrb[0].mxu0
        %v4783 = vadd.f32 0.0, %v4782
        %v4784 = vpop.f32.mrb[0].mxu0
        %4785 = vmatprep.mubr.bf16.mxu0 0
        %4786 = vmatmul.mubr.bf16.gmra.mrb[0].mxu0 %v4633
        %v4787 = vpop.f32.mrb[0].mxu0
        %v4788 = vadd.f32 0.0, %v4787
        %v4789 = vpop.f32.mrb[0].mxu0
        %v4790 = vpop.f32.mrb[0].mxu0
        %v4791 = vadd.f32 0.0, %v4790
        %v4792 = vpop.f32.mrb[0].mxu0
        %4793 = vmatprep.mubr.bf16.mxu0 0
        %4794 = vmatmul.mubr.bf16.gmra.mrb[0].mxu0 %v4635
        %v4795 = vpop.f32.mrb[0].mxu0
        %v4796 = vadd.f32 0.0, %v4795
        %v4797 = vpop.f32.mrb[0].mxu0
        %v4798 = vpop.f32.mrb[0].mxu0
        %v4799 = vadd.f32 0.0, %v4798
        %v4800 = vpop.f32.mrb[0].mxu0
        %4801 = vmatprep.mubr.bf16.mxu0 0
        %4802 = vmatmul.mubr.bf16.gmra.mrb[0].mxu0 %v4637
        %v4803 = vpop.f32.mrb[0].mxu0
        %v4804 = vadd.f32 0.0, %v4803
        %v4805 = vpop.f32.mrb[0].mxu0
        %v4806 = vpop.f32.mrb[0].mxu0
        %v4807 = vadd.f32 0.0, %v4806
        %v4808 = vpop.f32.mrb[0].mxu0
        %4809 = vmatprep.mubr.bf16.mxu0 0
        %4810 = vmatmul.mubr.bf16.gmra.mrb[0].mxu0 %v4639
        %v4811 = vpop.f32.mrb[0].mxu0
        %v4812 = vadd.f32 0.0, %v4811
        %v4813 = vpop.f32.mrb[0].mxu0
        %v4814 = vpop.f32.mrb[0].mxu0
        %v4815 = vadd.f32 0.0, %v4814
        %v4816 = vpop.f32.mrb[0].mxu0
        %4817 = vdwg.mxu0
        %4850 = vrot.lane.b32.xlu0 %v4684, 124
        %v4851 = vpop.permute.xlu0 %4850
        %4852 = vrot.lane.b32.xlu0 %v4687, 124
        %v4853 = vpop.permute.xlu0 %4852
        %4854 = vrot.lane.b32.xlu0 %v4692, 124
        %v4855 = vpop.permute.xlu0 %4854
        %4856 = vrot.lane.b32.xlu0 %v4695, 124
        %v4857 = vpop.permute.xlu0 %4856
        %4858 = vrot.lane.b32.xlu0 %v4700, 124
        %v4859 = vpop.permute.xlu0 %4858
        %4860 = vrot.lane.b32.xlu0 %v4703, 124
        %v4861 = vpop.permute.xlu0 %4860
        %4862 = vrot.lane.b32.xlu0 %v4708, 124
        %v4863 = vpop.permute.xlu0 %4862
        %4864 = vrot.lane.b32.xlu0 %v4711, 124
        %v4865 = vpop.permute.xlu0 %4864
        %4866 = vrot.lane.b32.xlu0 %v4716, 124
        %v4867 = vpop.permute.xlu0 %4866
        %4868 = vrot.lane.b32.xlu0 %v4719, 124
        %v4869 = vpop.permute.xlu0 %4868
        %4870 = vrot.lane.b32.xlu0 %v4724, 124
        %v4871 = vpop.permute.xlu0 %4870
        %4872 = vrot.lane.b32.xlu0 %v4727, 124
        %v4873 = vpop.permute.xlu0 %4872
        %4874 = vrot.lane.b32.xlu0 %v4732, 124
        %v4875 = vpop.permute.xlu0 %4874
        %4876 = vrot.lane.b32.xlu0 %v4735, 124
        %v4877 = vpop.permute.xlu0 %4876
        %4878 = vrot.lane.b32.xlu0 %v4740, 124
        %v4879 = vpop.permute.xlu0 %4878
        %4880 = vrot.lane.b32.xlu0 %v4743, 124
        %v4881 = vpop.permute.xlu0 %4880
        %4882 = vrot.lane.b32.xlu0 %v4748, 124
        %v4883 = vpop.permute.xlu0 %4882
        %4884 = vrot.lane.b32.xlu0 %v4751, 124
        %v4885 = vpop.permute.xlu0 %4884
        %4886 = vrot.lane.b32.xlu0 %v4756, 124
        %v4887 = vpop.permute.xlu0 %4886
        %4888 = vrot.lane.b32.xlu0 %v4759, 124
        %v4889 = vpop.permute.xlu0 %4888
        %4890 = vrot.lane.b32.xlu0 %v4764, 124
        %v4891 = vpop.permute.xlu0 %4890
        %4892 = vrot.lane.b32.xlu0 %v4767, 124
        %v4893 = vpop.permute.xlu0 %4892
        %4894 = vrot.lane.b32.xlu0 %v4772, 124
        %v4895 = vpop.permute.xlu0 %4894
        %4896 = vrot.lane.b32.xlu0 %v4775, 124
        %v4897 = vpop.permute.xlu0 %4896
        %4898 = vrot.lane.b32.xlu0 %v4780, 124
        %v4899 = vpop.permute.xlu0 %4898
        %4900 = vrot.lane.b32.xlu0 %v4783, 124
        %v4901 = vpop.permute.xlu0 %4900
        %4902 = vrot.lane.b32.xlu0 %v4788, 124
        %v4903 = vpop.permute.xlu0 %4902
        %4904 = vrot.lane.b32.xlu0 %v4791, 124
        %v4905 = vpop.permute.xlu0 %4904
        %4906 = vrot.lane.b32.xlu0 %v4796, 124
        %v4907 = vpop.permute.xlu0 %4906
        %4908 = vrot.lane.b32.xlu0 %v4799, 124
        %v4909 = vpop.permute.xlu0 %4908
        %4910 = vrot.lane.b32.xlu0 %v4804, 124
        %v4911 = vpop.permute.xlu0 %4910
        %4912 = vrot.lane.b32.xlu0 %v4807, 124
        %v4913 = vpop.permute.xlu0 %4912
        %v4946 = vadd.f32 %v4676, %v4851
        %v4947 = vadd.f32 %v4679, %v4853
        %v4948 = vadd.f32 %v4684, %v4855
        %v4949 = vadd.f32 %v4687, %v4857
        %v4950 = vadd.f32 %v4692, %v4859
        %v4951 = vadd.f32 %v4695, %v4861
        %v4952 = vadd.f32 %v4700, %v4863
        %v4953 = vadd.f32 %v4703, %v4865
        %v4954 = vadd.f32 %v4708, %v4867
        %v4955 = vadd.f32 %v4711, %v4869
        %v4956 = vadd.f32 %v4716, %v4871
        %v4957 = vadd.f32 %v4719, %v4873
        %v4958 = vadd.f32 %v4724, %v4875
        %v4959 = vadd.f32 %v4727, %v4877
        %v4960 = vadd.f32 %v4732, %v4879
        %v4961 = vadd.f32 %v4735, %v4881
        %v4962 = vadd.f32 %v4740, %v4883
        %v4963 = vadd.f32 %v4743, %v4885
        %v4964 = vadd.f32 %v4748, %v4887
        %v4965 = vadd.f32 %v4751, %v4889
        %v4966 = vadd.f32 %v4756, %v4891
        %v4967 = vadd.f32 %v4759, %v4893
        %v4968 = vadd.f32 %v4764, %v4895
        %v4969 = vadd.f32 %v4767, %v4897
        %v4970 = vadd.f32 %v4772, %v4899
        %v4971 = vadd.f32 %v4775, %v4901
        %v4972 = vadd.f32 %v4780, %v4903
        %v4973 = vadd.f32 %v4783, %v4905
        %v4974 = vadd.f32 %v4788, %v4907
        %v4975 = vadd.f32 %v4791, %v4909
        %v4976 = vadd.f32 %v4796, %v4911
        %v4977 = vadd.f32 %v4799, %v4913
        %4980 = vrot.lane.b32.xlu0 %v4692, 120
        %v4981 = vpop.permute.xlu0 %4980
        %4982 = vrot.lane.b32.xlu0 %v4695, 120
        %v4983 = vpop.permute.xlu0 %4982
        %4984 = vrot.lane.b32.xlu0 %v4700, 120
        %v4985 = vpop.permute.xlu0 %4984
        %4986 = vrot.lane.b32.xlu0 %v4703, 120
        %v4987 = vpop.permute.xlu0 %4986
        %4988 = vrot.lane.b32.xlu0 %v4708, 120
        %v4989 = vpop.permute.xlu0 %4988
        %4990 = vrot.lane.b32.xlu0 %v4711, 120
        %v4991 = vpop.permute.xlu0 %4990
        %4992 = vrot.lane.b32.xlu0 %v4716, 120
        %v4993 = vpop.permute.xlu0 %4992
        %4994 = vrot.lane.b32.xlu0 %v4719, 120
        %v4995 = vpop.permute.xlu0 %4994
        %4996 = vrot.lane.b32.xlu0 %v4724, 120
        %v4997 = vpop.permute.xlu0 %4996
        %4998 = vrot.lane.b32.xlu0 %v4727, 120
        %v4999 = vpop.permute.xlu0 %4998
        %5000 = vrot.lane.b32.xlu0 %v4732, 120
        %v5001 = vpop.permute.xlu0 %5000
        %5002 = vrot.lane.b32.xlu0 %v4735, 120
        %v5003 = vpop.permute.xlu0 %5002
        %5004 = vrot.lane.b32.xlu0 %v4740, 120
        %v5005 = vpop.permute.xlu0 %5004
        %5006 = vrot.lane.b32.xlu0 %v4743, 120
        %v5007 = vpop.permute.xlu0 %5006
        %5008 = vrot.lane.b32.xlu0 %v4748, 120
        %v5009 = vpop.permute.xlu0 %5008
        %5010 = vrot.lane.b32.xlu0 %v4751, 120
        %v5011 = vpop.permute.xlu0 %5010
        %5012 = vrot.lane.b32.xlu0 %v4756, 120
        %v5013 = vpop.permute.xlu0 %5012
        %5014 = vrot.lane.b32.xlu0 %v4759, 120
        %v5015 = vpop.permute.xlu0 %5014
        %5016 = vrot.lane.b32.xlu0 %v4764, 120
        %v5017 = vpop.permute.xlu0 %5016
        %5018 = vrot.lane.b32.xlu0 %v4767, 120
        %v5019 = vpop.permute.xlu0 %5018
        %5020 = vrot.lane.b32.xlu0 %v4772, 120
        %v5021 = vpop.permute.xlu0 %5020
        %5022 = vrot.lane.b32.xlu0 %v4775, 120
        %v5023 = vpop.permute.xlu0 %5022
        %5024 = vrot.lane.b32.xlu0 %v4780, 120
        %v5025 = vpop.permute.xlu0 %5024
        %5026 = vrot.lane.b32.xlu0 %v4783, 120
        %v5027 = vpop.permute.xlu0 %5026
        %5028 = vrot.lane.b32.xlu0 %v4788, 120
        %v5029 = vpop.permute.xlu0 %5028
        %5030 = vrot.lane.b32.xlu0 %v4791, 120
        %v5031 = vpop.permute.xlu0 %5030
        %5032 = vrot.lane.b32.xlu0 %v4796, 120
        %v5033 = vpop.permute.xlu0 %5032
        %5034 = vrot.lane.b32.xlu0 %v4799, 120
        %v5035 = vpop.permute.xlu0 %5034
        %5036 = vrot.lane.b32.xlu0 %v4804, 120
        %v5037 = vpop.permute.xlu0 %5036
        %5038 = vrot.lane.b32.xlu0 %v4807, 120
        %v5039 = vpop.permute.xlu0 %5038
        %5040 = vrot.lane.b32.xlu0 %v4812, 120
        %v5041 = vpop.permute.xlu0 %5040
        %5042 = vrot.lane.b32.xlu0 %v4815, 120
        %v5043 = vpop.permute.xlu0 %5042
        %v5076 = vadd.f32 %v4946, %v4981
        %v5077 = vadd.f32 %v4947, %v4983
        %v5078 = vadd.f32 %v4948, %v4985
        %v5079 = vadd.f32 %v4949, %v4987
        %v5080 = vadd.f32 %v4950, %v4989
        %v5081 = vadd.f32 %v4951, %v4991
        %v5082 = vadd.f32 %v4952, %v4993
        %v5083 = vadd.f32 %v4953, %v4995
        %v5084 = vadd.f32 %v4954, %v4997
        %v5085 = vadd.f32 %v4955, %v4999
        %v5086 = vadd.f32 %v4956, %v5001
        %v5087 = vadd.f32 %v4957, %v5003
        %v5088 = vadd.f32 %v4958, %v5005
        %v5089 = vadd.f32 %v4959, %v5007
        %v5090 = vadd.f32 %v4960, %v5009
        %v5091 = vadd.f32 %v4961, %v5011
        %v5092 = vadd.f32 %v4962, %v5013
        %v5093 = vadd.f32 %v4963, %v5015
        %v5094 = vadd.f32 %v4964, %v5017
        %v5095 = vadd.f32 %v4965, %v5019
        %v5096 = vadd.f32 %v4966, %v5021
        %v5097 = vadd.f32 %v4967, %v5023
        %v5098 = vadd.f32 %v4968, %v5025
        %v5099 = vadd.f32 %v4969, %v5027
        %v5100 = vadd.f32 %v4970, %v5029
        %v5101 = vadd.f32 %v4971, %v5031
        %v5102 = vadd.f32 %v4972, %v5033
        %v5103 = vadd.f32 %v4973, %v5035
        %v5104 = vadd.f32 %v4974, %v5037
        %v5105 = vadd.f32 %v4975, %v5039
        %v5106 = vadd.f32 %v4976, %v5041
        %v5107 = vadd.f32 %v4977, %v5043
        %v5108 = vld [vmem:[%s6] sm:$0x1]
        %v5110 = vlaneseq
        %v5111 = vshrl.u32 %v5110, 7
        %v5112 = vsub.s32 0, %v5111
        %v5113 = vrot.slane %v5108, %v5112
        %v5115 = vadd.f32 %v5076, %v5113
        %v5116 = vadd.f32 %v5077, %v5113
        %v5117 = vadd.f32 %v5078, %v5113
        %v5118 = vadd.f32 %v5079, %v5113
        %v5119 = vadd.f32 %v5080, %v5113
        %v5120 = vadd.f32 %v5081, %v5113
        %v5121 = vadd.f32 %v5082, %v5113
        %v5122 = vadd.f32 %v5083, %v5113
        %v5123 = vadd.f32 %v5084, %v5113
        %v5124 = vadd.f32 %v5085, %v5113
        %v5125 = vadd.f32 %v5086, %v5113
        %v5126 = vadd.f32 %v5087, %v5113
        %v5127 = vadd.f32 %v5088, %v5113
        %v5128 = vadd.f32 %v5089, %v5113
        %v5129 = vadd.f32 %v5090, %v5113
        %v5130 = vadd.f32 %v5091, %v5113
        %v5131 = vadd.f32 %v5092, %v5113
        %v5132 = vadd.f32 %v5093, %v5113
        %v5133 = vadd.f32 %v5094, %v5113
        %v5134 = vadd.f32 %v5095, %v5113
        %v5135 = vadd.f32 %v5096, %v5113
        %v5136 = vadd.f32 %v5097, %v5113
        %v5137 = vadd.f32 %v5098, %v5113
        %v5138 = vadd.f32 %v5099, %v5113
        %v5139 = vadd.f32 %v5100, %v5113
        %v5140 = vadd.f32 %v5101, %v5113
        %v5141 = vadd.f32 %v5102, %v5113
        %v5142 = vadd.f32 %v5103, %v5113
        %v5143 = vadd.f32 %v5104, %v5113
        %v5144 = vadd.f32 %v5105, %v5113
        %v5145 = vadd.f32 %v5106, %v5113
        %v5146 = vadd.f32 %v5107, %v5113
        %v5147 = vxor.u32 %v5115, 2147483648
        %v5148 = vxor.u32 %v5116, 2147483648
        %v5149 = vxor.u32 %v5117, 2147483648
        %v5150 = vxor.u32 %v5118, 2147483648
        %v5151 = vxor.u32 %v5119, 2147483648
        %v5152 = vxor.u32 %v5120, 2147483648
        %v5153 = vxor.u32 %v5121, 2147483648
        %v5154 = vxor.u32 %v5122, 2147483648
        %v5155 = vxor.u32 %v5123, 2147483648
        %v5156 = vxor.u32 %v5124, 2147483648
        %v5157 = vxor.u32 %v5125, 2147483648
        %v5158 = vxor.u32 %v5126, 2147483648
        %v5159 = vxor.u32 %v5127, 2147483648
        %v5160 = vxor.u32 %v5128, 2147483648
        %v5161 = vxor.u32 %v5129, 2147483648
        %v5162 = vxor.u32 %v5130, 2147483648
        %v5163 = vxor.u32 %v5131, 2147483648
        %v5164 = vxor.u32 %v5132, 2147483648
        %v5165 = vxor.u32 %v5133, 2147483648
        %v5166 = vxor.u32 %v5134, 2147483648
        %v5167 = vxor.u32 %v5135, 2147483648
        %v5168 = vxor.u32 %v5136, 2147483648
        %v5169 = vxor.u32 %v5137, 2147483648
        %v5170 = vxor.u32 %v5138, 2147483648
        %v5171 = vxor.u32 %v5139, 2147483648
        %v5172 = vxor.u32 %v5140, 2147483648
        %v5173 = vxor.u32 %v5141, 2147483648
        %v5174 = vxor.u32 %v5142, 2147483648
        %v5175 = vxor.u32 %v5143, 2147483648
        %v5176 = vxor.u32 %v5144, 2147483648
        %v5177 = vxor.u32 %v5145, 2147483648
        %v5178 = vxor.u32 %v5146, 2147483648
        %v5179 = vmul.f32 %v5147, 1.442695
        %v5180 = vpow.pop %v5179
        %v5181 = vmul.f32 %v5148, 1.442695
        %v5182 = vpow.pop %v5181
        %v5183 = vmul.f32 %v5149, 1.442695
        %v5184 = vpow.pop %v5183
        %v5185 = vmul.f32 %v5150, 1.442695
        %v5186 = vpow.pop %v5185
        %v5187 = vmul.f32 %v5151, 1.442695
        %v5188 = vpow.pop %v5187
        %v5189 = vmul.f32 %v5152, 1.442695
        %v5190 = vpow.pop %v5189
        %v5191 = vmul.f32 %v5153, 1.442695
        %v5192 = vpow.pop %v5191
        %v5193 = vmul.f32 %v5154, 1.442695
        %v5194 = vpow.pop %v5193
        %v5195 = vmul.f32 %v5155, 1.442695
        %v5196 = vpow.pop %v5195
        %v5197 = vmul.f32 %v5156, 1.442695
        %v5198 = vpow.pop %v5197
        %v5199 = vmul.f32 %v5157, 1.442695
        %v5200 = vpow.pop %v5199
        %v5201 = vmul.f32 %v5158, 1.442695
        %v5202 = vpow.pop %v5201
        %v5203 = vmul.f32 %v5159, 1.442695
        %v5204 = vpow.pop %v5203
        %v5205 = vmul.f32 %v5160, 1.442695
        %v5206 = vpow.pop %v5205
        %v5207 = vmul.f32 %v5161, 1.442695
        %v5208 = vpow.pop %v5207
        %v5209 = vmul.f32 %v5162, 1.442695
        %v5210 = vpow.pop %v5209
        %v5211 = vmul.f32 %v5163, 1.442695
        %v5212 = vpow.pop %v5211
        %v5213 = vmul.f32 %v5164, 1.442695
        %v5214 = vpow.pop %v5213
        %v5215 = vmul.f32 %v5165, 1.442695
        %v5216 = vpow.pop %v5215
        %v5217 = vmul.f32 %v5166, 1.442695
        %v5218 = vpow.pop %v5217
        %v5219 = vmul.f32 %v5167, 1.442695
        %v5220 = vpow.pop %v5219
        %v5221 = vmul.f32 %v5168, 1.442695
        %v5222 = vpow.pop %v5221
        %v5223 = vmul.f32 %v5169, 1.442695
        %v5224 = vpow.pop %v5223
        %v5225 = vmul.f32 %v5170, 1.442695
        %v5226 = vpow.pop %v5225
        %v5227 = vmul.f32 %v5171, 1.442695
        %v5228 = vpow.pop %v5227
        %v5229 = vmul.f32 %v5172, 1.442695
        %v5230 = vpow.pop %v5229
        %v5231 = vmul.f32 %v5173, 1.442695
        %v5232 = vpow.pop %v5231
        %v5233 = vmul.f32 %v5174, 1.442695
        %v5234 = vpow.pop %v5233
        %v5235 = vmul.f32 %v5175, 1.442695
        %v5236 = vpow.pop %v5235
        %v5237 = vmul.f32 %v5176, 1.442695
        %v5238 = vpow.pop %v5237
        %v5239 = vmul.f32 %v5177, 1.442695
        %v5240 = vpow.pop %v5239
        %v5241 = vmul.f32 %v5178, 1.442695
        %v5242 = vpow.pop %v5241
        %v5243 = vadd.f32 %v5180, 1.0
        %v5244 = vadd.f32 %v5182, 1.0
        %v5245 = vadd.f32 %v5184, 1.0
        %v5246 = vadd.f32 %v5186, 1.0
        %v5247 = vadd.f32 %v5188, 1.0
        %v5248 = vadd.f32 %v5190, 1.0
        %v5249 = vadd.f32 %v5192, 1.0
        %v5250 = vadd.f32 %v5194, 1.0
        %v5251 = vadd.f32 %v5196, 1.0
        %v5252 = vadd.f32 %v5198, 1.0
        %v5253 = vadd.f32 %v5200, 1.0
        %v5254 = vadd.f32 %v5202, 1.0
        %v5255 = vadd.f32 %v5204, 1.0
        %v5256 = vadd.f32 %v5206, 1.0
        %v5257 = vadd.f32 %v5208, 1.0
        %v5258 = vadd.f32 %v5210, 1.0
        %v5259 = vadd.f32 %v5212, 1.0
        %v5260 = vadd.f32 %v5214, 1.0
        %v5261 = vadd.f32 %v5216, 1.0
        %v5262 = vadd.f32 %v5218, 1.0
        %v5263 = vadd.f32 %v5220, 1.0
        %v5264 = vadd.f32 %v5222, 1.0
        %v5265 = vadd.f32 %v5224, 1.0
        %v5266 = vadd.f32 %v5226, 1.0
        %v5267 = vadd.f32 %v5228, 1.0
        %v5268 = vadd.f32 %v5230, 1.0
        %v5269 = vadd.f32 %v5232, 1.0
        %v5270 = vadd.f32 %v5234, 1.0
        %v5271 = vadd.f32 %v5236, 1.0
        %v5272 = vadd.f32 %v5238, 1.0
        %v5273 = vadd.f32 %v5240, 1.0
        %v5274 = vadd.f32 %v5242, 1.0
        %v5275 = vrcp.pop %v5243
        %v5276 = vmul.f32 1.0, %v5275
        %v5277 = vrcp.pop %v5244
        %v5278 = vmul.f32 1.0, %v5277
        %v5279 = vrcp.pop %v5245
        %v5280 = vmul.f32 1.0, %v5279
        %v5281 = vrcp.pop %v5246
        %v5282 = vmul.f32 1.0, %v5281
        %v5283 = vrcp.pop %v5247
        %v5284 = vmul.f32 1.0, %v5283
        %v5285 = vrcp.pop %v5248
        %v5286 = vmul.f32 1.0, %v5285
        %v5287 = vrcp.pop %v5249
        %v5288 = vmul.f32 1.0, %v5287
        %v5289 = vrcp.pop %v5250
        %v5290 = vmul.f32 1.0, %v5289
        %v5291 = vrcp.pop %v5251
        %v5292 = vmul.f32 1.0, %v5291
        %v5293 = vrcp.pop %v5252
        %v5294 = vmul.f32 1.0, %v5293
        %v5295 = vrcp.pop %v5253
        %v5296 = vmul.f32 1.0, %v5295
        %v5297 = vrcp.pop %v5254
        %v5298 = vmul.f32 1.0, %v5297
        %v5299 = vrcp.pop %v5255
        %v5300 = vmul.f32 1.0, %v5299
        %v5301 = vrcp.pop %v5256
        %v5302 = vmul.f32 1.0, %v5301
        %v5303 = vrcp.pop %v5257
        %v5304 = vmul.f32 1.0, %v5303
        %v5305 = vrcp.pop %v5258
        %v5306 = vmul.f32 1.0, %v5305
        %v5307 = vrcp.pop %v5259
        %v5308 = vmul.f32 1.0, %v5307
        %v5309 = vrcp.pop %v5260
        %v5310 = vmul.f32 1.0, %v5309
        %v5311 = vrcp.pop %v5261
        %v5312 = vmul.f32 1.0, %v5311
        %v5313 = vrcp.pop %v5262
        %v5314 = vmul.f32 1.0, %v5313
        %v5315 = vrcp.pop %v5263
        %v5316 = vmul.f32 1.0, %v5315
        %v5317 = vrcp.pop %v5264
        %v5318 = vmul.f32 1.0, %v5317
        %v5319 = vrcp.pop %v5265
        %v5320 = vmul.f32 1.0, %v5319
        %v5321 = vrcp.pop %v5266
        %v5322 = vmul.f32 1.0, %v5321
        %v5323 = vrcp.pop %v5267
        %v5324 = vmul.f32 1.0, %v5323
        %v5325 = vrcp.pop %v5268
        %v5326 = vmul.f32 1.0, %v5325
        %v5327 = vrcp.pop %v5269
        %v5328 = vmul.f32 1.0, %v5327
        %v5329 = vrcp.pop %v5270
        %v5330 = vmul.f32 1.0, %v5329
        %v5331 = vrcp.pop %v5271
        %v5332 = vmul.f32 1.0, %v5331
        %v5333 = vrcp.pop %v5272
        %v5334 = vmul.f32 1.0, %v5333
        %v5335 = vrcp.pop %v5273
        %v5336 = vmul.f32 1.0, %v5335
        %v5337 = vrcp.pop %v5274
        %v5338 = vmul.f32 1.0, %v5337
        %v5339 = vcombine.low %v5276, %v5284
        %v5340 = vcombine.high %v5276, %v5284
        %v5342 = vunpack.c.l.s4 1983009808
        %v5343 = vunpack.c.0.s8 %v5342
        %v5344 = vlaneseq
        %v5345 = vshrl.u32 %v5344, 7
        %v5346 = vsub.s32 %v5343, %v5345
        %v5347 = vrot.slane %v5339, %v5346
        %v5349 = vunpack.c.l.s4 1983009808
        %v5350 = vunpack.c.0.s8 %v5349
        %v5351 = vlaneseq
        %v5352 = vshrl.u32 %v5351, 7
        %v5353 = vsub.s32 %v5350, %v5352
        %v5354 = vrot.slane %v5340, %v5353
        %v5355 = vcombine.low %v5280, %v5288
        %v5356 = vcombine.high %v5280, %v5288
        %v5358 = vunpack.c.l.s4 1983009808
        %v5359 = vunpack.c.0.s8 %v5358
        %v5360 = vlaneseq
        %v5361 = vshrl.u32 %v5360, 7
        %v5362 = vsub.s32 %v5359, %v5361
        %v5363 = vrot.slane %v5355, %v5362
        %v5365 = vunpack.c.l.s4 1983009808
        %v5366 = vunpack.c.0.s8 %v5365
        %v5367 = vlaneseq
        %v5368 = vshrl.u32 %v5367, 7
        %v5369 = vsub.s32 %v5366, %v5368
        %v5370 = vrot.slane %v5356, %v5369
        %v5371 = vcombine.low %v5292, %v5300
        %v5372 = vcombine.high %v5292, %v5300
        %v5374 = vunpack.c.l.s4 1983009808
        %v5375 = vunpack.c.0.s8 %v5374
        %v5376 = vlaneseq
        %v5377 = vshrl.u32 %v5376, 7
        %v5378 = vsub.s32 %v5375, %v5377
        %v5379 = vrot.slane %v5371, %v5378
        %v5381 = vunpack.c.l.s4 1983009808
        %v5382 = vunpack.c.0.s8 %v5381
        %v5383 = vlaneseq
        %v5384 = vshrl.u32 %v5383, 7
        %v5385 = vsub.s32 %v5382, %v5384
        %v5386 = vrot.slane %v5372, %v5385
        %v5387 = vcombine.low %v5296, %v5304
        %v5388 = vcombine.high %v5296, %v5304
        %v5390 = vunpack.c.l.s4 1983009808
        %v5391 = vunpack.c.0.s8 %v5390
        %v5392 = vlaneseq
        %v5393 = vshrl.u32 %v5392, 7
        %v5394 = vsub.s32 %v5391, %v5393
        %v5395 = vrot.slane %v5387, %v5394
        %v5397 = vunpack.c.l.s4 1983009808
        %v5398 = vunpack.c.0.s8 %v5397
        %v5399 = vlaneseq
        %v5400 = vshrl.u32 %v5399, 7
        %v5401 = vsub.s32 %v5398, %v5400
        %v5402 = vrot.slane %v5388, %v5401
        %v5403 = vcombine.low %v5347, %v5363
        %v5404 = vcombine.high %v5347, %v5363
        %v5406 = vunpack.c.l.s4 1934713408
        %v5407 = vunpack.c.0.s8 %v5406
        %v5408 = vlaneseq
        %v5409 = vshrl.u32 %v5408, 7
        %v5410 = vsub.s32 %v5407, %v5409
        %v5411 = vrot.slane %v5403, %v5410
        %v5413 = vunpack.c.l.s4 1934713408
        %v5414 = vunpack.c.0.s8 %v5413
        %v5415 = vlaneseq
        %v5416 = vshrl.u32 %v5415, 7
        %v5417 = vsub.s32 %v5414, %v5416
        %v5418 = vrot.slane %v5404, %v5417
        %v5419 = vcombine.low %v5354, %v5370
        %v5420 = vcombine.high %v5354, %v5370
        %v5422 = vunpack.c.l.s4 1934713408
        %v5423 = vunpack.c.0.s8 %v5422
        %v5424 = vlaneseq
        %v5425 = vshrl.u32 %v5424, 7
        %v5426 = vsub.s32 %v5423, %v5425
        %v5427 = vrot.slane %v5419, %v5426
        %v5429 = vunpack.c.l.s4 1934713408
        %v5430 = vunpack.c.0.s8 %v5429
        %v5431 = vlaneseq
        %v5432 = vshrl.u32 %v5431, 7
        %v5433 = vsub.s32 %v5430, %v5432
        %v5434 = vrot.slane %v5420, %v5433
        %v5435 = vcombine.low %v5379, %v5395
        %v5436 = vcombine.high %v5379, %v5395
        %v5438 = vunpack.c.l.s4 1934713408
        %v5439 = vunpack.c.0.s8 %v5438
        %v5440 = vlaneseq
        %v5441 = vshrl.u32 %v5440, 7
        %v5442 = vsub.s32 %v5439, %v5441
        %v5443 = vrot.slane %v5435, %v5442
        %v5445 = vunpack.c.l.s4 1934713408
        %v5446 = vunpack.c.0.s8 %v5445
        %v5447 = vlaneseq
        %v5448 = vshrl.u32 %v5447, 7
        %v5449 = vsub.s32 %v5446, %v5448
        %v5450 = vrot.slane %v5436, %v5449
        %v5451 = vcombine.low %v5386, %v5402
        %v5452 = vcombine.high %v5386, %v5402
        %v5454 = vunpack.c.l.s4 1934713408
        %v5455 = vunpack.c.0.s8 %v5454
        %v5456 = vlaneseq
        %v5457 = vshrl.u32 %v5456, 7
        %v5458 = vsub.s32 %v5455, %v5457
        %v5459 = vrot.slane %v5451, %v5458
        %v5461 = vunpack.c.l.s4 1934713408
        %v5462 = vunpack.c.0.s8 %v5461
        %v5463 = vlaneseq
        %v5464 = vshrl.u32 %v5463, 7
        %v5465 = vsub.s32 %v5462, %v5464
        %v5466 = vrot.slane %v5452, %v5465
        %v5467 = vcombine.low %v5411, %v5443
        %v5468 = vcombine.high %v5411, %v5443
        %v5469 = vcombine.low %v5418, %v5450
        %v5470 = vcombine.high %v5418, %v5450
        %v5471 = vcombine.low %v5427, %v5459
        %v5472 = vcombine.high %v5427, %v5459
        %v5473 = vcombine.low %v5434, %v5466
        %v5474 = vcombine.high %v5434, %v5466
        %v5475 = vcombine.low %v5308, %v5316
        %v5476 = vcombine.high %v5308, %v5316
        %v5478 = vunpack.c.l.s4 1983009808
        %v5479 = vunpack.c.0.s8 %v5478
        %v5480 = vlaneseq
        %v5481 = vshrl.u32 %v5480, 7
        %v5482 = vsub.s32 %v5479, %v5481
        %v5483 = vrot.slane %v5475, %v5482
        %v5485 = vunpack.c.l.s4 1983009808
        %v5486 = vunpack.c.0.s8 %v5485
        %v5487 = vlaneseq
        %v5488 = vshrl.u32 %v5487, 7
        %v5489 = vsub.s32 %v5486, %v5488
        %v5490 = vrot.slane %v5476, %v5489
        %v5491 = vcombine.low %v5312, %v5320
        %v5492 = vcombine.high %v5312, %v5320
        %v5494 = vunpack.c.l.s4 1983009808
        %v5495 = vunpack.c.0.s8 %v5494
        %v5496 = vlaneseq
        %v5497 = vshrl.u32 %v5496, 7
        %v5498 = vsub.s32 %v5495, %v5497
        %v5499 = vrot.slane %v5491, %v5498
        %v5501 = vunpack.c.l.s4 1983009808
        %v5502 = vunpack.c.0.s8 %v5501
        %v5503 = vlaneseq
        %v5504 = vshrl.u32 %v5503, 7
        %v5505 = vsub.s32 %v5502, %v5504
        %v5506 = vrot.slane %v5492, %v5505
        %v5507 = vcombine.low %v5324, %v5332
        %v5508 = vcombine.high %v5324, %v5332
        %v5510 = vunpack.c.l.s4 1983009808
        %v5511 = vunpack.c.0.s8 %v5510
        %v5512 = vlaneseq
        %v5513 = vshrl.u32 %v5512, 7
        %v5514 = vsub.s32 %v5511, %v5513
        %v5515 = vrot.slane %v5507, %v5514
        %v5517 = vunpack.c.l.s4 1983009808
        %v5518 = vunpack.c.0.s8 %v5517
        %v5519 = vlaneseq
        %v5520 = vshrl.u32 %v5519, 7
        %v5521 = vsub.s32 %v5518, %v5520
        %v5522 = vrot.slane %v5508, %v5521
        %v5523 = vcombine.low %v5328, %v5336
        %v5524 = vcombine.high %v5328, %v5336
        %v5526 = vunpack.c.l.s4 1983009808
        %v5527 = vunpack.c.0.s8 %v5526
        %v5528 = vlaneseq
        %v5529 = vshrl.u32 %v5528, 7
        %v5530 = vsub.s32 %v5527, %v5529
        %v5531 = vrot.slane %v5523, %v5530
        %v5533 = vunpack.c.l.s4 1983009808
        %v5534 = vunpack.c.0.s8 %v5533
        %v5535 = vlaneseq
        %v5536 = vshrl.u32 %v5535, 7
        %v5537 = vsub.s32 %v5534, %v5536
        %v5538 = vrot.slane %v5524, %v5537
        %v5539 = vcombine.low %v5483, %v5499
        %v5540 = vcombine.high %v5483, %v5499
        %v5542 = vunpack.c.l.s4 1934713408
        %v5543 = vunpack.c.0.s8 %v5542
        %v5544 = vlaneseq
        %v5545 = vshrl.u32 %v5544, 7
        %v5546 = vsub.s32 %v5543, %v5545
        %v5547 = vrot.slane %v5539, %v5546
        %v5549 = vunpack.c.l.s4 1934713408
        %v5550 = vunpack.c.0.s8 %v5549
        %v5551 = vlaneseq
        %v5552 = vshrl.u32 %v5551, 7
        %v5553 = vsub.s32 %v5550, %v5552
        %v5554 = vrot.slane %v5540, %v5553
        %v5555 = vcombine.low %v5490, %v5506
        %v5556 = vcombine.high %v5490, %v5506
        %v5558 = vunpack.c.l.s4 1934713408
        %v5559 = vunpack.c.0.s8 %v5558
        %v5560 = vlaneseq
        %v5561 = vshrl.u32 %v5560, 7
        %v5562 = vsub.s32 %v5559, %v5561
        %v5563 = vrot.slane %v5555, %v5562
        %v5565 = vunpack.c.l.s4 1934713408
        %v5566 = vunpack.c.0.s8 %v5565
        %v5567 = vlaneseq
        %v5568 = vshrl.u32 %v5567, 7
        %v5569 = vsub.s32 %v5566, %v5568
        %v5570 = vrot.slane %v5556, %v5569
        %v5571 = vcombine.low %v5515, %v5531
        %v5572 = vcombine.high %v5515, %v5531
        %v5574 = vunpack.c.l.s4 1934713408
        %v5575 = vunpack.c.0.s8 %v5574
        %v5576 = vlaneseq
        %v5577 = vshrl.u32 %v5576, 7
        %v5578 = vsub.s32 %v5575, %v5577
        %v5579 = vrot.slane %v5571, %v5578
        %v5581 = vunpack.c.l.s4 1934713408
        %v5582 = vunpack.c.0.s8 %v5581
        %v5583 = vlaneseq
        %v5584 = vshrl.u32 %v5583, 7
        %v5585 = vsub.s32 %v5582, %v5584
        %v5586 = vrot.slane %v5572, %v5585
        %v5587 = vcombine.low %v5522, %v5538
        %v5588 = vcombine.high %v5522, %v5538
        %v5590 = vunpack.c.l.s4 1934713408
        %v5591 = vunpack.c.0.s8 %v5590
        %v5592 = vlaneseq
        %v5593 = vshrl.u32 %v5592, 7
        %v5594 = vsub.s32 %v5591, %v5593
        %v5595 = vrot.slane %v5587, %v5594
        %v5597 = vunpack.c.l.s4 1934713408
        %v5598 = vunpack.c.0.s8 %v5597
        %v5599 = vlaneseq
        %v5600 = vshrl.u32 %v5599, 7
        %v5601 = vsub.s32 %v5598, %v5600
        %v5602 = vrot.slane %v5588, %v5601
        %v5603 = vcombine.low %v5547, %v5579
        %v5604 = vcombine.high %v5547, %v5579
        %v5605 = vcombine.low %v5554, %v5586
        %v5606 = vcombine.high %v5554, %v5586
        %v5607 = vcombine.low %v5563, %v5595
        %v5608 = vcombine.high %v5563, %v5595
        %v5609 = vcombine.low %v5570, %v5602
        %v5610 = vcombine.high %v5570, %v5602
        %v5611 = vcombine.low %v5278, %v5286
        %v5612 = vcombine.high %v5278, %v5286
        %v5614 = vunpack.c.l.s4 1983009808
        %v5615 = vunpack.c.0.s8 %v5614
        %v5616 = vlaneseq
        %v5617 = vshrl.u32 %v5616, 7
        %v5618 = vsub.s32 %v5615, %v5617
        %v5619 = vrot.slane %v5611, %v5618
        %v5621 = vunpack.c.l.s4 1983009808
        %v5622 = vunpack.c.0.s8 %v5621
        %v5623 = vlaneseq
        %v5624 = vshrl.u32 %v5623, 7
        %v5625 = vsub.s32 %v5622, %v5624
        %v5626 = vrot.slane %v5612, %v5625
        %v5627 = vcombine.low %v5282, %v5290
        %v5628 = vcombine.high %v5282, %v5290
        %v5630 = vunpack.c.l.s4 1983009808
        %v5631 = vunpack.c.0.s8 %v5630
        %v5632 = vlaneseq
        %v5633 = vshrl.u32 %v5632, 7
        %v5634 = vsub.s32 %v5631, %v5633
        %v5635 = vrot.slane %v5627, %v5634
        %v5637 = vunpack.c.l.s4 1983009808
        %v5638 = vunpack.c.0.s8 %v5637
        %v5639 = vlaneseq
        %v5640 = vshrl.u32 %v5639, 7
        %v5641 = vsub.s32 %v5638, %v5640
        %v5642 = vrot.slane %v5628, %v5641
        %v5643 = vcombine.low %v5294, %v5302
        %v5644 = vcombine.high %v5294, %v5302
        %v5646 = vunpack.c.l.s4 1983009808
        %v5647 = vunpack.c.0.s8 %v5646
        %v5648 = vlaneseq
        %v5649 = vshrl.u32 %v5648, 7
        %v5650 = vsub.s32 %v5647, %v5649
        %v5651 = vrot.slane %v5643, %v5650
        %v5653 = vunpack.c.l.s4 1983009808
        %v5654 = vunpack.c.0.s8 %v5653
        %v5655 = vlaneseq
        %v5656 = vshrl.u32 %v5655, 7
        %v5657 = vsub.s32 %v5654, %v5656
        %v5658 = vrot.slane %v5644, %v5657
        %v5659 = vcombine.low %v5298, %v5306
        %v5660 = vcombine.high %v5298, %v5306
        %v5662 = vunpack.c.l.s4 1983009808
        %v5663 = vunpack.c.0.s8 %v5662
        %v5664 = vlaneseq
        %v5665 = vshrl.u32 %v5664, 7
        %v5666 = vsub.s32 %v5663, %v5665
        %v5667 = vrot.slane %v5659, %v5666
        %v5669 = vunpack.c.l.s4 1983009808
        %v5670 = vunpack.c.0.s8 %v5669
        %v5671 = vlaneseq
        %v5672 = vshrl.u32 %v5671, 7
        %v5673 = vsub.s32 %v5670, %v5672
        %v5674 = vrot.slane %v5660, %v5673
        %v5675 = vcombine.low %v5619, %v5635
        %v5676 = vcombine.high %v5619, %v5635
        %v5678 = vunpack.c.l.s4 1934713408
        %v5679 = vunpack.c.0.s8 %v5678
        %v5680 = vlaneseq
        %v5681 = vshrl.u32 %v5680, 7
        %v5682 = vsub.s32 %v5679, %v5681
        %v5683 = vrot.slane %v5675, %v5682
        %v5685 = vunpack.c.l.s4 1934713408
        %v5686 = vunpack.c.0.s8 %v5685
        %v5687 = vlaneseq
        %v5688 = vshrl.u32 %v5687, 7
        %v5689 = vsub.s32 %v5686, %v5688
        %v5690 = vrot.slane %v5676, %v5689
        %v5691 = vcombine.low %v5626, %v5642
        %v5692 = vcombine.high %v5626, %v5642
        %v5694 = vunpack.c.l.s4 1934713408
        %v5695 = vunpack.c.0.s8 %v5694
        %v5696 = vlaneseq
        %v5697 = vshrl.u32 %v5696, 7
        %v5698 = vsub.s32 %v5695, %v5697
        %v5699 = vrot.slane %v5691, %v5698
        %v5701 = vunpack.c.l.s4 1934713408
        %v5702 = vunpack.c.0.s8 %v5701
        %v5703 = vlaneseq
        %v5704 = vshrl.u32 %v5703, 7
        %v5705 = vsub.s32 %v5702, %v5704
        %v5706 = vrot.slane %v5692, %v5705
        %v5707 = vcombine.low %v5651, %v5667
        %v5708 = vcombine.high %v5651, %v5667
        %v5710 = vunpack.c.l.s4 1934713408
        %v5711 = vunpack.c.0.s8 %v5710
        %v5712 = vlaneseq
        %v5713 = vshrl.u32 %v5712, 7
        %v5714 = vsub.s32 %v5711, %v5713
        %v5715 = vrot.slane %v5707, %v5714
        %v5717 = vunpack.c.l.s4 1934713408
        %v5718 = vunpack.c.0.s8 %v5717
        %v5719 = vlaneseq
        %v5720 = vshrl.u32 %v5719, 7
        %v5721 = vsub.s32 %v5718, %v5720
        %v5722 = vrot.slane %v5708, %v5721
        %v5723 = vcombine.low %v5658, %v5674
        %v5724 = vcombine.high %v5658, %v5674
        %v5726 = vunpack.c.l.s4 1934713408
        %v5727 = vunpack.c.0.s8 %v5726
        %v5728 = vlaneseq
        %v5729 = vshrl.u32 %v5728, 7
        %v5730 = vsub.s32 %v5727, %v5729
        %v5731 = vrot.slane %v5723, %v5730
        %v5733 = vunpack.c.l.s4 1934713408
        %v5734 = vunpack.c.0.s8 %v5733
        %v5735 = vlaneseq
        %v5736 = vshrl.u32 %v5735, 7
        %v5737 = vsub.s32 %v5734, %v5736
        %v5738 = vrot.slane %v5724, %v5737
        %v5739 = vcombine.low %v5683, %v5715
        %v5740 = vcombine.high %v5683, %v5715
        %v5741 = vcombine.low %v5690, %v5722
        %v5742 = vcombine.high %v5690, %v5722
        %v5743 = vcombine.low %v5699, %v5731
        %v5744 = vcombine.high %v5699, %v5731
        %v5745 = vcombine.low %v5706, %v5738
        %v5746 = vcombine.high %v5706, %v5738
        %v5747 = vcombine.low %v5310, %v5318
        %v5748 = vcombine.high %v5310, %v5318
        %v5750 = vunpack.c.l.s4 1983009808
        %v5751 = vunpack.c.0.s8 %v5750
        %v5752 = vlaneseq
        %v5753 = vshrl.u32 %v5752, 7
        %v5754 = vsub.s32 %v5751, %v5753
        %v5755 = vrot.slane %v5747, %v5754
        %v5757 = vunpack.c.l.s4 1983009808
        %v5758 = vunpack.c.0.s8 %v5757
        %v5759 = vlaneseq
        %v5760 = vshrl.u32 %v5759, 7
        %v5761 = vsub.s32 %v5758, %v5760
        %v5762 = vrot.slane %v5748, %v5761
        %v5763 = vcombine.low %v5314, %v5322
        %v5764 = vcombine.high %v5314, %v5322
        %v5766 = vunpack.c.l.s4 1983009808
        %v5767 = vunpack.c.0.s8 %v5766
        %v5768 = vlaneseq
        %v5769 = vshrl.u32 %v5768, 7
        %v5770 = vsub.s32 %v5767, %v5769
        %v5771 = vrot.slane %v5763, %v5770
        %v5773 = vunpack.c.l.s4 1983009808
        %v5774 = vunpack.c.0.s8 %v5773
        %v5775 = vlaneseq
        %v5776 = vshrl.u32 %v5775, 7
        %v5777 = vsub.s32 %v5774, %v5776
        %v5778 = vrot.slane %v5764, %v5777
        %v5779 = vcombine.low %v5326, %v5334
        %v5780 = vcombine.high %v5326, %v5334
        %v5782 = vunpack.c.l.s4 1983009808
        %v5783 = vunpack.c.0.s8 %v5782
        %v5784 = vlaneseq
        %v5785 = vshrl.u32 %v5784, 7
        %v5786 = vsub.s32 %v5783, %v5785
        %v5787 = vrot.slane %v5779, %v5786
        %v5789 = vunpack.c.l.s4 1983009808
        %v5790 = vunpack.c.0.s8 %v5789
        %v5791 = vlaneseq
        %v5792 = vshrl.u32 %v5791, 7
        %v5793 = vsub.s32 %v5790, %v5792
        %v5794 = vrot.slane %v5780, %v5793
        %v5795 = vcombine.low %v5330, %v5338
        %v5796 = vcombine.high %v5330, %v5338
        %v5798 = vunpack.c.l.s4 1983009808
        %v5799 = vunpack.c.0.s8 %v5798
        %v5800 = vlaneseq
        %v5801 = vshrl.u32 %v5800, 7
        %v5802 = vsub.s32 %v5799, %v5801
        %v5803 = vrot.slane %v5795, %v5802
        %v5805 = vunpack.c.l.s4 1983009808
        %v5806 = vunpack.c.0.s8 %v5805
        %v5807 = vlaneseq
        %v5808 = vshrl.u32 %v5807, 7
        %v5809 = vsub.s32 %v5806, %v5808
        %v5810 = vrot.slane %v5796, %v5809
        %v5811 = vcombine.low %v5755, %v5771
        %v5812 = vcombine.high %v5755, %v5771
        %v5814 = vunpack.c.l.s4 1934713408
        %v5815 = vunpack.c.0.s8 %v5814
        %v5816 = vlaneseq
        %v5817 = vshrl.u32 %v5816, 7
        %v5818 = vsub.s32 %v5815, %v5817
        %v5819 = vrot.slane %v5811, %v5818
        %v5821 = vunpack.c.l.s4 1934713408
        %v5822 = vunpack.c.0.s8 %v5821
        %v5823 = vlaneseq
        %v5824 = vshrl.u32 %v5823, 7
        %v5825 = vsub.s32 %v5822, %v5824
        %v5826 = vrot.slane %v5812, %v5825
        %v5827 = vcombine.low %v5762, %v5778
        %v5828 = vcombine.high %v5762, %v5778
        %v5830 = vunpack.c.l.s4 1934713408
        %v5831 = vunpack.c.0.s8 %v5830
        %v5832 = vlaneseq
        %v5833 = vshrl.u32 %v5832, 7
        %v5834 = vsub.s32 %v5831, %v5833
        %v5835 = vrot.slane %v5827, %v5834
        %v5837 = vunpack.c.l.s4 1934713408
        %v5838 = vunpack.c.0.s8 %v5837
        %v5839 = vlaneseq
        %v5840 = vshrl.u32 %v5839, 7
        %v5841 = vsub.s32 %v5838, %v5840
        %v5842 = vrot.slane %v5828, %v5841
        %v5843 = vcombine.low %v5787, %v5803
        %v5844 = vcombine.high %v5787, %v5803
        %v5846 = vunpack.c.l.s4 1934713408
        %v5847 = vunpack.c.0.s8 %v5846
        %v5848 = vlaneseq
        %v5849 = vshrl.u32 %v5848, 7
        %v5850 = vsub.s32 %v5847, %v5849
        %v5851 = vrot.slane %v5843, %v5850
        %v5853 = vunpack.c.l.s4 1934713408
        %v5854 = vunpack.c.0.s8 %v5853
        %v5855 = vlaneseq
        %v5856 = vshrl.u32 %v5855, 7
        %v5857 = vsub.s32 %v5854, %v5856
        %v5858 = vrot.slane %v5844, %v5857
        %v5859 = vcombine.low %v5794, %v5810
        %v5860 = vcombine.high %v5794, %v5810
        %v5862 = vunpack.c.l.s4 1934713408
        %v5863 = vunpack.c.0.s8 %v5862
        %v5864 = vlaneseq
        %v5865 = vshrl.u32 %v5864, 7
        %v5866 = vsub.s32 %v5863, %v5865
        %v5867 = vrot.slane %v5859, %v5866
        %v5869 = vunpack.c.l.s4 1934713408
        %v5870 = vunpack.c.0.s8 %v5869
        %v5871 = vlaneseq
        %v5872 = vshrl.u32 %v5871, 7
        %v5873 = vsub.s32 %v5870, %v5872
        %v5874 = vrot.slane %v5860, %v5873
        %v5875 = vcombine.low %v5819, %v5851
        %v5876 = vcombine.high %v5819, %v5851
        %v5877 = vcombine.low %v5826, %v5858
        %v5878 = vcombine.high %v5826, %v5858
        %v5879 = vcombine.low %v5835, %v5867
        %v5880 = vcombine.high %v5835, %v5867
        %v5881 = vcombine.low %v5842, %v5874
        %v5882 = vcombine.high %v5842, %v5874
        %5885 = vrot.lane.b32.xlu0 %v5468, 2
        %v5886 = vpop.permute.xlu0 %5885
        %5887 = vrot.lane.b32.xlu0 %v5604, 2
        %v5888 = vpop.permute.xlu0 %5887
        %5893 = vrot.lane.b32.xlu0 %v5469, 4
        %v5894 = vpop.permute.xlu0 %5893
        %5895 = vrot.lane.b32.xlu0 %v5605, 4
        %v5896 = vpop.permute.xlu0 %5895
        %5901 = vrot.lane.b32.xlu0 %v5470, 6
        %v5902 = vpop.permute.xlu0 %5901
        %5903 = vrot.lane.b32.xlu0 %v5606, 6
        %v5904 = vpop.permute.xlu0 %5903
        %5909 = vrot.lane.b32.xlu0 %v5471, 8
        %v5910 = vpop.permute.xlu0 %5909
        %5911 = vrot.lane.b32.xlu0 %v5607, 8
        %v5912 = vpop.permute.xlu0 %5911
        %5917 = vrot.lane.b32.xlu0 %v5472, 10
        %v5918 = vpop.permute.xlu0 %5917
        %5919 = vrot.lane.b32.xlu0 %v5608, 10
        %v5920 = vpop.permute.xlu0 %5919
        %5925 = vrot.lane.b32.xlu0 %v5473, 12
        %v5926 = vpop.permute.xlu0 %5925
        %5927 = vrot.lane.b32.xlu0 %v5609, 12
        %v5928 = vpop.permute.xlu0 %5927
        %5933 = vrot.lane.b32.xlu0 %v5474, 14
        %v5934 = vpop.permute.xlu0 %5933
        %5935 = vrot.lane.b32.xlu0 %v5610, 14
        %v5936 = vpop.permute.xlu0 %5935
        %5941 = vrot.lane.b32.xlu0 %v5739, 16
        %v5942 = vpop.permute.xlu0 %5941
        %5943 = vrot.lane.b32.xlu0 %v5875, 16
        %v5944 = vpop.permute.xlu0 %5943
        %5949 = vrot.lane.b32.xlu0 %v5740, 18
        %v5950 = vpop.permute.xlu0 %5949
        %5951 = vrot.lane.b32.xlu0 %v5876, 18
        %v5952 = vpop.permute.xlu0 %5951
        %5957 = vrot.lane.b32.xlu0 %v5741, 20
        %v5958 = vpop.permute.xlu0 %5957
        %5959 = vrot.lane.b32.xlu0 %v5877, 20
        %v5960 = vpop.permute.xlu0 %5959
        %5965 = vrot.lane.b32.xlu0 %v5742, 22
        %v5966 = vpop.permute.xlu0 %5965
        %5967 = vrot.lane.b32.xlu0 %v5878, 22
        %v5968 = vpop.permute.xlu0 %5967
        %5973 = vrot.lane.b32.xlu0 %v5743, 24
        %v5974 = vpop.permute.xlu0 %5973
        %5975 = vrot.lane.b32.xlu0 %v5879, 24
        %v5976 = vpop.permute.xlu0 %5975
        %5981 = vrot.lane.b32.xlu0 %v5744, 26
        %v5982 = vpop.permute.xlu0 %5981
        %5983 = vrot.lane.b32.xlu0 %v5880, 26
        %v5984 = vpop.permute.xlu0 %5983
        %5989 = vrot.lane.b32.xlu0 %v5745, 28
        %v5990 = vpop.permute.xlu0 %5989
        %5991 = vrot.lane.b32.xlu0 %v5881, 28
        %v5992 = vpop.permute.xlu0 %5991
        %5997 = vrot.lane.b32.xlu0 %v5746, 30
        %v5998 = vpop.permute.xlu0 %5997
        %5999 = vrot.lane.b32.xlu0 %v5882, 30
        %v6000 = vpop.permute.xlu0 %5999
        %vm6003 = vcmask 15360
        %v6004 = vsel %vm6003, %v5467, %v5886
        %v6005 = vsel %vm6003, %v5603, %v5888
        %vm6006 = vcmask 31744
        %v6007 = vsel %vm6006, %v6004, %v5894
        %v6008 = vsel %vm6006, %v6005, %v5896
        %vm6009 = vcmask 48128
        %v6010 = vsel %vm6009, %v6007, %v5902
        %v6011 = vsel %vm6009, %v6008, %v5904
        %vm6012 = vcmask 64512
        %v6013 = vsel %vm6012, %v6010, %v5910
        %v6014 = vsel %vm6012, %v6011, %v5912
        %vm6015 = vcmask 80896
        %v6016 = vsel %vm6015, %v6013, %v5918
        %v6017 = vsel %vm6015, %v6014, %v5920
        %vm6018 = vcmask 97280
        %v6019 = vsel %vm6018, %v6016, %v5926
        %v6020 = vsel %vm6018, %v6017, %v5928
        %vm6021 = vcmask 113664
        %v6022 = vsel %vm6021, %v6019, %v5934
        %v6023 = vsel %vm6021, %v6020, %v5936
        %vm6024 = vcmask 130048
        %v6025 = vsel %vm6024, %v6022, %v5942
        %v6026 = vsel %vm6024, %v6023, %v5944
        %vm6027 = vcmask 146432
        %v6028 = vsel %vm6027, %v6025, %v5950
        %v6029 = vsel %vm6027, %v6026, %v5952
        %vm6030 = vcmask 162816
        %v6031 = vsel %vm6030, %v6028, %v5958
        %v6032 = vsel %vm6030, %v6029, %v5960
        %vm6033 = vcmask 179200
        %v6034 = vsel %vm6033, %v6031, %v5966
        %v6035 = vsel %vm6033, %v6032, %v5968
        %vm6036 = vcmask 195584
        %v6037 = vsel %vm6036, %v6034, %v5974
        %v6038 = vsel %vm6036, %v6035, %v5976
        %vm6039 = vcmask 211968
        %v6040 = vsel %vm6039, %v6037, %v5982
        %v6041 = vsel %vm6039, %v6038, %v5984
        %vm6042 = vcmask 228352
        %v6043 = vsel %vm6042, %v6040, %v5990
        %v6044 = vsel %vm6042, %v6041, %v5992
        %vm6045 = vcmask 244736
        %v6046 = vsel %vm6045, %v6043, %v5998
        %v6047 = vsel %vm6045, %v6044, %v6000
        %6080 = vrot.lane.b32.xlu0 %v5276, 126
        %v6081 = vpop.permute.xlu0 %6080
        %6082 = vrot.lane.b32.xlu0 %v5278, 126
        %v6083 = vpop.permute.xlu0 %6082
        %6084 = vrot.lane.b32.xlu0 %v5280, 126
        %v6085 = vpop.permute.xlu0 %6084
        %6086 = vrot.lane.b32.xlu0 %v5282, 126
        %v6087 = vpop.permute.xlu0 %6086
        %6088 = vrot.lane.b32.xlu0 %v5284, 126
        %v6089 = vpop.permute.xlu0 %6088
        %6090 = vrot.lane.b32.xlu0 %v5286, 126
        %v6091 = vpop.permute.xlu0 %6090
        %6092 = vrot.lane.b32.xlu0 %v5288, 126
        %v6093 = vpop.permute.xlu0 %6092
        %6094 = vrot.lane.b32.xlu0 %v5290, 126
        %v6095 = vpop.permute.xlu0 %6094
        %6096 = vrot.lane.b32.xlu0 %v5292, 126
        %v6097 = vpop.permute.xlu0 %6096
        %6098 = vrot.lane.b32.xlu0 %v5294, 126
        %v6099 = vpop.permute.xlu0 %6098
        %6100 = vrot.lane.b32.xlu0 %v5296, 126
        %v6101 = vpop.permute.xlu0 %6100
        %6102 = vrot.lane.b32.xlu0 %v5298, 126
        %v6103 = vpop.permute.xlu0 %6102
        %6104 = vrot.lane.b32.xlu0 %v5300, 126
        %v6105 = vpop.permute.xlu0 %6104
        %6106 = vrot.lane.b32.xlu0 %v5302, 126
        %v6107 = vpop.permute.xlu0 %6106
        %6108 = vrot.lane.b32.xlu0 %v5304, 126
        %v6109 = vpop.permute.xlu0 %6108
        %6110 = vrot.lane.b32.xlu0 %v5306, 126
        %v6111 = vpop.permute.xlu0 %6110
        %6112 = vrot.lane.b32.xlu0 %v5308, 126
        %v6113 = vpop.permute.xlu0 %6112
        %6114 = vrot.lane.b32.xlu0 %v5310, 126
        %v6115 = vpop.permute.xlu0 %6114
        %6116 = vrot.lane.b32.xlu0 %v5312, 126
        %v6117 = vpop.permute.xlu0 %6116
        %6118 = vrot.lane.b32.xlu0 %v5314, 126
        %v6119 = vpop.permute.xlu0 %6118
        %6120 = vrot.lane.b32.xlu0 %v5316, 126
        %v6121 = vpop.permute.xlu0 %6120
        %6122 = vrot.lane.b32.xlu0 %v5318, 126
        %v6123 = vpop.permute.xlu0 %6122
        %6124 = vrot.lane.b32.xlu0 %v5320, 126
        %v6125 = vpop.permute.xlu0 %6124
        %6126 = vrot.lane.b32.xlu0 %v5322, 126
        %v6127 = vpop.permute.xlu0 %6126
        %6128 = vrot.lane.b32.xlu0 %v5324, 126
        %v6129 = vpop.permute.xlu0 %6128
        %6130 = vrot.lane.b32.xlu0 %v5326, 126
        %v6131 = vpop.permute.xlu0 %6130
        %6132 = vrot.lane.b32.xlu0 %v5328, 126
        %v6133 = vpop.permute.xlu0 %6132
        %6134 = vrot.lane.b32.xlu0 %v5330, 126
        %v6135 = vpop.permute.xlu0 %6134
        %6136 = vrot.lane.b32.xlu0 %v5332, 126
        %v6137 = vpop.permute.xlu0 %6136
        %6138 = vrot.lane.b32.xlu0 %v5334, 126
        %v6139 = vpop.permute.xlu0 %6138
        %6140 = vrot.lane.b32.xlu0 %v5336, 126
        %v6141 = vpop.permute.xlu0 %6140
        %6142 = vrot.lane.b32.xlu0 %v5338, 126
        %v6143 = vpop.permute.xlu0 %6142
        %v6176 = vcombine.low %v6081, %v6089
        %v6177 = vcombine.high %v6081, %v6089
        %v6179 = vunpack.c.l.s4 1983009808
        %v6180 = vunpack.c.0.s8 %v6179
        %v6181 = vlaneseq
        %v6182 = vshrl.u32 %v6181, 7
        %v6183 = vsub.s32 %v6180, %v6182
        %v6184 = vrot.slane %v6176, %v6183
        %v6186 = vunpack.c.l.s4 1983009808
        %v6187 = vunpack.c.0.s8 %v6186
        %v6188 = vlaneseq
        %v6189 = vshrl.u32 %v6188, 7
        %v6190 = vsub.s32 %v6187, %v6189
        %v6191 = vrot.slane %v6177, %v6190
        %v6192 = vcombine.low %v6085, %v6093
        %v6193 = vcombine.high %v6085, %v6093
        %v6195 = vunpack.c.l.s4 1983009808
        %v6196 = vunpack.c.0.s8 %v6195
        %v6197 = vlaneseq
        %v6198 = vshrl.u32 %v6197, 7
        %v6199 = vsub.s32 %v6196, %v6198
        %v6200 = vrot.slane %v6192, %v6199
        %v6202 = vunpack.c.l.s4 1983009808
        %v6203 = vunpack.c.0.s8 %v6202
        %v6204 = vlaneseq
        %v6205 = vshrl.u32 %v6204, 7
        %v6206 = vsub.s32 %v6203, %v6205
        %v6207 = vrot.slane %v6193, %v6206
        %v6208 = vcombine.low %v6097, %v6105
        %v6209 = vcombine.high %v6097, %v6105
        %v6211 = vunpack.c.l.s4 1983009808
        %v6212 = vunpack.c.0.s8 %v6211
        %v6213 = vlaneseq
        %v6214 = vshrl.u32 %v6213, 7
        %v6215 = vsub.s32 %v6212, %v6214
        %v6216 = vrot.slane %v6208, %v6215
        %v6218 = vunpack.c.l.s4 1983009808
        %v6219 = vunpack.c.0.s8 %v6218
        %v6220 = vlaneseq
        %v6221 = vshrl.u32 %v6220, 7
        %v6222 = vsub.s32 %v6219, %v6221
        %v6223 = vrot.slane %v6209, %v6222
        %v6224 = vcombine.low %v6101, %v6109
        %v6225 = vcombine.high %v6101, %v6109
        %v6227 = vunpack.c.l.s4 1983009808
        %v6228 = vunpack.c.0.s8 %v6227
        %v6229 = vlaneseq
        %v6230 = vshrl.u32 %v6229, 7
        %v6231 = vsub.s32 %v6228, %v6230
        %v6232 = vrot.slane %v6224, %v6231
        %v6234 = vunpack.c.l.s4 1983009808
        %v6235 = vunpack.c.0.s8 %v6234
        %v6236 = vlaneseq
        %v6237 = vshrl.u32 %v6236, 7
        %v6238 = vsub.s32 %v6235, %v6237
        %v6239 = vrot.slane %v6225, %v6238
        %v6240 = vcombine.low %v6184, %v6200
        %v6241 = vcombine.high %v6184, %v6200
        %v6243 = vunpack.c.l.s4 1934713408
        %v6244 = vunpack.c.0.s8 %v6243
        %v6245 = vlaneseq
        %v6246 = vshrl.u32 %v6245, 7
        %v6247 = vsub.s32 %v6244, %v6246
        %v6248 = vrot.slane %v6240, %v6247
        %v6250 = vunpack.c.l.s4 1934713408
        %v6251 = vunpack.c.0.s8 %v6250
        %v6252 = vlaneseq
        %v6253 = vshrl.u32 %v6252, 7
        %v6254 = vsub.s32 %v6251, %v6253
        %v6255 = vrot.slane %v6241, %v6254
        %v6256 = vcombine.low %v6191, %v6207
        %v6257 = vcombine.high %v6191, %v6207
        %v6259 = vunpack.c.l.s4 1934713408
        %v6260 = vunpack.c.0.s8 %v6259
        %v6261 = vlaneseq
        %v6262 = vshrl.u32 %v6261, 7
        %v6263 = vsub.s32 %v6260, %v6262
        %v6264 = vrot.slane %v6256, %v6263
        %v6266 = vunpack.c.l.s4 1934713408
        %v6267 = vunpack.c.0.s8 %v6266
        %v6268 = vlaneseq
        %v6269 = vshrl.u32 %v6268, 7
        %v6270 = vsub.s32 %v6267, %v6269
        %v6271 = vrot.slane %v6257, %v6270
        %v6272 = vcombine.low %v6216, %v6232
        %v6273 = vcombine.high %v6216, %v6232
        %v6275 = vunpack.c.l.s4 1934713408
        %v6276 = vunpack.c.0.s8 %v6275
        %v6277 = vlaneseq
        %v6278 = vshrl.u32 %v6277, 7
        %v6279 = vsub.s32 %v6276, %v6278
        %v6280 = vrot.slane %v6272, %v6279
        %v6282 = vunpack.c.l.s4 1934713408
        %v6283 = vunpack.c.0.s8 %v6282
        %v6284 = vlaneseq
        %v6285 = vshrl.u32 %v6284, 7
        %v6286 = vsub.s32 %v6283, %v6285
        %v6287 = vrot.slane %v6273, %v6286
        %v6288 = vcombine.low %v6223, %v6239
        %v6289 = vcombine.high %v6223, %v6239
        %v6291 = vunpack.c.l.s4 1934713408
        %v6292 = vunpack.c.0.s8 %v6291
        %v6293 = vlaneseq
        %v6294 = vshrl.u32 %v6293, 7
        %v6295 = vsub.s32 %v6292, %v6294
        %v6296 = vrot.slane %v6288, %v6295
        %v6298 = vunpack.c.l.s4 1934713408
        %v6299 = vunpack.c.0.s8 %v6298
        %v6300 = vlaneseq
        %v6301 = vshrl.u32 %v6300, 7
        %v6302 = vsub.s32 %v6299, %v6301
        %v6303 = vrot.slane %v6289, %v6302
        %v6304 = vcombine.low %v6248, %v6280
        %v6305 = vcombine.high %v6248, %v6280
        %v6306 = vcombine.low %v6255, %v6287
        %v6307 = vcombine.high %v6255, %v6287
        %v6308 = vcombine.low %v6264, %v6296
        %v6309 = vcombine.high %v6264, %v6296
        %v6310 = vcombine.low %v6271, %v6303
        %v6311 = vcombine.high %v6271, %v6303
        %v6312 = vcombine.low %v6113, %v6121
        %v6313 = vcombine.high %v6113, %v6121
        %v6315 = vunpack.c.l.s4 1983009808
        %v6316 = vunpack.c.0.s8 %v6315
        %v6317 = vlaneseq
        %v6318 = vshrl.u32 %v6317, 7
        %v6319 = vsub.s32 %v6316, %v6318
        %v6320 = vrot.slane %v6312, %v6319
        %v6322 = vunpack.c.l.s4 1983009808
        %v6323 = vunpack.c.0.s8 %v6322
        %v6324 = vlaneseq
        %v6325 = vshrl.u32 %v6324, 7
        %v6326 = vsub.s32 %v6323, %v6325
        %v6327 = vrot.slane %v6313, %v6326
        %v6328 = vcombine.low %v6117, %v6125
        %v6329 = vcombine.high %v6117, %v6125
        %v6331 = vunpack.c.l.s4 1983009808
        %v6332 = vunpack.c.0.s8 %v6331
        %v6333 = vlaneseq
        %v6334 = vshrl.u32 %v6333, 7
        %v6335 = vsub.s32 %v6332, %v6334
        %v6336 = vrot.slane %v6328, %v6335
        %v6338 = vunpack.c.l.s4 1983009808
        %v6339 = vunpack.c.0.s8 %v6338
        %v6340 = vlaneseq
        %v6341 = vshrl.u32 %v6340, 7
        %v6342 = vsub.s32 %v6339, %v6341
        %v6343 = vrot.slane %v6329, %v6342
        %v6344 = vcombine.low %v6129, %v6137
        %v6345 = vcombine.high %v6129, %v6137
        %v6347 = vunpack.c.l.s4 1983009808
        %v6348 = vunpack.c.0.s8 %v6347
        %v6349 = vlaneseq
        %v6350 = vshrl.u32 %v6349, 7
        %v6351 = vsub.s32 %v6348, %v6350
        %v6352 = vrot.slane %v6344, %v6351
        %v6354 = vunpack.c.l.s4 1983009808
        %v6355 = vunpack.c.0.s8 %v6354
        %v6356 = vlaneseq
        %v6357 = vshrl.u32 %v6356, 7
        %v6358 = vsub.s32 %v6355, %v6357
        %v6359 = vrot.slane %v6345, %v6358
        %v6360 = vcombine.low %v6133, %v6141
        %v6361 = vcombine.high %v6133, %v6141
        %v6363 = vunpack.c.l.s4 1983009808
        %v6364 = vunpack.c.0.s8 %v6363
        %v6365 = vlaneseq
        %v6366 = vshrl.u32 %v6365, 7
        %v6367 = vsub.s32 %v6364, %v6366
        %v6368 = vrot.slane %v6360, %v6367
        %v6370 = vunpack.c.l.s4 1983009808
        %v6371 = vunpack.c.0.s8 %v6370
        %v6372 = vlaneseq
        %v6373 = vshrl.u32 %v6372, 7
        %v6374 = vsub.s32 %v6371, %v6373
        %v6375 = vrot.slane %v6361, %v6374
        %v6376 = vcombine.low %v6320, %v6336
        %v6377 = vcombine.high %v6320, %v6336
        %v6379 = vunpack.c.l.s4 1934713408
        %v6380 = vunpack.c.0.s8 %v6379
        %v6381 = vlaneseq
        %v6382 = vshrl.u32 %v6381, 7
        %v6383 = vsub.s32 %v6380, %v6382
        %v6384 = vrot.slane %v6376, %v6383
        %v6386 = vunpack.c.l.s4 1934713408
        %v6387 = vunpack.c.0.s8 %v6386
        %v6388 = vlaneseq
        %v6389 = vshrl.u32 %v6388, 7
        %v6390 = vsub.s32 %v6387, %v6389
        %v6391 = vrot.slane %v6377, %v6390
        %v6392 = vcombine.low %v6327, %v6343
        %v6393 = vcombine.high %v6327, %v6343
        %v6395 = vunpack.c.l.s4 1934713408
        %v6396 = vunpack.c.0.s8 %v6395
        %v6397 = vlaneseq
        %v6398 = vshrl.u32 %v6397, 7
        %v6399 = vsub.s32 %v6396, %v6398
        %v6400 = vrot.slane %v6392, %v6399
        %v6402 = vunpack.c.l.s4 1934713408
        %v6403 = vunpack.c.0.s8 %v6402
        %v6404 = vlaneseq
        %v6405 = vshrl.u32 %v6404, 7
        %v6406 = vsub.s32 %v6403, %v6405
        %v6407 = vrot.slane %v6393, %v6406
        %v6408 = vcombine.low %v6352, %v6368
        %v6409 = vcombine.high %v6352, %v6368
        %v6411 = vunpack.c.l.s4 1934713408
        %v6412 = vunpack.c.0.s8 %v6411
        %v6413 = vlaneseq
        %v6414 = vshrl.u32 %v6413, 7
        %v6415 = vsub.s32 %v6412, %v6414
        %v6416 = vrot.slane %v6408, %v6415
        %v6418 = vunpack.c.l.s4 1934713408
        %v6419 = vunpack.c.0.s8 %v6418
        %v6420 = vlaneseq
        %v6421 = vshrl.u32 %v6420, 7
        %v6422 = vsub.s32 %v6419, %v6421
        %v6423 = vrot.slane %v6409, %v6422
        %v6424 = vcombine.low %v6359, %v6375
        %v6425 = vcombine.high %v6359, %v6375
        %v6427 = vunpack.c.l.s4 1934713408
        %v6428 = vunpack.c.0.s8 %v6427
        %v6429 = vlaneseq
        %v6430 = vshrl.u32 %v6429, 7
        %v6431 = vsub.s32 %v6428, %v6430
        %v6432 = vrot.slane %v6424, %v6431
        %v6434 = vunpack.c.l.s4 1934713408
        %v6435 = vunpack.c.0.s8 %v6434
        %v6436 = vlaneseq
        %v6437 = vshrl.u32 %v6436, 7
        %v6438 = vsub.s32 %v6435, %v6437
        %v6439 = vrot.slane %v6425, %v6438
        %v6440 = vcombine.low %v6384, %v6416
        %v6441 = vcombine.high %v6384, %v6416
        %v6442 = vcombine.low %v6391, %v6423
        %v6443 = vcombine.high %v6391, %v6423
        %v6444 = vcombine.low %v6400, %v6432
        %v6445 = vcombine.high %v6400, %v6432
        %v6446 = vcombine.low %v6407, %v6439
        %v6447 = vcombine.high %v6407, %v6439
        %v6448 = vcombine.low %v6083, %v6091
        %v6449 = vcombine.high %v6083, %v6091
        %v6451 = vunpack.c.l.s4 1983009808
        %v6452 = vunpack.c.0.s8 %v6451
        %v6453 = vlaneseq
        %v6454 = vshrl.u32 %v6453, 7
        %v6455 = vsub.s32 %v6452, %v6454
        %v6456 = vrot.slane %v6448, %v6455
        %v6458 = vunpack.c.l.s4 1983009808
        %v6459 = vunpack.c.0.s8 %v6458
        %v6460 = vlaneseq
        %v6461 = vshrl.u32 %v6460, 7
        %v6462 = vsub.s32 %v6459, %v6461
        %v6463 = vrot.slane %v6449, %v6462
        %v6464 = vcombine.low %v6087, %v6095
        %v6465 = vcombine.high %v6087, %v6095
        %v6467 = vunpack.c.l.s4 1983009808
        %v6468 = vunpack.c.0.s8 %v6467
        %v6469 = vlaneseq
        %v6470 = vshrl.u32 %v6469, 7
        %v6471 = vsub.s32 %v6468, %v6470
        %v6472 = vrot.slane %v6464, %v6471
        %v6474 = vunpack.c.l.s4 1983009808
        %v6475 = vunpack.c.0.s8 %v6474
        %v6476 = vlaneseq
        %v6477 = vshrl.u32 %v6476, 7
        %v6478 = vsub.s32 %v6475, %v6477
        %v6479 = vrot.slane %v6465, %v6478
        %v6480 = vcombine.low %v6099, %v6107
        %v6481 = vcombine.high %v6099, %v6107
        %v6483 = vunpack.c.l.s4 1983009808
        %v6484 = vunpack.c.0.s8 %v6483
        %v6485 = vlaneseq
        %v6486 = vshrl.u32 %v6485, 7
        %v6487 = vsub.s32 %v6484, %v6486
        %v6488 = vrot.slane %v6480, %v6487
        %v6490 = vunpack.c.l.s4 1983009808
        %v6491 = vunpack.c.0.s8 %v6490
        %v6492 = vlaneseq
        %v6493 = vshrl.u32 %v6492, 7
        %v6494 = vsub.s32 %v6491, %v6493
        %v6495 = vrot.slane %v6481, %v6494
        %v6496 = vcombine.low %v6103, %v6111
        %v6497 = vcombine.high %v6103, %v6111
        %v6499 = vunpack.c.l.s4 1983009808
        %v6500 = vunpack.c.0.s8 %v6499
        %v6501 = vlaneseq
        %v6502 = vshrl.u32 %v6501, 7
        %v6503 = vsub.s32 %v6500, %v6502
        %v6504 = vrot.slane %v6496, %v6503
        %v6506 = vunpack.c.l.s4 1983009808
        %v6507 = vunpack.c.0.s8 %v6506
        %v6508 = vlaneseq
        %v6509 = vshrl.u32 %v6508, 7
        %v6510 = vsub.s32 %v6507, %v6509
        %v6511 = vrot.slane %v6497, %v6510
        %v6512 = vcombine.low %v6456, %v6472
        %v6513 = vcombine.high %v6456, %v6472
        %v6515 = vunpack.c.l.s4 1934713408
        %v6516 = vunpack.c.0.s8 %v6515
        %v6517 = vlaneseq
        %v6518 = vshrl.u32 %v6517, 7
        %v6519 = vsub.s32 %v6516, %v6518
        %v6520 = vrot.slane %v6512, %v6519
        %v6522 = vunpack.c.l.s4 1934713408
        %v6523 = vunpack.c.0.s8 %v6522
        %v6524 = vlaneseq
        %v6525 = vshrl.u32 %v6524, 7
        %v6526 = vsub.s32 %v6523, %v6525
        %v6527 = vrot.slane %v6513, %v6526
        %v6528 = vcombine.low %v6463, %v6479
        %v6529 = vcombine.high %v6463, %v6479
        %v6531 = vunpack.c.l.s4 1934713408
        %v6532 = vunpack.c.0.s8 %v6531
        %v6533 = vlaneseq
        %v6534 = vshrl.u32 %v6533, 7
        %v6535 = vsub.s32 %v6532, %v6534
        %v6536 = vrot.slane %v6528, %v6535
        %v6538 = vunpack.c.l.s4 1934713408
        %v6539 = vunpack.c.0.s8 %v6538
        %v6540 = vlaneseq
        %v6541 = vshrl.u32 %v6540, 7
        %v6542 = vsub.s32 %v6539, %v6541
        %v6543 = vrot.slane %v6529, %v6542
        %v6544 = vcombine.low %v6488, %v6504
        %v6545 = vcombine.high %v6488, %v6504
        %v6547 = vunpack.c.l.s4 1934713408
        %v6548 = vunpack.c.0.s8 %v6547
        %v6549 = vlaneseq
        %v6550 = vshrl.u32 %v6549, 7
        %v6551 = vsub.s32 %v6548, %v6550
        %v6552 = vrot.slane %v6544, %v6551
        %v6554 = vunpack.c.l.s4 1934713408
        %v6555 = vunpack.c.0.s8 %v6554
        %v6556 = vlaneseq
        %v6557 = vshrl.u32 %v6556, 7
        %v6558 = vsub.s32 %v6555, %v6557
        %v6559 = vrot.slane %v6545, %v6558
        %v6560 = vcombine.low %v6495, %v6511
        %v6561 = vcombine.high %v6495, %v6511
        %v6563 = vunpack.c.l.s4 1934713408
        %v6564 = vunpack.c.0.s8 %v6563
        %v6565 = vlaneseq
        %v6566 = vshrl.u32 %v6565, 7
        %v6567 = vsub.s32 %v6564, %v6566
        %v6568 = vrot.slane %v6560, %v6567
        %v6570 = vunpack.c.l.s4 1934713408
        %v6571 = vunpack.c.0.s8 %v6570
        %v6572 = vlaneseq
        %v6573 = vshrl.u32 %v6572, 7
        %v6574 = vsub.s32 %v6571, %v6573
        %v6575 = vrot.slane %v6561, %v6574
        %v6576 = vcombine.low %v6520, %v6552
        %v6577 = vcombine.high %v6520, %v6552
        %v6578 = vcombine.low %v6527, %v6559
        %v6579 = vcombine.high %v6527, %v6559
        %v6580 = vcombine.low %v6536, %v6568
        %v6581 = vcombine.high %v6536, %v6568
        %v6582 = vcombine.low %v6543, %v6575
        %v6583 = vcombine.high %v6543, %v6575
        %v6584 = vcombine.low %v6115, %v6123
        %v6585 = vcombine.high %v6115, %v6123
        %v6587 = vunpack.c.l.s4 1983009808
        %v6588 = vunpack.c.0.s8 %v6587
        %v6589 = vlaneseq
        %v6590 = vshrl.u32 %v6589, 7
        %v6591 = vsub.s32 %v6588, %v6590
        %v6592 = vrot.slane %v6584, %v6591
        %v6594 = vunpack.c.l.s4 1983009808
        %v6595 = vunpack.c.0.s8 %v6594
        %v6596 = vlaneseq
        %v6597 = vshrl.u32 %v6596, 7
        %v6598 = vsub.s32 %v6595, %v6597
        %v6599 = vrot.slane %v6585, %v6598
        %v6600 = vcombine.low %v6119, %v6127
        %v6601 = vcombine.high %v6119, %v6127
        %v6603 = vunpack.c.l.s4 1983009808
        %v6604 = vunpack.c.0.s8 %v6603
        %v6605 = vlaneseq
        %v6606 = vshrl.u32 %v6605, 7
        %v6607 = vsub.s32 %v6604, %v6606
        %v6608 = vrot.slane %v6600, %v6607
        %v6610 = vunpack.c.l.s4 1983009808
        %v6611 = vunpack.c.0.s8 %v6610
        %v6612 = vlaneseq
        %v6613 = vshrl.u32 %v6612, 7
        %v6614 = vsub.s32 %v6611, %v6613
        %v6615 = vrot.slane %v6601, %v6614
        %v6616 = vcombine.low %v6131, %v6139
        %v6617 = vcombine.high %v6131, %v6139
        %v6619 = vunpack.c.l.s4 1983009808
        %v6620 = vunpack.c.0.s8 %v6619
        %v6621 = vlaneseq
        %v6622 = vshrl.u32 %v6621, 7
        %v6623 = vsub.s32 %v6620, %v6622
        %v6624 = vrot.slane %v6616, %v6623
        %v6626 = vunpack.c.l.s4 1983009808
        %v6627 = vunpack.c.0.s8 %v6626
        %v6628 = vlaneseq
        %v6629 = vshrl.u32 %v6628, 7
        %v6630 = vsub.s32 %v6627, %v6629
        %v6631 = vrot.slane %v6617, %v6630
        %v6632 = vcombine.low %v6135, %v6143
        %v6633 = vcombine.high %v6135, %v6143
        %v6635 = vunpack.c.l.s4 1983009808
        %v6636 = vunpack.c.0.s8 %v6635
        %v6637 = vlaneseq
        %v6638 = vshrl.u32 %v6637, 7
        %v6639 = vsub.s32 %v6636, %v6638
        %v6640 = vrot.slane %v6632, %v6639
        %v6642 = vunpack.c.l.s4 1983009808
        %v6643 = vunpack.c.0.s8 %v6642
        %v6644 = vlaneseq
        %v6645 = vshrl.u32 %v6644, 7
        %v6646 = vsub.s32 %v6643, %v6645
        %v6647 = vrot.slane %v6633, %v6646
        %v6648 = vcombine.low %v6592, %v6608
        %v6649 = vcombine.high %v6592, %v6608
        %v6651 = vunpack.c.l.s4 1934713408
        %v6652 = vunpack.c.0.s8 %v6651
        %v6653 = vlaneseq
        %v6654 = vshrl.u32 %v6653, 7
        %v6655 = vsub.s32 %v6652, %v6654
        %v6656 = vrot.slane %v6648, %v6655
        %v6658 = vunpack.c.l.s4 1934713408
        %v6659 = vunpack.c.0.s8 %v6658
        %v6660 = vlaneseq
        %v6661 = vshrl.u32 %v6660, 7
        %v6662 = vsub.s32 %v6659, %v6661
        %v6663 = vrot.slane %v6649, %v6662
        %v6664 = vcombine.low %v6599, %v6615
        %v6665 = vcombine.high %v6599, %v6615
        %v6667 = vunpack.c.l.s4 1934713408
        %v6668 = vunpack.c.0.s8 %v6667
        %v6669 = vlaneseq
        %v6670 = vshrl.u32 %v6669, 7
        %v6671 = vsub.s32 %v6668, %v6670
        %v6672 = vrot.slane %v6664, %v6671
        %v6674 = vunpack.c.l.s4 1934713408
        %v6675 = vunpack.c.0.s8 %v6674
        %v6676 = vlaneseq
        %v6677 = vshrl.u32 %v6676, 7
        %v6678 = vsub.s32 %v6675, %v6677
        %v6679 = vrot.slane %v6665, %v6678
        %v6680 = vcombine.low %v6624, %v6640
        %v6681 = vcombine.high %v6624, %v6640
        %v6683 = vunpack.c.l.s4 1934713408
        %v6684 = vunpack.c.0.s8 %v6683
        %v6685 = vlaneseq
        %v6686 = vshrl.u32 %v6685, 7
        %v6687 = vsub.s32 %v6684, %v6686
        %v6688 = vrot.slane %v6680, %v6687
        %v6690 = vunpack.c.l.s4 1934713408
        %v6691 = vunpack.c.0.s8 %v6690
        %v6692 = vlaneseq
        %v6693 = vshrl.u32 %v6692, 7
        %v6694 = vsub.s32 %v6691, %v6693
        %v6695 = vrot.slane %v6681, %v6694
        %v6696 = vcombine.low %v6631, %v6647
        %v6697 = vcombine.high %v6631, %v6647
        %v6699 = vunpack.c.l.s4 1934713408
        %v6700 = vunpack.c.0.s8 %v6699
        %v6701 = vlaneseq
        %v6702 = vshrl.u32 %v6701, 7
        %v6703 = vsub.s32 %v6700, %v6702
        %v6704 = vrot.slane %v6696, %v6703
        %v6706 = vunpack.c.l.s4 1934713408
        %v6707 = vunpack.c.0.s8 %v6706
        %v6708 = vlaneseq
        %v6709 = vshrl.u32 %v6708, 7
        %v6710 = vsub.s32 %v6707, %v6709
        %v6711 = vrot.slane %v6697, %v6710
        %v6712 = vcombine.low %v6656, %v6688
        %v6713 = vcombine.high %v6656, %v6688
        %v6714 = vcombine.low %v6663, %v6695
        %v6715 = vcombine.high %v6663, %v6695
        %v6716 = vcombine.low %v6672, %v6704
        %v6717 = vcombine.high %v6672, %v6704
        %v6718 = vcombine.low %v6679, %v6711
        %v6719 = vcombine.high %v6679, %v6711
        %6722 = vrot.lane.b32.xlu0 %v6305, 2
        %v6723 = vpop.permute.xlu0 %6722
        %6724 = vrot.lane.b32.xlu0 %v6441, 2
        %v6725 = vpop.permute.xlu0 %6724
        %6730 = vrot.lane.b32.xlu0 %v6306, 4
        %v6731 = vpop.permute.xlu0 %6730
        %6732 = vrot.lane.b32.xlu0 %v6442, 4
        %v6733 = vpop.permute.xlu0 %6732
        %6738 = vrot.lane.b32.xlu0 %v6307, 6
        %v6739 = vpop.permute.xlu0 %6738
        %6740 = vrot.lane.b32.xlu0 %v6443, 6
        %v6741 = vpop.permute.xlu0 %6740
        %6746 = vrot.lane.b32.xlu0 %v6308, 8
        %v6747 = vpop.permute.xlu0 %6746
        %6748 = vrot.lane.b32.xlu0 %v6444, 8
        %v6749 = vpop.permute.xlu0 %6748
        %6754 = vrot.lane.b32.xlu0 %v6309, 10
        %v6755 = vpop.permute.xlu0 %6754
        %6756 = vrot.lane.b32.xlu0 %v6445, 10
        %v6757 = vpop.permute.xlu0 %6756
        %6762 = vrot.lane.b32.xlu0 %v6310, 12
        %v6763 = vpop.permute.xlu0 %6762
        %6764 = vrot.lane.b32.xlu0 %v6446, 12
        %v6765 = vpop.permute.xlu0 %6764
        %6770 = vrot.lane.b32.xlu0 %v6311, 14
        %v6771 = vpop.permute.xlu0 %6770
        %6772 = vrot.lane.b32.xlu0 %v6447, 14
        %v6773 = vpop.permute.xlu0 %6772
        %6778 = vrot.lane.b32.xlu0 %v6576, 16
        %v6779 = vpop.permute.xlu0 %6778
        %6780 = vrot.lane.b32.xlu0 %v6712, 16
        %v6781 = vpop.permute.xlu0 %6780
        %6786 = vrot.lane.b32.xlu0 %v6577, 18
        %v6787 = vpop.permute.xlu0 %6786
        %6788 = vrot.lane.b32.xlu0 %v6713, 18
        %v6789 = vpop.permute.xlu0 %6788
        %6794 = vrot.lane.b32.xlu0 %v6578, 20
        %v6795 = vpop.permute.xlu0 %6794
        %6796 = vrot.lane.b32.xlu0 %v6714, 20
        %v6797 = vpop.permute.xlu0 %6796
        %6802 = vrot.lane.b32.xlu0 %v6579, 22
        %v6803 = vpop.permute.xlu0 %6802
        %6804 = vrot.lane.b32.xlu0 %v6715, 22
        %v6805 = vpop.permute.xlu0 %6804
        %6810 = vrot.lane.b32.xlu0 %v6580, 24
        %v6811 = vpop.permute.xlu0 %6810
        %6812 = vrot.lane.b32.xlu0 %v6716, 24
        %v6813 = vpop.permute.xlu0 %6812
        %6818 = vrot.lane.b32.xlu0 %v6581, 26
        %v6819 = vpop.permute.xlu0 %6818
        %6820 = vrot.lane.b32.xlu0 %v6717, 26
        %v6821 = vpop.permute.xlu0 %6820
        %6826 = vrot.lane.b32.xlu0 %v6582, 28
        %v6827 = vpop.permute.xlu0 %6826
        %6828 = vrot.lane.b32.xlu0 %v6718, 28
        %v6829 = vpop.permute.xlu0 %6828
        %6834 = vrot.lane.b32.xlu0 %v6583, 30
        %v6835 = vpop.permute.xlu0 %6834
        %6836 = vrot.lane.b32.xlu0 %v6719, 30
        %v6837 = vpop.permute.xlu0 %6836
        %v6840 = vsel %vm6003, %v6304, %v6723
        %v6841 = vsel %vm6003, %v6440, %v6725
        %v6842 = vsel %vm6006, %v6840, %v6731
        %v6843 = vsel %vm6006, %v6841, %v6733
        %v6844 = vsel %vm6009, %v6842, %v6739
        %v6845 = vsel %vm6009, %v6843, %v6741
        %v6846 = vsel %vm6012, %v6844, %v6747
        %v6847 = vsel %vm6012, %v6845, %v6749
        %v6848 = vsel %vm6015, %v6846, %v6755
        %v6849 = vsel %vm6015, %v6847, %v6757
        %v6850 = vsel %vm6018, %v6848, %v6763
        %v6851 = vsel %vm6018, %v6849, %v6765
        %v6852 = vsel %vm6021, %v6850, %v6771
        %v6853 = vsel %vm6021, %v6851, %v6773
        %v6854 = vsel %vm6024, %v6852, %v6779
        %v6855 = vsel %vm6024, %v6853, %v6781
        %v6856 = vsel %vm6027, %v6854, %v6787
        %v6857 = vsel %vm6027, %v6855, %v6789
        %v6858 = vsel %vm6030, %v6856, %v6795
        %v6859 = vsel %vm6030, %v6857, %v6797
        %v6860 = vsel %vm6033, %v6858, %v6803
        %v6861 = vsel %vm6033, %v6859, %v6805
        %v6862 = vsel %vm6036, %v6860, %v6811
        %v6863 = vsel %vm6036, %v6861, %v6813
        %v6864 = vsel %vm6039, %v6862, %v6819
        %v6865 = vsel %vm6039, %v6863, %v6821
        %v6866 = vsel %vm6042, %v6864, %v6827
        %v6867 = vsel %vm6042, %v6865, %v6829
        %v6868 = vsel %vm6045, %v6866, %v6835
        %v6869 = vsel %vm6045, %v6867, %v6837
        %6872 = vrot.lane.b32.xlu0 %v6868, 32
        %v6873 = vpop.permute.xlu0 %6872
        %6874 = vrot.lane.b32.xlu0 %v6869, 32
        %v6875 = vpop.permute.xlu0 %6874
        %v6878 = vsel %vm4483, %v6046, %v6873
        %v6879 = vsel %vm4483, %v6047, %v6875
        %6880 = vst.msk [vmem:[%s285] sm:$0xff] %vm2275, %v6878
        %6881 = vst.msk [vmem:[%s285 + $0x8] sm:$0xff] %vm2275, %v6879
        %s6882 = sand.u32 %s195, 1
        %s6883 = scalar_lea.sflag [#allocation5], %s6882
        %s6884 = sand.u32 %s195, 1
        %s6885 = smul.addr %s6884, 16
        %s6886 = scalar_lea.vmem [#allocation4], %s6885
        // Predicated region
        $region49: #{tpu_custom_call.1} parent=47 // pred_check
          %p6887 = pneg %p205
        $region50: #{tpu_custom_call.1} parent=47 // pred_check_branch
          %6889 = sbr.rel (%p6887) target = $region52
        $region51: #{tpu_custom_call.1} parent=47 // pred_region
          %s6890 = smul.u32 2, %s26
          %s6892 = ssub.s32 256, 256
          %6893 = vsyncadd %s6883, %s6892
          %s6894 = smul.addr %s25, 2
          %s6895 = sadd.s32 %s6890, %s6894
          %s6896 = smul.addr %s6895, 128
          %s6897 = scalar_lea.hbm %s7, %s6896
          %s6898 = sshll.u32 %s6886, 4
          %s6899 = int_to_ptr.vmem [resolvable:$true] %s6898
          %6904 = dma.vmem_to_hbm [thread:$0]  %s6899, 256, %s6897, %s6883, 128, 128, 8
        $region52: #{tpu_custom_call.1} parent=47 // pred_fallthru
          _
      $region48: #{tpu_custom_call.1} parent=5 // pred_fallthru
        _
      %p6905 = scmp.le.s32.totalorder 2, %s16
      // Predicated region
      $region53: #{tpu_custom_call.1} parent=5 // pred_check
        %p6906 = pneg %p6905
      $region54: #{tpu_custom_call.1} parent=5 // pred_check_branch
        %6908 = sbr.rel (%p6906) target = $region56
      $region55: #{tpu_custom_call.1} parent=5 // pred_region
        %s6909 = ssub.s32 %s16, 2
        // Predicated region
        $region57: #{tpu_custom_call.1} parent=55 // pred_check
          %p6910 = pneg %p211
        $region58: #{tpu_custom_call.1} parent=55 // pred_check_branch
          %6912 = sbr.rel (%p6910) target = $region60
        $region59: #{tpu_custom_call.1} parent=55 // pred_region
          %s6913 = sand.u32 %s196, 1
          %s6914 = scalar_lea.sflag [#allocation5], %s6913
          %s6915 = sand.u32 %s196, 1
          %s6916 = smul.addr %s6915, 16
          %s6917 = scalar_lea.vmem [#allocation4], %s6916
          %6918 = dma.done %s6914, 256
        $region60: #{tpu_custom_call.1} parent=55 // pred_fallthru
          _
      $region56: #{tpu_custom_call.1} parent=5 // pred_fallthru
        _
    $region6: #{tpu_custom_call.1} parent=1 // loop_footer
      %s20 = sadd.s32 1, %s16
    $region7: #{tpu_custom_call.1} parent=1 // loop_footer_branch
      %15 = sbr.rel target = $region3
    $region8: #{tpu_custom_call.1} parent=1 // loop_exit
      _
    %6919 = vsyncpa [#allocation5], 1
    %s6920 = scalar_lea.sflag [#allocation5], 1
    %6921 = vsyncpa %s6920, 1

</llo_original>
